<compile_context>
chip_gen: v5e
topology: v5e:2x2
jax: 0.10.0
libtpu: 0.0.40
codegen_flags: <defaults>
</compile_context>

<pallas_src>
import jax
import jax.numpy as jnp
from jax.experimental import pallas as pl
from jax.experimental.pallas import tpu as pltpu

# ---------------- scaled-down ViT-S/14-like config ----------------
PATCH = 4          # real DINOv2: 14
IMG = 16           # real DINOv2: 224
C_IN = 3
D = 32             # embed dim (real: 384)
HEADS = 2          # real: 6
HEAD_DIM = D // HEADS
MLP_HIDDEN = 4 * D
DEPTH = 2          # real: 12
N_SIDE = IMG // PATCH
N_PATCH = N_SIDE * N_SIDE
T = N_PATCH + 1    # 17 = patches + cls
T_PAD = 24         # padded to a sublane multiple; pad rows masked
CPP = C_IN * PATCH * PATCH
EPS = 1e-6
OUT_DIM = 2 * D    # use_patch_tokens=True -> cat(cls, mean(patch)) (real: 768)
SCALE = 1.0 / (HEAD_DIM ** 0.5)
NEG_INF = -1e30


# ----------------------- in-kernel helpers ---------------------------
def _layernorm(v, g, b):
    mu = jnp.mean(v, axis=-1, keepdims=True)
    var = jnp.mean((v - mu) ** 2, axis=-1, keepdims=True)
    return (v - mu) * jax.lax.rsqrt(var + EPS) * g + b


def _erf(x):
    # Abramowitz & Stegun 7.1.26 polynomial erf (|abs err| <= 1.5e-7), so GELU
    # matches PyTorch's exact-erf nn.GELU() to ~f32 precision (vs tanh approx).
    a1, a2, a3, a4, a5 = (0.254829592, -0.284496736, 1.421413741,
                          -1.453152027, 1.061405429)
    pp = 0.3275911
    sgn = jnp.where(x >= 0.0, 1.0, -1.0)
    z = jnp.abs(x)
    t = 1.0 / (1.0 + pp * z)
    poly = t * (a1 + t * (a2 + t * (a3 + t * (a4 + t * a5))))
    return sgn * (1.0 - poly * jnp.exp(-z * z))


def _gelu_exact(x):
    return 0.5 * x * (1.0 + _erf(x * 0.7071067811865476))


# ----------------------- fused encoder kernel ---------------------------
def _encoder_kernel(patches_ref, pw_ref, add_ref, mask_ref, selc_ref, selm_ref,
                    ln1_g, ln1_b, wqkv, bqkv, wo, bo, ls1,
                    ln2_g, ln2_b, w1, b1, w2, b2, ls2,
                    lnf_g, lnf_b, out_ref):
    bt = patches_ref.shape[0]          # B * T_PAD: batch folded into the M dim

    # ---- patch embed + (pos / cls / conv-bias) add: one MXU matmul + one add ----
    x = (jnp.dot(patches_ref[...], pw_ref[...],
                 preferred_element_type=jnp.float32) + add_ref[...])

    # (BT, BT) additive mask: 0 for same-image valid keys, -1e30 elsewhere
    # (blocks cross-image attention and pad-key columns in a single add).
    mask_bias = mask_ref[...]

    for layer in range(DEPTH):         # static unroll; weights are VMEM-resident
        # ---------------- attention branch ----------------
        h = _layernorm(x, ln1_g[layer], ln1_b[layer])
        qkv = (jnp.dot(h.astype(jnp.bfloat16), wqkv[layer],
                       preferred_element_type=jnp.float32) + bqkv[layer])
        wo_l = wo[layer]
        acc = jnp.zeros((bt, D), jnp.float32)
        for hd in range(HEADS):        # per head, batched over all images
            lo = hd * HEAD_DIM
            q_h = qkv[:, lo:lo + HEAD_DIM].astype(jnp.bfloat16)
            k_h = qkv[:, D + lo:D + lo + HEAD_DIM].astype(jnp.bfloat16)
            v_h = qkv[:, 2 * D + lo:2 * D + lo + HEAD_DIM].astype(jnp.bfloat16)
            # contract the head dim of BOTH operands (no explicit k.T);
            # result is a block-diagonal (per image) score matrix.
            s = jax.lax.dot_general(q_h, k_h, (((1,), (1,)), ((), ())),
                                    preferred_element_type=jnp.float32)
            s = s * SCALE + mask_bias
            s = s - jnp.max(s, axis=-1, keepdims=True)
            p = jnp.exp(s)
            p = p / jnp.sum(p, axis=-1, keepdims=True)   # exact softmax (f32)
            o_h = jnp.dot(p.astype(jnp.bfloat16), v_h,
                          preferred_element_type=jnp.float32)
            # per-head partial output projection -> no lane-axis head concat
            acc = acc + jnp.dot(o_h.astype(jnp.bfloat16),
                                wo_l[lo:lo + HEAD_DIM, :],
                                preferred_element_type=jnp.float32)
        x = x + ls1[layer] * (acc + bo[layer])           # residual + LayerScale

        # ---------------- MLP branch ----------------
        h2 = _layernorm(x, ln2_g[layer], ln2_b[layer])
        m = (jnp.dot(h2.astype(jnp.bfloat16), w1[layer],
                     preferred_element_type=jnp.float32) + b1[layer])
        m = _gelu_exact(m)
        m = (jnp.dot(m.astype(jnp.bfloat16), w2[layer],
                     preferred_element_type=jnp.float32) + b2[layer])
        x = x + ls2[layer] * m                            # residual + LayerScale

    # ---------------- final LN + head (vectorized over batch) ----------------
    # NOTE: pad rows (T..T_PAD-1) carry harmless finite junk; they are excluded
    # here by the selection matrices and were masked as keys above.
    xn = _layernorm(x, lnf_g[...], lnf_b[...])
    cls_feat = jnp.dot(selc_ref[...], xn, preferred_element_type=jnp.float32)
    mean_feat = jnp.dot(selm_ref[...], xn, preferred_element_type=jnp.float32)
    # single lane-dense (B, 2*D) store: [cls || patch-mean]
    out_ref[...] = jnp.concatenate([cls_feat, mean_feat], axis=-1)


# ------------------------ JAX wrappers -----------------------------
def extract_patches(x):
    """NCHW image -> (B, N_PATCH, C*P*P) in (c, ph, pw) order (matches conv weight)."""
    B = x.shape[0]
    x = x.reshape(B, C_IN, N_SIDE, PATCH, N_SIDE, PATCH)
    x = x.transpose(0, 2, 4, 1, 3, 5)                    # (B, nh, nw, C, ph, pw)
    return x.reshape(B, N_PATCH, CPP)


def init_params(key):
    # TODO(synk): real module loads pretrained DINOv2 weights via torch.hub;
    # here we use deterministic random init at the scaled-down dims.
    def nrm(k, shape, scale=0.02):
        return scale * jax.random.normal(k, shape, dtype=jnp.float32)

    keys = jax.random.split(key, 8 + DEPTH * 8)
    ki = iter(keys)
    p = {}
    p["patch_w"] = nrm(next(ki), (D, C_IN, PATCH, PATCH))
    p["patch_b"] = nrm(next(ki), (1, D))
    p["cls"] = nrm(next(ki), (1, 1, D))
    p["pos"] = nrm(next(ki), (1, T, D))
    p["blocks"] = []
    for _ in range(DEPTH):
        blk = dict(
            ln1_g=jnp.ones((1, D), jnp.float32),
            ln1_b=jnp.zeros((1, D), jnp.float32),
            wqkv=nrm(next(ki), (D, 3 * D)),
            bqkv=nrm(next(ki), (1, 3 * D)),
            wo=nrm(next(ki), (D, D)),
            bo=nrm(next(ki), (1, D)),
            ls1=jnp.full((1, D), 0.1, jnp.float32),
            ln2_g=jnp.ones((1, D), jnp.float32),
            ln2_b=jnp.zeros((1, D), jnp.float32),
            w1=nrm(next(ki), (D, MLP_HIDDEN)),
            b1=nrm(next(ki), (1, MLP_HIDDEN)),
            w2=nrm(next(ki), (MLP_HIDDEN, D)),
            b2=nrm(next(ki), (1, D)),
            ls2=jnp.full((1, D), 0.1, jnp.float32),
        )
        p["blocks"].append(blk)
    p["lnf_g"] = jnp.ones((1, D), jnp.float32)
    p["lnf_b"] = jnp.zeros((1, D), jnp.float32)
    return p


@jax.jit
def dinov2_feature_encoder(x, params):
    """x: (B, 3, IMG, IMG) float32  ->  (B, 2*D) float32."""
    B = x.shape[0]
    BT = B * T_PAD

    # ---- host-side layout plumbing (keeps all per-batch loops out of the kernel) ----
    # patch pixels padded to the internal layout: rows [0..15]=patches,
    # [16]=cls (zero pixels), [17..23]=pad (zero pixels).
    patches = extract_patches(x)                          # (B, N_PATCH, CPP)
    patches_pad = jnp.zeros((B, T_PAD, CPP), jnp.float32)
    patches_pad = patches_pad.at[:, :N_PATCH, :].set(patches)
    patches_pad = patches_pad.reshape(BT, CPP).astype(jnp.bfloat16)

    w_mat = params["patch_w"].reshape(D, CPP).T.astype(jnp.bfloat16)  # conv-as-matmul

    # additive tensor: patch rows get pos+conv_bias, cls row gets cls+pos_cls, pad rows 0
    pos = params["pos"][0]                                # (T, D), row 0 = cls pos
    add_img = jnp.zeros((T_PAD, D), jnp.float32)
    add_img = add_img.at[:N_PATCH, :].set(pos[1:T] + params["patch_b"])
    add_img = add_img.at[N_PATCH, :].set(params["cls"].reshape(D) + pos[0])
    add_full = jnp.broadcast_to(add_img[None], (B, T_PAD, D)).reshape(BT, D)

    # block-diagonal (per image) + pad-key additive attention mask
    tok = jnp.arange(BT)
    same_img = (tok[:, None] // T_PAD) == (tok[None, :] // T_PAD)
    key_valid = ((tok % T_PAD) < T)[None, :]
    mask_bias = jnp.where(same_img & key_valid, 0.0, NEG_INF).astype(jnp.float32)

    # selection matrices: cls-row picker and patch-mean reducer (all images at once)
    b_idx = jnp.arange(B)
    sel_cls = jnp.zeros((B, BT), jnp.float32).at[
        b_idx, b_idx * T_PAD + N_PATCH].set(1.0)
    patch_rows = b_idx[:, None] * T_PAD + jnp.arange(N_PATCH)[None, :]
    sel_mean = jnp.zeros((B, BT), jnp.float32).at[
        b_idx[:, None], patch_rows].set(1.0 / N_PATCH)

    def stk(name, dtype=jnp.float32):
        return jnp.stack([blk[name] for blk in params["blocks"]],
                         axis=0).astype(dtype)

    operands = (
        patches_pad, w_mat, add_full, mask_bias, sel_cls, sel_mean,
        stk("ln1_g"), stk("ln1_b"),
        stk("wqkv", jnp.bfloat16), stk("bqkv"),
        stk("wo", jnp.bfloat16), stk("bo"), stk("ls1"),
        stk("ln2_g"), stk("ln2_b"),
        stk("w1", jnp.bfloat16), stk("b1"),
        stk("w2", jnp.bfloat16), stk("b2"), stk("ls2"),
        params["lnf_g"], params["lnf_b"],
    )

    # advisory cost estimate for the XLA scheduler
    flops = 2 * BT * CPP * D
    flops += DEPTH * (
        2 * BT * D * (3 * D)                               # qkv
        + HEADS * (4 * BT * BT * HEAD_DIM                  # q@k^T and p@v
                   + 2 * BT * HEAD_DIM * D)                # per-head out-proj
        + 4 * BT * D * MLP_HIDDEN)                         # fc1 + fc2
    flops += 4 * B * BT * D                                # cls/mean selection matmuls
    transcendentals = DEPTH * (HEADS * BT * BT + BT * MLP_HIDDEN)
    bytes_accessed = (sum(int(o.size) * o.dtype.itemsize for o in operands)
                      + B * OUT_DIM * 4)

    out = pl.pallas_call(
        _encoder_kernel,
        out_shape=jax.ShapeDtypeStruct((B, OUT_DIM), jnp.float32),
        compiler_params=pltpu.CompilerParams(
            # toy config needs ~hundreds of KB; explicit limit keeps headroom
            # obvious if the config is scaled up (v5e default is only 16 MiB).
            vmem_limit_bytes=32 * 1024 * 1024),
        cost_estimate=pl.CostEstimate(flops=int(flops),
                                      transcendentals=int(transcendentals),
                                      bytes_accessed=int(bytes_accessed)),
    )(*operands)
    return out                                            # (B, 2*D) = cat(cls, mean)


if __name__ == "__main__":
    key = jax.random.PRNGKey(0)
    kx, kp = jax.random.split(key)
    x = jax.random.normal(kx, (2, C_IN, IMG, IMG), dtype=jnp.float32)
    params = init_params(kp)

    feats = jax.block_until_ready(dinov2_feature_encoder(x, params))

    assert feats.shape == (2, OUT_DIM), feats.shape
    assert bool(jnp.all(jnp.isfinite(feats)))
    print("KERNEL_OK")
</pallas_src>

<mosaic_0001>
module attributes {stable_mosaic.version = 11 : i64} {
  func.func @_encoder_kernel(%arg0: memref<48x48xbf16, #tpu.memory_space<vmem>>, %arg1: memref<48x32xbf16, #tpu.memory_space<vmem>>, %arg2: memref<48x32xf32, #tpu.memory_space<vmem>>, %arg3: memref<48x48xf32, #tpu.memory_space<vmem>>, %arg4: memref<2x48xf32, #tpu.memory_space<vmem>>, %arg5: memref<2x48xf32, #tpu.memory_space<vmem>>, %arg6: memref<2x1x32xf32, #tpu.memory_space<vmem>>, %arg7: memref<2x1x32xf32, #tpu.memory_space<vmem>>, %arg8: memref<2x32x96xbf16, #tpu.memory_space<vmem>>, %arg9: memref<2x1x96xf32, #tpu.memory_space<vmem>>, %arg10: memref<2x32x32xbf16, #tpu.memory_space<vmem>>, %arg11: memref<2x1x32xf32, #tpu.memory_space<vmem>>, %arg12: memref<2x1x32xf32, #tpu.memory_space<vmem>>, %arg13: memref<2x1x32xf32, #tpu.memory_space<vmem>>, %arg14: memref<2x1x32xf32, #tpu.memory_space<vmem>>, %arg15: memref<2x32x128xbf16, #tpu.memory_space<vmem>>, %arg16: memref<2x1x128xf32, #tpu.memory_space<vmem>>, %arg17: memref<2x128x32xbf16, #tpu.memory_space<vmem>>, %arg18: memref<2x1x32xf32, #tpu.memory_space<vmem>>, %arg19: memref<2x1x32xf32, #tpu.memory_space<vmem>>, %arg20: memref<1x32xf32, #tpu.memory_space<vmem>>, %arg21: memref<1x32xf32, #tpu.memory_space<vmem>>, %arg22: memref<2x64xf32, #tpu.memory_space<vmem>>) attributes {dimension_semantics = [], scalar_prefetch = 0 : i64, scratch_operands = 0 : i64, tpu.core_type = #tpu.core_type<tc>} {
    %c0 = arith.constant 0 : index
    %c0_0 = arith.constant 0 : index
    %0 = vector.load %arg0[%c0, %c0_0] : memref<48x48xbf16, #tpu.memory_space<vmem>>, vector<48x48xbf16>
    %c0_1 = arith.constant 0 : index
    %c0_2 = arith.constant 0 : index
    %1 = vector.load %arg1[%c0_1, %c0_2] : memref<48x32xbf16, #tpu.memory_space<vmem>>, vector<48x32xbf16>
    %cst = arith.constant dense<0.000000e+00> : vector<48x32xf32>
    %2 = tpu.matmul %0, %1, %cst {dimension_numbers = #tpu.dot_dimension_numbers<[1], [0], [0], [1], [0, 0, 1, 1], [], []>} : vector<48x48xbf16>, vector<48x32xbf16>, vector<48x32xf32> -> vector<48x32xf32>
    %c0_3 = arith.constant 0 : index
    %c0_4 = arith.constant 0 : index
    %3 = vector.load %arg2[%c0_3, %c0_4] : memref<48x32xf32, #tpu.memory_space<vmem>>, vector<48x32xf32>
    %4 = arith.addf %2, %3 : vector<48x32xf32>
    %c0_5 = arith.constant 0 : index
    %c0_6 = arith.constant 0 : index
    %5 = vector.load %arg3[%c0_5, %c0_6] : memref<48x48xf32, #tpu.memory_space<vmem>>, vector<48x48xf32>
    %c0_7 = arith.constant 0 : index
    %c0_8 = arith.constant 0 : index
    %c0_9 = arith.constant 0 : index
    %6 = vector.load %arg6[%c0_7, %c0_8, %c0_9] : memref<2x1x32xf32, #tpu.memory_space<vmem>>, vector<1x1x32xf32>
    %7 = vector.shape_cast %6 : vector<1x1x32xf32> to vector<1x32xf32>
    %c0_10 = arith.constant 0 : index
    %c0_11 = arith.constant 0 : index
    %c0_12 = arith.constant 0 : index
    %8 = vector.load %arg7[%c0_10, %c0_11, %c0_12] : memref<2x1x32xf32, #tpu.memory_space<vmem>>, vector<1x1x32xf32>
    %9 = vector.shape_cast %8 : vector<1x1x32xf32> to vector<1x32xf32>
    %cst_13 = arith.constant dense<0.000000e+00> : vector<48xf32>
    %10 = vector.multi_reduction <add>, %4, %cst_13 [1] : vector<48x32xf32> to vector<48xf32>
    %11 = vector.shape_cast %10 : vector<48xf32> to vector<48x1xf32>
    %cst_14 = arith.constant 3.200000e+01 : f32
    %12 = vector.broadcast %cst_14 : f32 to vector<48x1xf32>
    %13 = arith.divf %11, %12 : vector<48x1xf32>
    %14 = vector.broadcast %13 : vector<48x1xf32> to vector<48x32xf32>
    %15 = arith.subf %4, %14 : vector<48x32xf32>
    %16 = arith.mulf %15, %15 : vector<48x32xf32>
    %cst_15 = arith.constant dense<0.000000e+00> : vector<48xf32>
    %17 = vector.multi_reduction <add>, %16, %cst_15 [1] : vector<48x32xf32> to vector<48xf32>
    %18 = vector.shape_cast %17 : vector<48xf32> to vector<48x1xf32>
    %cst_16 = arith.constant 3.200000e+01 : f32
    %19 = vector.broadcast %cst_16 : f32 to vector<48x1xf32>
    %20 = arith.divf %18, %19 : vector<48x1xf32>
    %21 = vector.broadcast %13 : vector<48x1xf32> to vector<48x32xf32>
    %22 = arith.subf %4, %21 : vector<48x32xf32>
    %cst_17 = arith.constant 9.99999997E-7 : f32
    %23 = vector.broadcast %cst_17 : f32 to vector<48x1xf32>
    %24 = arith.addf %20, %23 : vector<48x1xf32>
    %25 = math.rsqrt %24 : vector<48x1xf32>
    %26 = vector.broadcast %25 : vector<48x1xf32> to vector<48x32xf32>
    %27 = arith.mulf %22, %26 : vector<48x32xf32>
    %28 = vector.broadcast %7 : vector<1x32xf32> to vector<48x32xf32>
    %29 = arith.mulf %27, %28 : vector<48x32xf32>
    %30 = vector.broadcast %9 : vector<1x32xf32> to vector<48x32xf32>
    %31 = arith.addf %29, %30 : vector<48x32xf32>
    %32 = arith.truncf %31 : vector<48x32xf32> to vector<48x32xbf16>
    %c0_18 = arith.constant 0 : index
    %c0_19 = arith.constant 0 : index
    %c0_20 = arith.constant 0 : index
    %33 = vector.load %arg8[%c0_18, %c0_19, %c0_20] : memref<2x32x96xbf16, #tpu.memory_space<vmem>>, vector<1x32x96xbf16>
    %34 = vector.shape_cast %33 : vector<1x32x96xbf16> to vector<32x96xbf16>
    %cst_21 = arith.constant dense<0.000000e+00> : vector<48x96xf32>
    %35 = tpu.matmul %32, %34, %cst_21 {dimension_numbers = #tpu.dot_dimension_numbers<[1], [0], [0], [1], [0, 0, 1, 1], [], []>} : vector<48x32xbf16>, vector<32x96xbf16>, vector<48x96xf32> -> vector<48x96xf32>
    %c0_22 = arith.constant 0 : index
    %c0_23 = arith.constant 0 : index
    %c0_24 = arith.constant 0 : index
    %36 = vector.load %arg9[%c0_22, %c0_23, %c0_24] : memref<2x1x96xf32, #tpu.memory_space<vmem>>, vector<1x1x96xf32>
    %37 = vector.shape_cast %36 : vector<1x1x96xf32> to vector<1x96xf32>
    %38 = vector.broadcast %37 : vector<1x96xf32> to vector<48x96xf32>
    %39 = arith.addf %35, %38 : vector<48x96xf32>
    %c0_25 = arith.constant 0 : index
    %c0_26 = arith.constant 0 : index
    %c0_27 = arith.constant 0 : index
    %40 = vector.load %arg10[%c0_25, %c0_26, %c0_27] : memref<2x32x32xbf16, #tpu.memory_space<vmem>>, vector<1x32x32xbf16>
    %41 = vector.shape_cast %40 : vector<1x32x32xbf16> to vector<32x32xbf16>
    %cst_28 = arith.constant 0.000000e+00 : f32
    %42 = vector.broadcast %cst_28 : f32 to vector<48x32xf32>
    %43 = vector.extract_strided_slice %39 {offsets = [0, 0], sizes = [48, 16], strides = [1, 1]} : vector<48x96xf32> to vector<48x16xf32>
    %44 = arith.truncf %43 : vector<48x16xf32> to vector<48x16xbf16>
    %45 = vector.extract_strided_slice %39 {offsets = [0, 32], sizes = [48, 16], strides = [1, 1]} : vector<48x96xf32> to vector<48x16xf32>
    %46 = arith.truncf %45 : vector<48x16xf32> to vector<48x16xbf16>
    %47 = vector.extract_strided_slice %39 {offsets = [0, 64], sizes = [48, 16], strides = [1, 1]} : vector<48x96xf32> to vector<48x16xf32>
    %48 = arith.truncf %47 : vector<48x16xf32> to vector<48x16xbf16>
    %cst_29 = arith.constant dense<0.000000e+00> : vector<48x48xf32>
    %49 = tpu.matmul %44, %46, %cst_29 {dimension_numbers = #tpu.dot_dimension_numbers<[1], [1], [0], [0], [0, 0, 1, 0], [], []>} : vector<48x16xbf16>, vector<48x16xbf16>, vector<48x48xf32> -> vector<48x48xf32>
    %cst_30 = arith.constant 2.500000e-01 : f32
    %50 = vector.broadcast %cst_30 : f32 to vector<48x48xf32>
    %51 = arith.mulf %49, %50 : vector<48x48xf32>
    %52 = arith.addf %51, %5 : vector<48x48xf32>
    %cst_31 = arith.constant dense<0xFF800000> : vector<48xf32>
    %53 = vector.multi_reduction <maximumf>, %52, %cst_31 [1] : vector<48x48xf32> to vector<48xf32>
    %54 = vector.shape_cast %53 : vector<48xf32> to vector<48x1xf32>
    %55 = vector.broadcast %54 : vector<48x1xf32> to vector<48x48xf32>
    %56 = arith.subf %52, %55 : vector<48x48xf32>
    %57 = math.exp %56 : vector<48x48xf32>
    %cst_32 = arith.constant dense<0.000000e+00> : vector<48xf32>
    %58 = vector.multi_reduction <add>, %57, %cst_32 [1] : vector<48x48xf32> to vector<48xf32>
    %59 = vector.shape_cast %58 : vector<48xf32> to vector<48x1xf32>
    %60 = vector.broadcast %59 : vector<48x1xf32> to vector<48x48xf32>
    %61 = arith.divf %57, %60 : vector<48x48xf32>
    %62 = arith.truncf %61 : vector<48x48xf32> to vector<48x48xbf16>
    %cst_33 = arith.constant dense<0.000000e+00> : vector<48x16xf32>
    %63 = tpu.matmul %62, %48, %cst_33 {dimension_numbers = #tpu.dot_dimension_numbers<[1], [0], [0], [1], [0, 0, 1, 1], [], []>} : vector<48x48xbf16>, vector<48x16xbf16>, vector<48x16xf32> -> vector<48x16xf32>
    %64 = arith.truncf %63 : vector<48x16xf32> to vector<48x16xbf16>
    %65 = vector.extract_strided_slice %41 {offsets = [0, 0], sizes = [16, 32], strides = [1, 1]} : vector<32x32xbf16> to vector<16x32xbf16>
    %cst_34 = arith.constant dense<0.000000e+00> : vector<48x32xf32>
    %66 = tpu.matmul %64, %65, %cst_34 {dimension_numbers = #tpu.dot_dimension_numbers<[1], [0], [0], [1], [0, 0, 1, 1], [], []>} : vector<48x16xbf16>, vector<16x32xbf16>, vector<48x32xf32> -> vector<48x32xf32>
    %67 = arith.addf %42, %66 : vector<48x32xf32>
    %68 = vector.extract_strided_slice %39 {offsets = [0, 16], sizes = [48, 16], strides = [1, 1]} : vector<48x96xf32> to vector<48x16xf32>
    %69 = arith.truncf %68 : vector<48x16xf32> to vector<48x16xbf16>
    %70 = vector.extract_strided_slice %39 {offsets = [0, 48], sizes = [48, 16], strides = [1, 1]} : vector<48x96xf32> to vector<48x16xf32>
    %71 = arith.truncf %70 : vector<48x16xf32> to vector<48x16xbf16>
    %72 = vector.extract_strided_slice %39 {offsets = [0, 80], sizes = [48, 16], strides = [1, 1]} : vector<48x96xf32> to vector<48x16xf32>
    %73 = arith.truncf %72 : vector<48x16xf32> to vector<48x16xbf16>
    %cst_35 = arith.constant dense<0.000000e+00> : vector<48x48xf32>
    %74 = tpu.matmul %69, %71, %cst_35 {dimension_numbers = #tpu.dot_dimension_numbers<[1], [1], [0], [0], [0, 0, 1, 0], [], []>} : vector<48x16xbf16>, vector<48x16xbf16>, vector<48x48xf32> -> vector<48x48xf32>
    %cst_36 = arith.constant 2.500000e-01 : f32
    %75 = vector.broadcast %cst_36 : f32 to vector<48x48xf32>
    %76 = arith.mulf %74, %75 : vector<48x48xf32>
    %77 = arith.addf %76, %5 : vector<48x48xf32>
    %cst_37 = arith.constant dense<0xFF800000> : vector<48xf32>
    %78 = vector.multi_reduction <maximumf>, %77, %cst_37 [1] : vector<48x48xf32> to vector<48xf32>
    %79 = vector.shape_cast %78 : vector<48xf32> to vector<48x1xf32>
    %80 = vector.broadcast %79 : vector<48x1xf32> to vector<48x48xf32>
    %81 = arith.subf %77, %80 : vector<48x48xf32>
    %82 = math.exp %81 : vector<48x48xf32>
    %cst_38 = arith.constant dense<0.000000e+00> : vector<48xf32>
    %83 = vector.multi_reduction <add>, %82, %cst_38 [1] : vector<48x48xf32> to vector<48xf32>
    %84 = vector.shape_cast %83 : vector<48xf32> to vector<48x1xf32>
    %85 = vector.broadcast %84 : vector<48x1xf32> to vector<48x48xf32>
    %86 = arith.divf %82, %85 : vector<48x48xf32>
    %87 = arith.truncf %86 : vector<48x48xf32> to vector<48x48xbf16>
    %cst_39 = arith.constant dense<0.000000e+00> : vector<48x16xf32>
    %88 = tpu.matmul %87, %73, %cst_39 {dimension_numbers = #tpu.dot_dimension_numbers<[1], [0], [0], [1], [0, 0, 1, 1], [], []>} : vector<48x48xbf16>, vector<48x16xbf16>, vector<48x16xf32> -> vector<48x16xf32>
    %89 = arith.truncf %88 : vector<48x16xf32> to vector<48x16xbf16>
    %90 = vector.extract_strided_slice %41 {offsets = [16, 0], sizes = [16, 32], strides = [1, 1]} : vector<32x32xbf16> to vector<16x32xbf16>
    %cst_40 = arith.constant dense<0.000000e+00> : vector<48x32xf32>
    %91 = tpu.matmul %89, %90, %cst_40 {dimension_numbers = #tpu.dot_dimension_numbers<[1], [0], [0], [1], [0, 0, 1, 1], [], []>} : vector<48x16xbf16>, vector<16x32xbf16>, vector<48x32xf32> -> vector<48x32xf32>
    %92 = arith.addf %67, %91 : vector<48x32xf32>
    %c0_41 = arith.constant 0 : index
    %c0_42 = arith.constant 0 : index
    %c0_43 = arith.constant 0 : index
    %93 = vector.load %arg12[%c0_41, %c0_42, %c0_43] : memref<2x1x32xf32, #tpu.memory_space<vmem>>, vector<1x1x32xf32>
    %94 = vector.shape_cast %93 : vector<1x1x32xf32> to vector<1x32xf32>
    %c0_44 = arith.constant 0 : index
    %c0_45 = arith.constant 0 : index
    %c0_46 = arith.constant 0 : index
    %95 = vector.load %arg11[%c0_44, %c0_45, %c0_46] : memref<2x1x32xf32, #tpu.memory_space<vmem>>, vector<1x1x32xf32>
    %96 = vector.shape_cast %95 : vector<1x1x32xf32> to vector<1x32xf32>
    %97 = vector.broadcast %96 : vector<1x32xf32> to vector<48x32xf32>
    %98 = arith.addf %92, %97 : vector<48x32xf32>
    %99 = vector.broadcast %94 : vector<1x32xf32> to vector<48x32xf32>
    %100 = arith.mulf %99, %98 : vector<48x32xf32>
    %101 = arith.addf %4, %100 : vector<48x32xf32>
    %c0_47 = arith.constant 0 : index
    %c0_48 = arith.constant 0 : index
    %c0_49 = arith.constant 0 : index
    %102 = vector.load %arg13[%c0_47, %c0_48, %c0_49] : memref<2x1x32xf32, #tpu.memory_space<vmem>>, vector<1x1x32xf32>
    %103 = vector.shape_cast %102 : vector<1x1x32xf32> to vector<1x32xf32>
    %c0_50 = arith.constant 0 : index
    %c0_51 = arith.constant 0 : index
    %c0_52 = arith.constant 0 : index
    %104 = vector.load %arg14[%c0_50, %c0_51, %c0_52] : memref<2x1x32xf32, #tpu.memory_space<vmem>>, vector<1x1x32xf32>
    %105 = vector.shape_cast %104 : vector<1x1x32xf32> to vector<1x32xf32>
    %cst_53 = arith.constant dense<0.000000e+00> : vector<48xf32>
    %106 = vector.multi_reduction <add>, %101, %cst_53 [1] : vector<48x32xf32> to vector<48xf32>
    %107 = vector.shape_cast %106 : vector<48xf32> to vector<48x1xf32>
    %cst_54 = arith.constant 3.200000e+01 : f32
    %108 = vector.broadcast %cst_54 : f32 to vector<48x1xf32>
    %109 = arith.divf %107, %108 : vector<48x1xf32>
    %110 = vector.broadcast %109 : vector<48x1xf32> to vector<48x32xf32>
    %111 = arith.subf %101, %110 : vector<48x32xf32>
    %112 = arith.mulf %111, %111 : vector<48x32xf32>
    %cst_55 = arith.constant dense<0.000000e+00> : vector<48xf32>
    %113 = vector.multi_reduction <add>, %112, %cst_55 [1] : vector<48x32xf32> to vector<48xf32>
    %114 = vector.shape_cast %113 : vector<48xf32> to vector<48x1xf32>
    %cst_56 = arith.constant 3.200000e+01 : f32
    %115 = vector.broadcast %cst_56 : f32 to vector<48x1xf32>
    %116 = arith.divf %114, %115 : vector<48x1xf32>
    %117 = vector.broadcast %109 : vector<48x1xf32> to vector<48x32xf32>
    %118 = arith.subf %101, %117 : vector<48x32xf32>
    %cst_57 = arith.constant 9.99999997E-7 : f32
    %119 = vector.broadcast %cst_57 : f32 to vector<48x1xf32>
    %120 = arith.addf %116, %119 : vector<48x1xf32>
    %121 = math.rsqrt %120 : vector<48x1xf32>
    %122 = vector.broadcast %121 : vector<48x1xf32> to vector<48x32xf32>
    %123 = arith.mulf %118, %122 : vector<48x32xf32>
    %124 = vector.broadcast %103 : vector<1x32xf32> to vector<48x32xf32>
    %125 = arith.mulf %123, %124 : vector<48x32xf32>
    %126 = vector.broadcast %105 : vector<1x32xf32> to vector<48x32xf32>
    %127 = arith.addf %125, %126 : vector<48x32xf32>
    %128 = arith.truncf %127 : vector<48x32xf32> to vector<48x32xbf16>
    %c0_58 = arith.constant 0 : index
    %c0_59 = arith.constant 0 : index
    %c0_60 = arith.constant 0 : index
    %129 = vector.load %arg15[%c0_58, %c0_59, %c0_60] : memref<2x32x128xbf16, #tpu.memory_space<vmem>>, vector<1x32x128xbf16>
    %130 = vector.shape_cast %129 : vector<1x32x128xbf16> to vector<32x128xbf16>
    %cst_61 = arith.constant dense<0.000000e+00> : vector<48x128xf32>
    %131 = tpu.matmul %128, %130, %cst_61 {dimension_numbers = #tpu.dot_dimension_numbers<[1], [0], [0], [1], [0, 0, 1, 1], [], []>} : vector<48x32xbf16>, vector<32x128xbf16>, vector<48x128xf32> -> vector<48x128xf32>
    %c0_62 = arith.constant 0 : index
    %c0_63 = arith.constant 0 : index
    %c0_64 = arith.constant 0 : index
    %132 = vector.load %arg16[%c0_62, %c0_63, %c0_64] : memref<2x1x128xf32, #tpu.memory_space<vmem>>, vector<1x1x128xf32>
    %133 = vector.shape_cast %132 : vector<1x1x128xf32> to vector<1x128xf32>
    %134 = vector.broadcast %133 : vector<1x128xf32> to vector<48x128xf32>
    %135 = arith.addf %131, %134 : vector<48x128xf32>
    %cst_65 = arith.constant 5.000000e-01 : f32
    %136 = vector.broadcast %cst_65 : f32 to vector<48x128xf32>
    %137 = arith.mulf %136, %135 : vector<48x128xf32>
    %cst_66 = arith.constant 0.707106769 : f32
    %138 = vector.broadcast %cst_66 : f32 to vector<48x128xf32>
    %139 = arith.mulf %135, %138 : vector<48x128xf32>
    %cst_67 = arith.constant 0.000000e+00 : f32
    %140 = vector.broadcast %cst_67 : f32 to vector<48x128xf32>
    %141 = arith.cmpf oge, %139, %140 : vector<48x128xf32>
    %cst_68 = arith.constant 1.000000e+00 : f32
    %cst_69 = arith.constant -1.000000e+00 : f32
    %142 = vector.broadcast %cst_68 : f32 to vector<48x128xf32>
    %143 = vector.broadcast %cst_69 : f32 to vector<48x128xf32>
    %144 = arith.select %141, %142, %143 : vector<48x128xi1>, vector<48x128xf32>
    %145 = math.absf %139 : vector<48x128xf32>
    %cst_70 = arith.constant 0.327591091 : f32
    %146 = vector.broadcast %cst_70 : f32 to vector<48x128xf32>
    %147 = arith.mulf %146, %145 : vector<48x128xf32>
    %cst_71 = arith.constant 1.000000e+00 : f32
    %148 = vector.broadcast %cst_71 : f32 to vector<48x128xf32>
    %149 = arith.addf %148, %147 : vector<48x128xf32>
    %cst_72 = arith.constant 1.000000e+00 : f32
    %150 = vector.broadcast %cst_72 : f32 to vector<48x128xf32>
    %151 = arith.divf %150, %149 : vector<48x128xf32>
    %cst_73 = arith.constant 1.06140542 : f32
    %152 = vector.broadcast %cst_73 : f32 to vector<48x128xf32>
    %153 = arith.mulf %151, %152 : vector<48x128xf32>
    %cst_74 = arith.constant -1.45315206 : f32
    %154 = vector.broadcast %cst_74 : f32 to vector<48x128xf32>
    %155 = arith.addf %154, %153 : vector<48x128xf32>
    %156 = arith.mulf %151, %155 : vector<48x128xf32>
    %cst_75 = arith.constant 1.42141378 : f32
    %157 = vector.broadcast %cst_75 : f32 to vector<48x128xf32>
    %158 = arith.addf %157, %156 : vector<48x128xf32>
    %159 = arith.mulf %151, %158 : vector<48x128xf32>
    %cst_76 = arith.constant -0.284496725 : f32
    %160 = vector.broadcast %cst_76 : f32 to vector<48x128xf32>
    %161 = arith.addf %160, %159 : vector<48x128xf32>
    %162 = arith.mulf %151, %161 : vector<48x128xf32>
    %cst_77 = arith.constant 0.254829586 : f32
    %163 = vector.broadcast %cst_77 : f32 to vector<48x128xf32>
    %164 = arith.addf %163, %162 : vector<48x128xf32>
    %165 = arith.mulf %151, %164 : vector<48x128xf32>
    %cst_78 = arith.constant 0.000000e+00 : f32
    %166 = vector.broadcast %cst_78 : f32 to vector<48x128xf32>
    %167 = arith.subf %166, %145 : vector<48x128xf32>
    %168 = arith.mulf %167, %145 : vector<48x128xf32>
    %169 = math.exp %168 : vector<48x128xf32>
    %170 = arith.mulf %165, %169 : vector<48x128xf32>
    %cst_79 = arith.constant 1.000000e+00 : f32
    %171 = vector.broadcast %cst_79 : f32 to vector<48x128xf32>
    %172 = arith.subf %171, %170 : vector<48x128xf32>
    %173 = arith.mulf %144, %172 : vector<48x128xf32>
    %cst_80 = arith.constant 1.000000e+00 : f32
    %174 = vector.broadcast %cst_80 : f32 to vector<48x128xf32>
    %175 = arith.addf %174, %173 : vector<48x128xf32>
    %176 = arith.mulf %137, %175 : vector<48x128xf32>
    %177 = arith.truncf %176 : vector<48x128xf32> to vector<48x128xbf16>
    %c0_81 = arith.constant 0 : index
    %c0_82 = arith.constant 0 : index
    %c0_83 = arith.constant 0 : index
    %178 = vector.load %arg17[%c0_81, %c0_82, %c0_83] : memref<2x128x32xbf16, #tpu.memory_space<vmem>>, vector<1x128x32xbf16>
    %179 = vector.shape_cast %178 : vector<1x128x32xbf16> to vector<128x32xbf16>
    %cst_84 = arith.constant dense<0.000000e+00> : vector<48x32xf32>
    %180 = tpu.matmul %177, %179, %cst_84 {dimension_numbers = #tpu.dot_dimension_numbers<[1], [0], [0], [1], [0, 0, 1, 1], [], []>} : vector<48x128xbf16>, vector<128x32xbf16>, vector<48x32xf32> -> vector<48x32xf32>
    %c0_85 = arith.constant 0 : index
    %c0_86 = arith.constant 0 : index
    %c0_87 = arith.constant 0 : index
    %181 = vector.load %arg18[%c0_85, %c0_86, %c0_87] : memref<2x1x32xf32, #tpu.memory_space<vmem>>, vector<1x1x32xf32>
    %182 = vector.shape_cast %181 : vector<1x1x32xf32> to vector<1x32xf32>
    %183 = vector.broadcast %182 : vector<1x32xf32> to vector<48x32xf32>
    %184 = arith.addf %180, %183 : vector<48x32xf32>
    %c0_88 = arith.constant 0 : index
    %c0_89 = arith.constant 0 : index
    %c0_90 = arith.constant 0 : index
    %185 = vector.load %arg19[%c0_88, %c0_89, %c0_90] : memref<2x1x32xf32, #tpu.memory_space<vmem>>, vector<1x1x32xf32>
    %186 = vector.shape_cast %185 : vector<1x1x32xf32> to vector<1x32xf32>
    %187 = vector.broadcast %186 : vector<1x32xf32> to vector<48x32xf32>
    %188 = arith.mulf %187, %184 : vector<48x32xf32>
    %189 = arith.addf %101, %188 : vector<48x32xf32>
    %c1 = arith.constant 1 : index
    %c0_91 = arith.constant 0 : index
    %c0_92 = arith.constant 0 : index
    %190 = vector.load %arg6[%c1, %c0_91, %c0_92] : memref<2x1x32xf32, #tpu.memory_space<vmem>>, vector<1x1x32xf32>
    %191 = vector.shape_cast %190 : vector<1x1x32xf32> to vector<1x32xf32>
    %c1_93 = arith.constant 1 : index
    %c0_94 = arith.constant 0 : index
    %c0_95 = arith.constant 0 : index
    %192 = vector.load %arg7[%c1_93, %c0_94, %c0_95] : memref<2x1x32xf32, #tpu.memory_space<vmem>>, vector<1x1x32xf32>
    %193 = vector.shape_cast %192 : vector<1x1x32xf32> to vector<1x32xf32>
    %cst_96 = arith.constant dense<0.000000e+00> : vector<48xf32>
    %194 = vector.multi_reduction <add>, %189, %cst_96 [1] : vector<48x32xf32> to vector<48xf32>
    %195 = vector.shape_cast %194 : vector<48xf32> to vector<48x1xf32>
    %cst_97 = arith.constant 3.200000e+01 : f32
    %196 = vector.broadcast %cst_97 : f32 to vector<48x1xf32>
    %197 = arith.divf %195, %196 : vector<48x1xf32>
    %198 = vector.broadcast %197 : vector<48x1xf32> to vector<48x32xf32>
    %199 = arith.subf %189, %198 : vector<48x32xf32>
    %200 = arith.mulf %199, %199 : vector<48x32xf32>
    %cst_98 = arith.constant dense<0.000000e+00> : vector<48xf32>
    %201 = vector.multi_reduction <add>, %200, %cst_98 [1] : vector<48x32xf32> to vector<48xf32>
    %202 = vector.shape_cast %201 : vector<48xf32> to vector<48x1xf32>
    %cst_99 = arith.constant 3.200000e+01 : f32
    %203 = vector.broadcast %cst_99 : f32 to vector<48x1xf32>
    %204 = arith.divf %202, %203 : vector<48x1xf32>
    %205 = vector.broadcast %197 : vector<48x1xf32> to vector<48x32xf32>
    %206 = arith.subf %189, %205 : vector<48x32xf32>
    %cst_100 = arith.constant 9.99999997E-7 : f32
    %207 = vector.broadcast %cst_100 : f32 to vector<48x1xf32>
    %208 = arith.addf %204, %207 : vector<48x1xf32>
    %209 = math.rsqrt %208 : vector<48x1xf32>
    %210 = vector.broadcast %209 : vector<48x1xf32> to vector<48x32xf32>
    %211 = arith.mulf %206, %210 : vector<48x32xf32>
    %212 = vector.broadcast %191 : vector<1x32xf32> to vector<48x32xf32>
    %213 = arith.mulf %211, %212 : vector<48x32xf32>
    %214 = vector.broadcast %193 : vector<1x32xf32> to vector<48x32xf32>
    %215 = arith.addf %213, %214 : vector<48x32xf32>
    %216 = arith.truncf %215 : vector<48x32xf32> to vector<48x32xbf16>
    %c1_101 = arith.constant 1 : index
    %c0_102 = arith.constant 0 : index
    %c0_103 = arith.constant 0 : index
    %217 = vector.load %arg8[%c1_101, %c0_102, %c0_103] : memref<2x32x96xbf16, #tpu.memory_space<vmem>>, vector<1x32x96xbf16>
    %218 = vector.shape_cast %217 : vector<1x32x96xbf16> to vector<32x96xbf16>
    %cst_104 = arith.constant dense<0.000000e+00> : vector<48x96xf32>
    %219 = tpu.matmul %216, %218, %cst_104 {dimension_numbers = #tpu.dot_dimension_numbers<[1], [0], [0], [1], [0, 0, 1, 1], [], []>} : vector<48x32xbf16>, vector<32x96xbf16>, vector<48x96xf32> -> vector<48x96xf32>
    %c1_105 = arith.constant 1 : index
    %c0_106 = arith.constant 0 : index
    %c0_107 = arith.constant 0 : index
    %220 = vector.load %arg9[%c1_105, %c0_106, %c0_107] : memref<2x1x96xf32, #tpu.memory_space<vmem>>, vector<1x1x96xf32>
    %221 = vector.shape_cast %220 : vector<1x1x96xf32> to vector<1x96xf32>
    %222 = vector.broadcast %221 : vector<1x96xf32> to vector<48x96xf32>
    %223 = arith.addf %219, %222 : vector<48x96xf32>
    %c1_108 = arith.constant 1 : index
    %c0_109 = arith.constant 0 : index
    %c0_110 = arith.constant 0 : index
    %224 = vector.load %arg10[%c1_108, %c0_109, %c0_110] : memref<2x32x32xbf16, #tpu.memory_space<vmem>>, vector<1x32x32xbf16>
    %225 = vector.shape_cast %224 : vector<1x32x32xbf16> to vector<32x32xbf16>
    %cst_111 = arith.constant 0.000000e+00 : f32
    %226 = vector.broadcast %cst_111 : f32 to vector<48x32xf32>
    %227 = vector.extract_strided_slice %223 {offsets = [0, 0], sizes = [48, 16], strides = [1, 1]} : vector<48x96xf32> to vector<48x16xf32>
    %228 = arith.truncf %227 : vector<48x16xf32> to vector<48x16xbf16>
    %229 = vector.extract_strided_slice %223 {offsets = [0, 32], sizes = [48, 16], strides = [1, 1]} : vector<48x96xf32> to vector<48x16xf32>
    %230 = arith.truncf %229 : vector<48x16xf32> to vector<48x16xbf16>
    %231 = vector.extract_strided_slice %223 {offsets = [0, 64], sizes = [48, 16], strides = [1, 1]} : vector<48x96xf32> to vector<48x16xf32>
    %232 = arith.truncf %231 : vector<48x16xf32> to vector<48x16xbf16>
    %cst_112 = arith.constant dense<0.000000e+00> : vector<48x48xf32>
    %233 = tpu.matmul %228, %230, %cst_112 {dimension_numbers = #tpu.dot_dimension_numbers<[1], [1], [0], [0], [0, 0, 1, 0], [], []>} : vector<48x16xbf16>, vector<48x16xbf16>, vector<48x48xf32> -> vector<48x48xf32>
    %cst_113 = arith.constant 2.500000e-01 : f32
    %234 = vector.broadcast %cst_113 : f32 to vector<48x48xf32>
    %235 = arith.mulf %233, %234 : vector<48x48xf32>
    %236 = arith.addf %235, %5 : vector<48x48xf32>
    %cst_114 = arith.constant dense<0xFF800000> : vector<48xf32>
    %237 = vector.multi_reduction <maximumf>, %236, %cst_114 [1] : vector<48x48xf32> to vector<48xf32>
    %238 = vector.shape_cast %237 : vector<48xf32> to vector<48x1xf32>
    %239 = vector.broadcast %238 : vector<48x1xf32> to vector<48x48xf32>
    %240 = arith.subf %236, %239 : vector<48x48xf32>
    %241 = math.exp %240 : vector<48x48xf32>
    %cst_115 = arith.constant dense<0.000000e+00> : vector<48xf32>
    %242 = vector.multi_reduction <add>, %241, %cst_115 [1] : vector<48x48xf32> to vector<48xf32>
    %243 = vector.shape_cast %242 : vector<48xf32> to vector<48x1xf32>
    %244 = vector.broadcast %243 : vector<48x1xf32> to vector<48x48xf32>
    %245 = arith.divf %241, %244 : vector<48x48xf32>
    %246 = arith.truncf %245 : vector<48x48xf32> to vector<48x48xbf16>
    %cst_116 = arith.constant dense<0.000000e+00> : vector<48x16xf32>
    %247 = tpu.matmul %246, %232, %cst_116 {dimension_numbers = #tpu.dot_dimension_numbers<[1], [0], [0], [1], [0, 0, 1, 1], [], []>} : vector<48x48xbf16>, vector<48x16xbf16>, vector<48x16xf32> -> vector<48x16xf32>
    %248 = arith.truncf %247 : vector<48x16xf32> to vector<48x16xbf16>
    %249 = vector.extract_strided_slice %225 {offsets = [0, 0], sizes = [16, 32], strides = [1, 1]} : vector<32x32xbf16> to vector<16x32xbf16>
    %cst_117 = arith.constant dense<0.000000e+00> : vector<48x32xf32>
    %250 = tpu.matmul %248, %249, %cst_117 {dimension_numbers = #tpu.dot_dimension_numbers<[1], [0], [0], [1], [0, 0, 1, 1], [], []>} : vector<48x16xbf16>, vector<16x32xbf16>, vector<48x32xf32> -> vector<48x32xf32>
    %251 = arith.addf %226, %250 : vector<48x32xf32>
    %252 = vector.extract_strided_slice %223 {offsets = [0, 16], sizes = [48, 16], strides = [1, 1]} : vector<48x96xf32> to vector<48x16xf32>
    %253 = arith.truncf %252 : vector<48x16xf32> to vector<48x16xbf16>
    %254 = vector.extract_strided_slice %223 {offsets = [0, 48], sizes = [48, 16], strides = [1, 1]} : vector<48x96xf32> to vector<48x16xf32>
    %255 = arith.truncf %254 : vector<48x16xf32> to vector<48x16xbf16>
    %256 = vector.extract_strided_slice %223 {offsets = [0, 80], sizes = [48, 16], strides = [1, 1]} : vector<48x96xf32> to vector<48x16xf32>
    %257 = arith.truncf %256 : vector<48x16xf32> to vector<48x16xbf16>
    %cst_118 = arith.constant dense<0.000000e+00> : vector<48x48xf32>
    %258 = tpu.matmul %253, %255, %cst_118 {dimension_numbers = #tpu.dot_dimension_numbers<[1], [1], [0], [0], [0, 0, 1, 0], [], []>} : vector<48x16xbf16>, vector<48x16xbf16>, vector<48x48xf32> -> vector<48x48xf32>
    %cst_119 = arith.constant 2.500000e-01 : f32
    %259 = vector.broadcast %cst_119 : f32 to vector<48x48xf32>
    %260 = arith.mulf %258, %259 : vector<48x48xf32>
    %261 = arith.addf %260, %5 : vector<48x48xf32>
    %cst_120 = arith.constant dense<0xFF800000> : vector<48xf32>
    %262 = vector.multi_reduction <maximumf>, %261, %cst_120 [1] : vector<48x48xf32> to vector<48xf32>
    %263 = vector.shape_cast %262 : vector<48xf32> to vector<48x1xf32>
    %264 = vector.broadcast %263 : vector<48x1xf32> to vector<48x48xf32>
    %265 = arith.subf %261, %264 : vector<48x48xf32>
    %266 = math.exp %265 : vector<48x48xf32>
    %cst_121 = arith.constant dense<0.000000e+00> : vector<48xf32>
    %267 = vector.multi_reduction <add>, %266, %cst_121 [1] : vector<48x48xf32> to vector<48xf32>
    %268 = vector.shape_cast %267 : vector<48xf32> to vector<48x1xf32>
    %269 = vector.broadcast %268 : vector<48x1xf32> to vector<48x48xf32>
    %270 = arith.divf %266, %269 : vector<48x48xf32>
    %271 = arith.truncf %270 : vector<48x48xf32> to vector<48x48xbf16>
    %cst_122 = arith.constant dense<0.000000e+00> : vector<48x16xf32>
    %272 = tpu.matmul %271, %257, %cst_122 {dimension_numbers = #tpu.dot_dimension_numbers<[1], [0], [0], [1], [0, 0, 1, 1], [], []>} : vector<48x48xbf16>, vector<48x16xbf16>, vector<48x16xf32> -> vector<48x16xf32>
    %273 = arith.truncf %272 : vector<48x16xf32> to vector<48x16xbf16>
    %274 = vector.extract_strided_slice %225 {offsets = [16, 0], sizes = [16, 32], strides = [1, 1]} : vector<32x32xbf16> to vector<16x32xbf16>
    %cst_123 = arith.constant dense<0.000000e+00> : vector<48x32xf32>
    %275 = tpu.matmul %273, %274, %cst_123 {dimension_numbers = #tpu.dot_dimension_numbers<[1], [0], [0], [1], [0, 0, 1, 1], [], []>} : vector<48x16xbf16>, vector<16x32xbf16>, vector<48x32xf32> -> vector<48x32xf32>
    %276 = arith.addf %251, %275 : vector<48x32xf32>
    %c1_124 = arith.constant 1 : index
    %c0_125 = arith.constant 0 : index
    %c0_126 = arith.constant 0 : index
    %277 = vector.load %arg12[%c1_124, %c0_125, %c0_126] : memref<2x1x32xf32, #tpu.memory_space<vmem>>, vector<1x1x32xf32>
    %278 = vector.shape_cast %277 : vector<1x1x32xf32> to vector<1x32xf32>
    %c1_127 = arith.constant 1 : index
    %c0_128 = arith.constant 0 : index
    %c0_129 = arith.constant 0 : index
    %279 = vector.load %arg11[%c1_127, %c0_128, %c0_129] : memref<2x1x32xf32, #tpu.memory_space<vmem>>, vector<1x1x32xf32>
    %280 = vector.shape_cast %279 : vector<1x1x32xf32> to vector<1x32xf32>
    %281 = vector.broadcast %280 : vector<1x32xf32> to vector<48x32xf32>
    %282 = arith.addf %276, %281 : vector<48x32xf32>
    %283 = vector.broadcast %278 : vector<1x32xf32> to vector<48x32xf32>
    %284 = arith.mulf %283, %282 : vector<48x32xf32>
    %285 = arith.addf %189, %284 : vector<48x32xf32>
    %c1_130 = arith.constant 1 : index
    %c0_131 = arith.constant 0 : index
    %c0_132 = arith.constant 0 : index
    %286 = vector.load %arg13[%c1_130, %c0_131, %c0_132] : memref<2x1x32xf32, #tpu.memory_space<vmem>>, vector<1x1x32xf32>
    %287 = vector.shape_cast %286 : vector<1x1x32xf32> to vector<1x32xf32>
    %c1_133 = arith.constant 1 : index
    %c0_134 = arith.constant 0 : index
    %c0_135 = arith.constant 0 : index
    %288 = vector.load %arg14[%c1_133, %c0_134, %c0_135] : memref<2x1x32xf32, #tpu.memory_space<vmem>>, vector<1x1x32xf32>
    %289 = vector.shape_cast %288 : vector<1x1x32xf32> to vector<1x32xf32>
    %cst_136 = arith.constant dense<0.000000e+00> : vector<48xf32>
    %290 = vector.multi_reduction <add>, %285, %cst_136 [1] : vector<48x32xf32> to vector<48xf32>
    %291 = vector.shape_cast %290 : vector<48xf32> to vector<48x1xf32>
    %cst_137 = arith.constant 3.200000e+01 : f32
    %292 = vector.broadcast %cst_137 : f32 to vector<48x1xf32>
    %293 = arith.divf %291, %292 : vector<48x1xf32>
    %294 = vector.broadcast %293 : vector<48x1xf32> to vector<48x32xf32>
    %295 = arith.subf %285, %294 : vector<48x32xf32>
    %296 = arith.mulf %295, %295 : vector<48x32xf32>
    %cst_138 = arith.constant dense<0.000000e+00> : vector<48xf32>
    %297 = vector.multi_reduction <add>, %296, %cst_138 [1] : vector<48x32xf32> to vector<48xf32>
    %298 = vector.shape_cast %297 : vector<48xf32> to vector<48x1xf32>
    %cst_139 = arith.constant 3.200000e+01 : f32
    %299 = vector.broadcast %cst_139 : f32 to vector<48x1xf32>
    %300 = arith.divf %298, %299 : vector<48x1xf32>
    %301 = vector.broadcast %293 : vector<48x1xf32> to vector<48x32xf32>
    %302 = arith.subf %285, %301 : vector<48x32xf32>
    %cst_140 = arith.constant 9.99999997E-7 : f32
    %303 = vector.broadcast %cst_140 : f32 to vector<48x1xf32>
    %304 = arith.addf %300, %303 : vector<48x1xf32>
    %305 = math.rsqrt %304 : vector<48x1xf32>
    %306 = vector.broadcast %305 : vector<48x1xf32> to vector<48x32xf32>
    %307 = arith.mulf %302, %306 : vector<48x32xf32>
    %308 = vector.broadcast %287 : vector<1x32xf32> to vector<48x32xf32>
    %309 = arith.mulf %307, %308 : vector<48x32xf32>
    %310 = vector.broadcast %289 : vector<1x32xf32> to vector<48x32xf32>
    %311 = arith.addf %309, %310 : vector<48x32xf32>
    %312 = arith.truncf %311 : vector<48x32xf32> to vector<48x32xbf16>
    %c1_141 = arith.constant 1 : index
    %c0_142 = arith.constant 0 : index
    %c0_143 = arith.constant 0 : index
    %313 = vector.load %arg15[%c1_141, %c0_142, %c0_143] : memref<2x32x128xbf16, #tpu.memory_space<vmem>>, vector<1x32x128xbf16>
    %314 = vector.shape_cast %313 : vector<1x32x128xbf16> to vector<32x128xbf16>
    %cst_144 = arith.constant dense<0.000000e+00> : vector<48x128xf32>
    %315 = tpu.matmul %312, %314, %cst_144 {dimension_numbers = #tpu.dot_dimension_numbers<[1], [0], [0], [1], [0, 0, 1, 1], [], []>} : vector<48x32xbf16>, vector<32x128xbf16>, vector<48x128xf32> -> vector<48x128xf32>
    %c1_145 = arith.constant 1 : index
    %c0_146 = arith.constant 0 : index
    %c0_147 = arith.constant 0 : index
    %316 = vector.load %arg16[%c1_145, %c0_146, %c0_147] : memref<2x1x128xf32, #tpu.memory_space<vmem>>, vector<1x1x128xf32>
    %317 = vector.shape_cast %316 : vector<1x1x128xf32> to vector<1x128xf32>
    %318 = vector.broadcast %317 : vector<1x128xf32> to vector<48x128xf32>
    %319 = arith.addf %315, %318 : vector<48x128xf32>
    %cst_148 = arith.constant 5.000000e-01 : f32
    %320 = vector.broadcast %cst_148 : f32 to vector<48x128xf32>
    %321 = arith.mulf %320, %319 : vector<48x128xf32>
    %cst_149 = arith.constant 0.707106769 : f32
    %322 = vector.broadcast %cst_149 : f32 to vector<48x128xf32>
    %323 = arith.mulf %319, %322 : vector<48x128xf32>
    %cst_150 = arith.constant 0.000000e+00 : f32
    %324 = vector.broadcast %cst_150 : f32 to vector<48x128xf32>
    %325 = arith.cmpf oge, %323, %324 : vector<48x128xf32>
    %cst_151 = arith.constant 1.000000e+00 : f32
    %cst_152 = arith.constant -1.000000e+00 : f32
    %326 = vector.broadcast %cst_151 : f32 to vector<48x128xf32>
    %327 = vector.broadcast %cst_152 : f32 to vector<48x128xf32>
    %328 = arith.select %325, %326, %327 : vector<48x128xi1>, vector<48x128xf32>
    %329 = math.absf %323 : vector<48x128xf32>
    %cst_153 = arith.constant 0.327591091 : f32
    %330 = vector.broadcast %cst_153 : f32 to vector<48x128xf32>
    %331 = arith.mulf %330, %329 : vector<48x128xf32>
    %cst_154 = arith.constant 1.000000e+00 : f32
    %332 = vector.broadcast %cst_154 : f32 to vector<48x128xf32>
    %333 = arith.addf %332, %331 : vector<48x128xf32>
    %cst_155 = arith.constant 1.000000e+00 : f32
    %334 = vector.broadcast %cst_155 : f32 to vector<48x128xf32>
    %335 = arith.divf %334, %333 : vector<48x128xf32>
    %cst_156 = arith.constant 1.06140542 : f32
    %336 = vector.broadcast %cst_156 : f32 to vector<48x128xf32>
    %337 = arith.mulf %335, %336 : vector<48x128xf32>
    %cst_157 = arith.constant -1.45315206 : f32
    %338 = vector.broadcast %cst_157 : f32 to vector<48x128xf32>
    %339 = arith.addf %338, %337 : vector<48x128xf32>
    %340 = arith.mulf %335, %339 : vector<48x128xf32>
    %cst_158 = arith.constant 1.42141378 : f32
    %341 = vector.broadcast %cst_158 : f32 to vector<48x128xf32>
    %342 = arith.addf %341, %340 : vector<48x128xf32>
    %343 = arith.mulf %335, %342 : vector<48x128xf32>
    %cst_159 = arith.constant -0.284496725 : f32
    %344 = vector.broadcast %cst_159 : f32 to vector<48x128xf32>
    %345 = arith.addf %344, %343 : vector<48x128xf32>
    %346 = arith.mulf %335, %345 : vector<48x128xf32>
    %cst_160 = arith.constant 0.254829586 : f32
    %347 = vector.broadcast %cst_160 : f32 to vector<48x128xf32>
    %348 = arith.addf %347, %346 : vector<48x128xf32>
    %349 = arith.mulf %335, %348 : vector<48x128xf32>
    %cst_161 = arith.constant 0.000000e+00 : f32
    %350 = vector.broadcast %cst_161 : f32 to vector<48x128xf32>
    %351 = arith.subf %350, %329 : vector<48x128xf32>
    %352 = arith.mulf %351, %329 : vector<48x128xf32>
    %353 = math.exp %352 : vector<48x128xf32>
    %354 = arith.mulf %349, %353 : vector<48x128xf32>
    %cst_162 = arith.constant 1.000000e+00 : f32
    %355 = vector.broadcast %cst_162 : f32 to vector<48x128xf32>
    %356 = arith.subf %355, %354 : vector<48x128xf32>
    %357 = arith.mulf %328, %356 : vector<48x128xf32>
    %cst_163 = arith.constant 1.000000e+00 : f32
    %358 = vector.broadcast %cst_163 : f32 to vector<48x128xf32>
    %359 = arith.addf %358, %357 : vector<48x128xf32>
    %360 = arith.mulf %321, %359 : vector<48x128xf32>
    %361 = arith.truncf %360 : vector<48x128xf32> to vector<48x128xbf16>
    %c1_164 = arith.constant 1 : index
    %c0_165 = arith.constant 0 : index
    %c0_166 = arith.constant 0 : index
    %362 = vector.load %arg17[%c1_164, %c0_165, %c0_166] : memref<2x128x32xbf16, #tpu.memory_space<vmem>>, vector<1x128x32xbf16>
    %363 = vector.shape_cast %362 : vector<1x128x32xbf16> to vector<128x32xbf16>
    %cst_167 = arith.constant dense<0.000000e+00> : vector<48x32xf32>
    %364 = tpu.matmul %361, %363, %cst_167 {dimension_numbers = #tpu.dot_dimension_numbers<[1], [0], [0], [1], [0, 0, 1, 1], [], []>} : vector<48x128xbf16>, vector<128x32xbf16>, vector<48x32xf32> -> vector<48x32xf32>
    %c1_168 = arith.constant 1 : index
    %c0_169 = arith.constant 0 : index
    %c0_170 = arith.constant 0 : index
    %365 = vector.load %arg18[%c1_168, %c0_169, %c0_170] : memref<2x1x32xf32, #tpu.memory_space<vmem>>, vector<1x1x32xf32>
    %366 = vector.shape_cast %365 : vector<1x1x32xf32> to vector<1x32xf32>
    %367 = vector.broadcast %366 : vector<1x32xf32> to vector<48x32xf32>
    %368 = arith.addf %364, %367 : vector<48x32xf32>
    %c1_171 = arith.constant 1 : index
    %c0_172 = arith.constant 0 : index
    %c0_173 = arith.constant 0 : index
    %369 = vector.load %arg19[%c1_171, %c0_172, %c0_173] : memref<2x1x32xf32, #tpu.memory_space<vmem>>, vector<1x1x32xf32>
    %370 = vector.shape_cast %369 : vector<1x1x32xf32> to vector<1x32xf32>
    %371 = vector.broadcast %370 : vector<1x32xf32> to vector<48x32xf32>
    %372 = arith.mulf %371, %368 : vector<48x32xf32>
    %373 = arith.addf %285, %372 : vector<48x32xf32>
    %c0_174 = arith.constant 0 : index
    %c0_175 = arith.constant 0 : index
    %374 = vector.load %arg20[%c0_174, %c0_175] : memref<1x32xf32, #tpu.memory_space<vmem>>, vector<1x32xf32>
    %c0_176 = arith.constant 0 : index
    %c0_177 = arith.constant 0 : index
    %375 = vector.load %arg21[%c0_176, %c0_177] : memref<1x32xf32, #tpu.memory_space<vmem>>, vector<1x32xf32>
    %cst_178 = arith.constant dense<0.000000e+00> : vector<48xf32>
    %376 = vector.multi_reduction <add>, %373, %cst_178 [1] : vector<48x32xf32> to vector<48xf32>
    %377 = vector.shape_cast %376 : vector<48xf32> to vector<48x1xf32>
    %cst_179 = arith.constant 3.200000e+01 : f32
    %378 = vector.broadcast %cst_179 : f32 to vector<48x1xf32>
    %379 = arith.divf %377, %378 : vector<48x1xf32>
    %380 = vector.broadcast %379 : vector<48x1xf32> to vector<48x32xf32>
    %381 = arith.subf %373, %380 : vector<48x32xf32>
    %382 = arith.mulf %381, %381 : vector<48x32xf32>
    %cst_180 = arith.constant dense<0.000000e+00> : vector<48xf32>
    %383 = vector.multi_reduction <add>, %382, %cst_180 [1] : vector<48x32xf32> to vector<48xf32>
    %384 = vector.shape_cast %383 : vector<48xf32> to vector<48x1xf32>
    %cst_181 = arith.constant 3.200000e+01 : f32
    %385 = vector.broadcast %cst_181 : f32 to vector<48x1xf32>
    %386 = arith.divf %384, %385 : vector<48x1xf32>
    %387 = vector.broadcast %379 : vector<48x1xf32> to vector<48x32xf32>
    %388 = arith.subf %373, %387 : vector<48x32xf32>
    %cst_182 = arith.constant 9.99999997E-7 : f32
    %389 = vector.broadcast %cst_182 : f32 to vector<48x1xf32>
    %390 = arith.addf %386, %389 : vector<48x1xf32>
    %391 = math.rsqrt %390 : vector<48x1xf32>
    %392 = vector.broadcast %391 : vector<48x1xf32> to vector<48x32xf32>
    %393 = arith.mulf %388, %392 : vector<48x32xf32>
    %394 = vector.broadcast %374 : vector<1x32xf32> to vector<48x32xf32>
    %395 = arith.mulf %393, %394 : vector<48x32xf32>
    %396 = vector.broadcast %375 : vector<1x32xf32> to vector<48x32xf32>
    %397 = arith.addf %395, %396 : vector<48x32xf32>
    %c0_183 = arith.constant 0 : index
    %c0_184 = arith.constant 0 : index
    %398 = vector.load %arg4[%c0_183, %c0_184] : memref<2x48xf32, #tpu.memory_space<vmem>>, vector<2x48xf32>
    %cst_185 = arith.constant dense<0.000000e+00> : vector<2x32xf32>
    %399 = tpu.matmul %398, %397, %cst_185 {dimension_numbers = #tpu.dot_dimension_numbers<[1], [0], [0], [1], [0, 0, 1, 1], [], []>} : vector<2x48xf32>, vector<48x32xf32>, vector<2x32xf32> -> vector<2x32xf32>
    %c0_186 = arith.constant 0 : index
    %c0_187 = arith.constant 0 : index
    %400 = vector.load %arg5[%c0_186, %c0_187] : memref<2x48xf32, #tpu.memory_space<vmem>>, vector<2x48xf32>
    %cst_188 = arith.constant dense<0.000000e+00> : vector<2x32xf32>
    %401 = tpu.matmul %400, %397, %cst_188 {dimension_numbers = #tpu.dot_dimension_numbers<[1], [0], [0], [1], [0, 0, 1, 1], [], []>} : vector<2x48xf32>, vector<48x32xf32>, vector<2x32xf32> -> vector<2x32xf32>
    %402 = tpu.concatenate %399, %401 in 1 : vector<2x32xf32>, vector<2x32xf32> -> vector<2x64xf32>
    %c0_189 = arith.constant 0 : index
    %c0_190 = arith.constant 0 : index
    %403 = vector.load %arg22[%c0_189, %c0_190] : memref<2x64xf32, #tpu.memory_space<vmem>>, vector<2x64xf32>
    tpu.vector_store %arg22[%c0_189, %c0_190], %402 {strides = array<i32>} : memref<2x64xf32, #tpu.memory_space<vmem>>, vector<2x64xf32>,
    return
  }
}

</mosaic_0001>

<llo_original>
// kernel: dinov2_feature_encoder.1
$region0: #{dinov2_feature_encoder.1}
  #allocation0 [shape = 'u32[]', space=smem, size = 0x4, offset = 0x4, fixed_abs, tag = 'smem constant byte address 0x4 - core index']
  #allocation1 [shape = 'u32[72,128]{1,0:T(1,128)}', space=vmem, size = 0x9000, scoped, tag = 'internal scratch']
  %s0 = inlined_call_operand.vmem [shape: bf16[48,48], index: 0, kind: input, shape index: {}]
  %s1 = inlined_call_operand.vmem [shape: bf16[48,32], index: 1, kind: input, shape index: {}]
  %s2 = inlined_call_operand.vmem [shape: f32[48,32], index: 2, kind: input, shape index: {}]
  %s3 = inlined_call_operand.vmem [shape: f32[48,48], index: 3, kind: input, shape index: {}]
  %s4 = inlined_call_operand.vmem [shape: f32[2,48], index: 4, kind: input, shape index: {}]
  %s5 = inlined_call_operand.vmem [shape: f32[2,48], index: 5, kind: input, shape index: {}]
  %s6 = inlined_call_operand.vmem [shape: f32[2,1,32], index: 6, kind: input, shape index: {}]
  %s7 = inlined_call_operand.vmem [shape: f32[2,1,32], index: 7, kind: input, shape index: {}]
  %s8 = inlined_call_operand.vmem [shape: bf16[2,32,96], index: 8, kind: input, shape index: {}]
  %s9 = inlined_call_operand.vmem [shape: f32[2,1,96], index: 9, kind: input, shape index: {}]
  %s10 = inlined_call_operand.vmem [shape: bf16[2,32,32], index: 10, kind: input, shape index: {}]
  %s11 = inlined_call_operand.vmem [shape: f32[2,1,32], index: 11, kind: input, shape index: {}]
  %s12 = inlined_call_operand.vmem [shape: f32[2,1,32], index: 12, kind: input, shape index: {}]
  %s13 = inlined_call_operand.vmem [shape: f32[2,1,32], index: 13, kind: input, shape index: {}]
  %s14 = inlined_call_operand.vmem [shape: f32[2,1,32], index: 14, kind: input, shape index: {}]
  %s15 = inlined_call_operand.vmem [shape: bf16[2,32,128], index: 15, kind: input, shape index: {}]
  %s16 = inlined_call_operand.vmem [shape: f32[2,1,128], index: 16, kind: input, shape index: {}]
  %s17 = inlined_call_operand.vmem [shape: bf16[2,128,32], index: 17, kind: input, shape index: {}]
  %s18 = inlined_call_operand.vmem [shape: f32[2,1,32], index: 18, kind: input, shape index: {}]
  %s19 = inlined_call_operand.vmem [shape: f32[2,1,32], index: 19, kind: input, shape index: {}]
  %s20 = inlined_call_operand.vmem [shape: f32[1,32], index: 20, kind: input, shape index: {}]
  %s21 = inlined_call_operand.vmem [shape: f32[1,32], index: 21, kind: input, shape index: {}]
  %s22 = inlined_call_operand.hbm [shape: f32[2,64], index: 22, kind: output, shape index: {}]
  %s23 = sld [smem:[#allocation0]]
  $region98: #{dinov2_feature_encoder.1} parent=0
    _
  %s25 = ssub.s32 1, %s23
  %s26 = scalar_select 0, %s25, %s23
  $region1: #{dinov2_feature_encoder.1} parent=0
    #allocation2 [shape = 'u8[1024]{0}', space=vmem, size = 0x400, scoped, tag = 'output window, operand 0, single buffered']
    #allocation3 [shape = 's32[1]{0}', space=sflag, size = 0x4, scoped, tag = 'scoped memory for dinov2_feature_encoder.1']
    %27 = vsyncpa [#allocation3], 0
    // Predicated region
    $region2: #{dinov2_feature_encoder.1} parent=1 // pred_check
      _
    $region3: #{dinov2_feature_encoder.1} parent=1 // pred_check_branch
      %29 = sbr.rel (0) target = $region5
    $region4: #{dinov2_feature_encoder.1} parent=1 // pred_region
      _
    $region5: #{dinov2_feature_encoder.1} parent=1 // pred_fallthru
      _
    // Predicated region
    $region6: #{dinov2_feature_encoder.1} parent=1 // pred_check
      _
    $region7: #{dinov2_feature_encoder.1} parent=1 // pred_check_branch
      %31 = sbr.rel (0) target = $region9
    $region8: #{dinov2_feature_encoder.1} parent=1 // pred_region
      _
    $region9: #{dinov2_feature_encoder.1} parent=1 // pred_fallthru
      _
    // Predicated region
    $region10: #{dinov2_feature_encoder.1} parent=1 // pred_check
      _
    $region11: #{dinov2_feature_encoder.1} parent=1 // pred_check_branch
      %33 = sbr.rel (0) target = $region13
    $region12: #{dinov2_feature_encoder.1} parent=1 // pred_region
      _
    $region13: #{dinov2_feature_encoder.1} parent=1 // pred_fallthru
      _
    // Predicated region
    $region14: #{dinov2_feature_encoder.1} parent=1 // pred_check
      _
    $region15: #{dinov2_feature_encoder.1} parent=1 // pred_check_branch
      %35 = sbr.rel (0) target = $region17
    $region16: #{dinov2_feature_encoder.1} parent=1 // pred_region
      _
    $region17: #{dinov2_feature_encoder.1} parent=1 // pred_fallthru
      _
    // Predicated region
    $region18: #{dinov2_feature_encoder.1} parent=1 // pred_check
      _
    $region19: #{dinov2_feature_encoder.1} parent=1 // pred_check_branch
      %37 = sbr.rel (0) target = $region21
    $region20: #{dinov2_feature_encoder.1} parent=1 // pred_region
      _
    $region21: #{dinov2_feature_encoder.1} parent=1 // pred_fallthru
      _
    // Predicated region
    $region22: #{dinov2_feature_encoder.1} parent=1 // pred_check
      _
    $region23: #{dinov2_feature_encoder.1} parent=1 // pred_check_branch
      %39 = sbr.rel (0) target = $region25
    $region24: #{dinov2_feature_encoder.1} parent=1 // pred_region
      _
    $region25: #{dinov2_feature_encoder.1} parent=1 // pred_fallthru
      _
    // Predicated region
    $region26: #{dinov2_feature_encoder.1} parent=1 // pred_check
      _
    $region27: #{dinov2_feature_encoder.1} parent=1 // pred_check_branch
      %41 = sbr.rel (0) target = $region29
    $region28: #{dinov2_feature_encoder.1} parent=1 // pred_region
      _
    $region29: #{dinov2_feature_encoder.1} parent=1 // pred_fallthru
      _
    // Predicated region
    $region30: #{dinov2_feature_encoder.1} parent=1 // pred_check
      _
    $region31: #{dinov2_feature_encoder.1} parent=1 // pred_check_branch
      %43 = sbr.rel (0) target = $region33
    $region32: #{dinov2_feature_encoder.1} parent=1 // pred_region
      _
    $region33: #{dinov2_feature_encoder.1} parent=1 // pred_fallthru
      _
    // Predicated region
    $region34: #{dinov2_feature_encoder.1} parent=1 // pred_check
      _
    $region35: #{dinov2_feature_encoder.1} parent=1 // pred_check_branch
      %45 = sbr.rel (0) target = $region37
    $region36: #{dinov2_feature_encoder.1} parent=1 // pred_region
      _
    $region37: #{dinov2_feature_encoder.1} parent=1 // pred_fallthru
      _
    // Predicated region
    $region38: #{dinov2_feature_encoder.1} parent=1 // pred_check
      _
    $region39: #{dinov2_feature_encoder.1} parent=1 // pred_check_branch
      %47 = sbr.rel (0) target = $region41
    $region40: #{dinov2_feature_encoder.1} parent=1 // pred_region
      _
    $region41: #{dinov2_feature_encoder.1} parent=1 // pred_fallthru
      _
    // Predicated region
    $region42: #{dinov2_feature_encoder.1} parent=1 // pred_check
      _
    $region43: #{dinov2_feature_encoder.1} parent=1 // pred_check_branch
      %49 = sbr.rel (0) target = $region45
    $region44: #{dinov2_feature_encoder.1} parent=1 // pred_region
      _
    $region45: #{dinov2_feature_encoder.1} parent=1 // pred_fallthru
      _
    // Predicated region
    $region46: #{dinov2_feature_encoder.1} parent=1 // pred_check
      _
    $region47: #{dinov2_feature_encoder.1} parent=1 // pred_check_branch
      %51 = sbr.rel (0) target = $region49
    $region48: #{dinov2_feature_encoder.1} parent=1 // pred_region
      _
    $region49: #{dinov2_feature_encoder.1} parent=1 // pred_fallthru
      _
    // Predicated region
    $region50: #{dinov2_feature_encoder.1} parent=1 // pred_check
      _
    $region51: #{dinov2_feature_encoder.1} parent=1 // pred_check_branch
      %53 = sbr.rel (0) target = $region53
    $region52: #{dinov2_feature_encoder.1} parent=1 // pred_region
      _
    $region53: #{dinov2_feature_encoder.1} parent=1 // pred_fallthru
      _
    // Predicated region
    $region54: #{dinov2_feature_encoder.1} parent=1 // pred_check
      _
    $region55: #{dinov2_feature_encoder.1} parent=1 // pred_check_branch
      %55 = sbr.rel (0) target = $region57
    $region56: #{dinov2_feature_encoder.1} parent=1 // pred_region
      _
    $region57: #{dinov2_feature_encoder.1} parent=1 // pred_fallthru
      _
    // Predicated region
    $region58: #{dinov2_feature_encoder.1} parent=1 // pred_check
      _
    $region59: #{dinov2_feature_encoder.1} parent=1 // pred_check_branch
      %57 = sbr.rel (0) target = $region61
    $region60: #{dinov2_feature_encoder.1} parent=1 // pred_region
      _
    $region61: #{dinov2_feature_encoder.1} parent=1 // pred_fallthru
      _
    // Predicated region
    $region62: #{dinov2_feature_encoder.1} parent=1 // pred_check
      _
    $region63: #{dinov2_feature_encoder.1} parent=1 // pred_check_branch
      %59 = sbr.rel (0) target = $region65
    $region64: #{dinov2_feature_encoder.1} parent=1 // pred_region
      _
    $region65: #{dinov2_feature_encoder.1} parent=1 // pred_fallthru
      _
    // Predicated region
    $region66: #{dinov2_feature_encoder.1} parent=1 // pred_check
      _
    $region67: #{dinov2_feature_encoder.1} parent=1 // pred_check_branch
      %61 = sbr.rel (0) target = $region69
    $region68: #{dinov2_feature_encoder.1} parent=1 // pred_region
      _
    $region69: #{dinov2_feature_encoder.1} parent=1 // pred_fallthru
      _
    // Predicated region
    $region70: #{dinov2_feature_encoder.1} parent=1 // pred_check
      _
    $region71: #{dinov2_feature_encoder.1} parent=1 // pred_check_branch
      %63 = sbr.rel (0) target = $region73
    $region72: #{dinov2_feature_encoder.1} parent=1 // pred_region
      _
    $region73: #{dinov2_feature_encoder.1} parent=1 // pred_fallthru
      _
    // Predicated region
    $region74: #{dinov2_feature_encoder.1} parent=1 // pred_check
      _
    $region75: #{dinov2_feature_encoder.1} parent=1 // pred_check_branch
      %65 = sbr.rel (0) target = $region77
    $region76: #{dinov2_feature_encoder.1} parent=1 // pred_region
      _
    $region77: #{dinov2_feature_encoder.1} parent=1 // pred_fallthru
      _
    // Predicated region
    $region78: #{dinov2_feature_encoder.1} parent=1 // pred_check
      _
    $region79: #{dinov2_feature_encoder.1} parent=1 // pred_check_branch
      %67 = sbr.rel (0) target = $region81
    $region80: #{dinov2_feature_encoder.1} parent=1 // pred_region
      _
    $region81: #{dinov2_feature_encoder.1} parent=1 // pred_fallthru
      _
    // Predicated region
    $region82: #{dinov2_feature_encoder.1} parent=1 // pred_check
      _
    $region83: #{dinov2_feature_encoder.1} parent=1 // pred_check_branch
      %69 = sbr.rel (0) target = $region85
    $region84: #{dinov2_feature_encoder.1} parent=1 // pred_region
      _
    $region85: #{dinov2_feature_encoder.1} parent=1 // pred_fallthru
      _
    // Predicated region
    $region86: #{dinov2_feature_encoder.1} parent=1 // pred_check
      _
    $region87: #{dinov2_feature_encoder.1} parent=1 // pred_check_branch
      %71 = sbr.rel (0) target = $region89
    $region88: #{dinov2_feature_encoder.1} parent=1 // pred_region
      _
    $region89: #{dinov2_feature_encoder.1} parent=1 // pred_fallthru
      _
    %v73 = vld [vmem:[%s0] sm:$0xf]
    %v74 = vld [vmem:[%s0 + $0x4] sm:$0xf]
    %v75 = vld [vmem:[%s0 + $0x8] sm:$0xf]
    %v76 = vld [vmem:[%s0 + $0xc] sm:$0xf]
    %v77 = vld [vmem:[%s0 + $0x10] sm:$0xf]
    %v78 = vld [vmem:[%s0 + $0x14] sm:$0xf]
    %v79 = vld [vmem:[%s1] sm:$0xf]
    %v80 = vld [vmem:[%s1 + $0x4] sm:$0xf]
    %v81 = vld [vmem:[%s1 + $0x8] sm:$0xf]
    %v82 = vld [vmem:[%s1 + $0xc] sm:$0xf]
    %v83 = vld [vmem:[%s1 + $0x10] sm:$0xf]
    %v84 = vld [vmem:[%s1 + $0x14] sm:$0xf]
    %v85 = vld [vmem:[%s2] sm:$0xff]
    %v86 = vld [vmem:[%s2 + $0x8] sm:$0xff]
    %v87 = vld [vmem:[%s2 + $0x10] sm:$0xff]
    %v88 = vld [vmem:[%s2 + $0x18] sm:$0xff]
    %v89 = vld [vmem:[%s2 + $0x20] sm:$0xff]
    %v90 = vld [vmem:[%s2 + $0x28] sm:$0xff]
    %v97 = vunpack.c.l.b16 %v73
    %v98 = vunpack.c.l.b16 %v74
    %v99 = vunpack.c.l.b16 %v75
    %v100 = vunpack.c.l.b16 %v76
    %v101 = vunpack.c.l.b16 %v77
    %v102 = vunpack.c.l.b16 %v78
    %v103 = vpack.c.b16 %v98, %v97
    %v104 = vpack.c.b16 %v100, %v99
    %v105 = vpack.c.b16 %v102, %v101
    %v112 = vunpack.c.l.b16 %v79
    %v113 = vunpack.c.l.b16 %v80
    %v114 = vunpack.c.l.b16 %v81
    %v115 = vunpack.c.l.b16 %v82
    %v116 = vunpack.c.l.b16 %v83
    %v117 = vunpack.c.l.b16 %v84
    %v118 = vpack.c.b16 %v113, %v112
    %v119 = vpack.c.b16 %v115, %v114
    %v120 = vpack.c.b16 %v117, %v116
    %vm124 = vcmask 392192
    %v126 = vsel %vm124, %v103, 0
    %v129 = vsel %vm124, %v104, 0
    %v132 = vsel %vm124, %v105, 0
    %134 = vmatpush.bf16.msra.mxu0 0
    %135 = vmatpush.bf16.msra.mxu0 0
    %136 = vmatpush.bf16.msra.mxu0 0
    %137 = vmatpush.bf16.msra.mxu0 0
    %138 = vmatpush.bf16.msra.mxu0 0
    %139 = vmatpush.bf16.msra.mxu0 %v120
    %140 = vmatpush.bf16.msra.mxu0 %v119
    %141 = vmatpush.bf16.msra.mxu0 %v118
    %142 = vmatmul.bf16.gmra.mxu0 %v126
    %v143 = vpop.f32.mrf.mxu0
    %v144 = vadd.f32 %v85, %v143
    %v145 = vpop.f32.mrf.mxu0
    %v146 = vadd.f32 %v86, %v145
    %147 = vmatmul.bf16.gmra.mxu0 %v129
    %v148 = vpop.f32.mrf.mxu0
    %v149 = vadd.f32 %v87, %v148
    %v150 = vpop.f32.mrf.mxu0
    %v151 = vadd.f32 %v88, %v150
    %152 = vmatmul.bf16.gmra.mxu0 %v132
    %v153 = vpop.f32.mrf.mxu0
    %v154 = vadd.f32 %v89, %v153
    %v155 = vpop.f32.mrf.mxu0
    %v156 = vadd.f32 %v90, %v155
    %157 = vdwg.mxu0
    %v158 = vld [vmem:[%s3] sm:$0xff]
    %v159 = vld [vmem:[%s3 + $0x8] sm:$0xff]
    %v160 = vld [vmem:[%s3 + $0x10] sm:$0xff]
    %v161 = vld [vmem:[%s3 + $0x18] sm:$0xff]
    %v162 = vld [vmem:[%s3 + $0x20] sm:$0xff]
    %v163 = vld [vmem:[%s3 + $0x28] sm:$0xff]
    %v164 = vld [vmem:[%s6] sm:$0x1]
    %v165 = vld [vmem:[%s7] sm:$0x1]
    %vm166 = vcmask 261120
    %v167 = vsel %vm166, %v144, 0.0
    %168 = vadd.xlane.f32.xlu0 %v167
    %v169 = vpop.xlane.xlu0 %168
    %v170 = vsel %vm166, %v146, 0.0
    %171 = vadd.xlane.f32.xlu0 %v170
    %v172 = vpop.xlane.xlu0 %171
    %v173 = vsel %vm166, %v149, 0.0
    %174 = vadd.xlane.f32.xlu0 %v173
    %v175 = vpop.xlane.xlu0 %174
    %v176 = vsel %vm166, %v151, 0.0
    %177 = vadd.xlane.f32.xlu0 %v176
    %v178 = vpop.xlane.xlu0 %177
    %v179 = vsel %vm166, %v154, 0.0
    %180 = vadd.xlane.f32.xlu0 %v179
    %v181 = vpop.xlane.xlu0 %180
    %v182 = vsel %vm166, %v156, 0.0
    %183 = vadd.xlane.f32.xlu0 %v182
    %v184 = vpop.xlane.xlu0 %183
    %v185 = vrcp.pop 32.0
    %v186 = vmul.f32 32.0, %v185
    %v187 = vsub.f32 1.0, %v186
    %v188 = vmul.f32 %v185, %v187
    %v189 = vadd.f32 %v185, %v188
    %vm190 = vweird.f32 %v185
    %v191 = vsel %vm190, %v185, %v189
    %v192 = vmul.f32 %v169, %v191
    %v193 = vmul.f32 %v172, %v191
    %v194 = vmul.f32 %v175, %v191
    %v195 = vmul.f32 %v178, %v191
    %v196 = vmul.f32 %v181, %v191
    %v197 = vmul.f32 %v184, %v191
    %v198 = vsub.f32 %v144, %v192
    %v199 = vsub.f32 %v146, %v193
    %v200 = vsub.f32 %v149, %v194
    %v201 = vsub.f32 %v151, %v195
    %v202 = vsub.f32 %v154, %v196
    %v203 = vsub.f32 %v156, %v197
    %v204 = vmul.f32 %v198, %v198
    %v205 = vmul.f32 %v199, %v199
    %v206 = vmul.f32 %v200, %v200
    %v207 = vmul.f32 %v201, %v201
    %v208 = vmul.f32 %v202, %v202
    %v209 = vmul.f32 %v203, %v203
    %v210 = vsel %vm166, %v204, 0.0
    %211 = vadd.xlane.f32.xlu0 %v210
    %v212 = vpop.xlane.xlu0 %211
    %v213 = vsel %vm166, %v205, 0.0
    %214 = vadd.xlane.f32.xlu0 %v213
    %v215 = vpop.xlane.xlu0 %214
    %v216 = vsel %vm166, %v206, 0.0
    %217 = vadd.xlane.f32.xlu0 %v216
    %v218 = vpop.xlane.xlu0 %217
    %v219 = vsel %vm166, %v207, 0.0
    %220 = vadd.xlane.f32.xlu0 %v219
    %v221 = vpop.xlane.xlu0 %220
    %v222 = vsel %vm166, %v208, 0.0
    %223 = vadd.xlane.f32.xlu0 %v222
    %v224 = vpop.xlane.xlu0 %223
    %v225 = vsel %vm166, %v209, 0.0
    %226 = vadd.xlane.f32.xlu0 %v225
    %v227 = vpop.xlane.xlu0 %226
    %v228 = vmul.f32 %v212, %v191
    %v229 = vmul.f32 %v215, %v191
    %v230 = vmul.f32 %v218, %v191
    %v231 = vmul.f32 %v221, %v191
    %v232 = vmul.f32 %v224, %v191
    %v233 = vmul.f32 %v227, %v191
    %v234 = vadd.f32 %v228, 1e-06
    %v235 = vadd.f32 %v229, 1e-06
    %v236 = vadd.f32 %v230, 1e-06
    %v237 = vadd.f32 %v231, 1e-06
    %v238 = vadd.f32 %v232, 1e-06
    %v239 = vadd.f32 %v233, 1e-06
    %v240 = vrsqrt.pop %v234
    %v241 = vmul.f32 %v240, %v234
    %v242 = vmul.f32 %v241, %v240
    %v243 = vmul.f32 0.5, %v242
    %v244 = vsub.f32 1.5, %v243
    %v245 = vmul.f32 %v240, %v244
    %vm246 = vweird.f32 %v234
    %vm247 = vweird.f32 %v240
    %vm248 = vmor %vm246, %vm247
    %v249 = vsel %vm248, %v240, %v245
    %v250 = vrsqrt.pop %v235
    %v251 = vmul.f32 %v250, %v235
    %v252 = vmul.f32 %v251, %v250
    %v253 = vmul.f32 0.5, %v252
    %v254 = vsub.f32 1.5, %v253
    %v255 = vmul.f32 %v250, %v254
    %vm256 = vweird.f32 %v235
    %vm257 = vweird.f32 %v250
    %vm258 = vmor %vm256, %vm257
    %v259 = vsel %vm258, %v250, %v255
    %v260 = vrsqrt.pop %v236
    %v261 = vmul.f32 %v260, %v236
    %v262 = vmul.f32 %v261, %v260
    %v263 = vmul.f32 0.5, %v262
    %v264 = vsub.f32 1.5, %v263
    %v265 = vmul.f32 %v260, %v264
    %vm266 = vweird.f32 %v236
    %vm267 = vweird.f32 %v260
    %vm268 = vmor %vm266, %vm267
    %v269 = vsel %vm268, %v260, %v265
    %v270 = vrsqrt.pop %v237
    %v271 = vmul.f32 %v270, %v237
    %v272 = vmul.f32 %v271, %v270
    %v273 = vmul.f32 0.5, %v272
    %v274 = vsub.f32 1.5, %v273
    %v275 = vmul.f32 %v270, %v274
    %vm276 = vweird.f32 %v237
    %vm277 = vweird.f32 %v270
    %vm278 = vmor %vm276, %vm277
    %v279 = vsel %vm278, %v270, %v275
    %v280 = vrsqrt.pop %v238
    %v281 = vmul.f32 %v280, %v238
    %v282 = vmul.f32 %v281, %v280
    %v283 = vmul.f32 0.5, %v282
    %v284 = vsub.f32 1.5, %v283
    %v285 = vmul.f32 %v280, %v284
    %vm286 = vweird.f32 %v238
    %vm287 = vweird.f32 %v280
    %vm288 = vmor %vm286, %vm287
    %v289 = vsel %vm288, %v280, %v285
    %v290 = vrsqrt.pop %v239
    %v291 = vmul.f32 %v290, %v239
    %v292 = vmul.f32 %v291, %v290
    %v293 = vmul.f32 0.5, %v292
    %v294 = vsub.f32 1.5, %v293
    %v295 = vmul.f32 %v290, %v294
    %vm296 = vweird.f32 %v239
    %vm297 = vweird.f32 %v290
    %vm298 = vmor %vm296, %vm297
    %v299 = vsel %vm298, %v290, %v295
    %v300 = vmul.f32 %v198, %v249
    %v301 = vmul.f32 %v199, %v259
    %v302 = vmul.f32 %v200, %v269
    %v303 = vmul.f32 %v201, %v279
    %v304 = vmul.f32 %v202, %v289
    %v305 = vmul.f32 %v203, %v299
    %v307 = vperm.slane %v164, 0
    %v309 = vmul.f32 %v300, %v307
    %v310 = vmul.f32 %v301, %v307
    %v311 = vmul.f32 %v302, %v307
    %v312 = vmul.f32 %v303, %v307
    %v313 = vmul.f32 %v304, %v307
    %v314 = vmul.f32 %v305, %v307
    %v316 = vperm.slane %v165, 0
    %v318 = vadd.f32 %v309, %v316
    %v319 = vadd.f32 %v310, %v316
    %v320 = vadd.f32 %v311, %v316
    %v321 = vadd.f32 %v312, %v316
    %v322 = vadd.f32 %v313, %v316
    %v323 = vadd.f32 %v314, %v316
    %v324 = vpack.c.bf16 %v319, %v318
    %v325 = vpack.c.bf16 %v321, %v320
    %v326 = vpack.c.bf16 %v323, %v322
    %v327 = vld [vmem:[%s8] sm:$0xf]
    %v328 = vld [vmem:[%s8 + $0x4] sm:$0xf]
    %v329 = vld [vmem:[%s8 + $0x8] sm:$0xf]
    %v330 = vld [vmem:[%s8 + $0xc] sm:$0xf]
    %v331 = vld [vmem:[%s9] sm:$0x1]
    %v333 = vperm.slane %v331, 0
    %v339 = vunpack.c.l.b16 %v327
    %v340 = vunpack.c.l.b16 %v328
    %v341 = vunpack.c.l.b16 %v329
    %v342 = vunpack.c.l.b16 %v330
    %v343 = vpack.c.b16 %v340, %v339
    %v344 = vpack.c.b16 %v342, %v341
    %v348 = vsel %vm166, %v324, 0
    %v351 = vsel %vm166, %v325, 0
    %v354 = vsel %vm166, %v326, 0
    %356 = vmatpush.bf16.msra.mxu0 0
    %357 = vmatpush.bf16.msra.mxu0 0
    %358 = vmatpush.bf16.msra.mxu0 0
    %359 = vmatpush.bf16.msra.mxu0 0
    %360 = vmatpush.bf16.msra.mxu0 0
    %361 = vmatpush.bf16.msra.mxu0 0
    %362 = vmatpush.bf16.msra.mxu0 %v344
    %363 = vmatpush.bf16.msra.mxu0 %v343
    %364 = vmatmul.bf16.gmra.mxu0 %v348
    %v365 = vpop.f32.mrf.mxu0
    %v366 = vadd.f32 %v333, %v365
    %v367 = vpop.f32.mrf.mxu0
    %v368 = vadd.f32 %v333, %v367
    %369 = vmatmul.bf16.gmra.mxu0 %v351
    %v370 = vpop.f32.mrf.mxu0
    %v371 = vadd.f32 %v333, %v370
    %v372 = vpop.f32.mrf.mxu0
    %v373 = vadd.f32 %v333, %v372
    %374 = vmatmul.bf16.gmra.mxu0 %v354
    %v375 = vpop.f32.mrf.mxu0
    %v376 = vadd.f32 %v333, %v375
    %v377 = vpop.f32.mrf.mxu0
    %v378 = vadd.f32 %v333, %v377
    %379 = vdwg.mxu0
    %v380 = vld [vmem:[%s10] sm:$0xf]
    %v381 = vld [vmem:[%s10 + $0x4] sm:$0xf]
    %v382 = vld [vmem:[%s10 + $0x8] sm:$0xf]
    %v383 = vld [vmem:[%s10 + $0xc] sm:$0xf]
    %v384 = vpack.c.bf16 %v368, %v366
    %v385 = vpack.c.bf16 %v373, %v371
    %v386 = vpack.c.bf16 %v378, %v376
    %390 = vrot.lane.b32.xlu0 %v384, 96
    %v391 = vpop.permute.xlu0 %390
    %392 = vrot.lane.b32.xlu0 %v385, 96
    %v393 = vpop.permute.xlu0 %392
    %394 = vrot.lane.b32.xlu0 %v386, 96
    %v395 = vpop.permute.xlu0 %394
    %vm396 = vcmask 130048
    %v398 = vsel %vm396, %v384, 0
    %v401 = vsel %vm396, %v385, 0
    %v404 = vsel %vm396, %v386, 0
    %v407 = vsel %vm396, %v391, 0
    %v410 = vsel %vm396, %v393, 0
    %v413 = vsel %vm396, %v395, 0
    %415 = vmatpush.bf16.xpose.msra.mxu0 0
    %416 = vmatpush.bf16.xpose.msra.mxu0 0
    %417 = vmatpush.bf16.xpose.msra.mxu0 0
    %418 = vmatpush.bf16.xpose.msra.mxu0 0
    %419 = vmatpush.bf16.xpose.msra.mxu0 0
    %420 = vmatpush.bf16.xpose.msra.mxu0 %v413
    %421 = vmatpush.bf16.xpose.msra.mxu0 %v410
    %422 = vmatpush.bf16.xpose.msra.mxu0 %v407
    %423 = vmatmul.bf16.gmra.mxu0 %v398
    %v424 = vpop.f32.mrf.mxu0
    %v425 = vadd.f32 0.0, %v424
    %v426 = vpop.f32.mrf.mxu0
    %v427 = vadd.f32 0.0, %v426
    %428 = vmatmul.bf16.gmra.mxu0 %v401
    %v429 = vpop.f32.mrf.mxu0
    %v430 = vadd.f32 0.0, %v429
    %v431 = vpop.f32.mrf.mxu0
    %v432 = vadd.f32 0.0, %v431
    %433 = vmatmul.bf16.gmra.mxu0 %v404
    %v434 = vpop.f32.mrf.mxu0
    %v435 = vadd.f32 0.0, %v434
    %v436 = vpop.f32.mrf.mxu0
    %v437 = vadd.f32 0.0, %v436
    %438 = vdwg.mxu0
    %v439 = vmul.f32 %v425, 0.25
    %v440 = vmul.f32 %v427, 0.25
    %v441 = vmul.f32 %v430, 0.25
    %v442 = vmul.f32 %v432, 0.25
    %v443 = vmul.f32 %v435, 0.25
    %v444 = vmul.f32 %v437, 0.25
    %v445 = vadd.f32 %v439, %v158
    %v446 = vadd.f32 %v440, %v159
    %v447 = vadd.f32 %v441, %v160
    %v448 = vadd.f32 %v442, %v161
    %v449 = vadd.f32 %v443, %v162
    %v450 = vadd.f32 %v444, %v163
    %v451 = vsel %vm124, %v445, -inf
    %452 = vmax.xlane.f32.xlu0 %v451
    %v453 = vpop.xlane.xlu0 %452
    %v454 = vsel %vm124, %v446, -inf
    %455 = vmax.xlane.f32.xlu0 %v454
    %v456 = vpop.xlane.xlu0 %455
    %v457 = vsel %vm124, %v447, -inf
    %458 = vmax.xlane.f32.xlu0 %v457
    %v459 = vpop.xlane.xlu0 %458
    %v460 = vsel %vm124, %v448, -inf
    %461 = vmax.xlane.f32.xlu0 %v460
    %v462 = vpop.xlane.xlu0 %461
    %v463 = vsel %vm124, %v449, -inf
    %464 = vmax.xlane.f32.xlu0 %v463
    %v465 = vpop.xlane.xlu0 %464
    %v466 = vsel %vm124, %v450, -inf
    %467 = vmax.xlane.f32.xlu0 %v466
    %v468 = vpop.xlane.xlu0 %467
    %v469 = vsub.f32 %v445, %v453
    %v470 = vsub.f32 %v446, %v456
    %v471 = vsub.f32 %v447, %v459
    %v472 = vsub.f32 %v448, %v462
    %v473 = vsub.f32 %v449, %v465
    %v474 = vsub.f32 %v450, %v468
    %v475 = vmul.f32 %v469, 1.442695
    %v476 = vpow.pop %v475
    %v477 = vmul.f32 %v470, 1.442695
    %v478 = vpow.pop %v477
    %v479 = vmul.f32 %v471, 1.442695
    %v480 = vpow.pop %v479
    %v481 = vmul.f32 %v472, 1.442695
    %v482 = vpow.pop %v481
    %v483 = vmul.f32 %v473, 1.442695
    %v484 = vpow.pop %v483
    %v485 = vmul.f32 %v474, 1.442695
    %v486 = vpow.pop %v485
    %v487 = vsel %vm124, %v476, 0.0
    %488 = vadd.xlane.f32.xlu0 %v487
    %v489 = vpop.xlane.xlu0 %488
    %v490 = vsel %vm124, %v478, 0.0
    %491 = vadd.xlane.f32.xlu0 %v490
    %v492 = vpop.xlane.xlu0 %491
    %v493 = vsel %vm124, %v480, 0.0
    %494 = vadd.xlane.f32.xlu0 %v493
    %v495 = vpop.xlane.xlu0 %494
    %v496 = vsel %vm124, %v482, 0.0
    %497 = vadd.xlane.f32.xlu0 %v496
    %v498 = vpop.xlane.xlu0 %497
    %v499 = vsel %vm124, %v484, 0.0
    %500 = vadd.xlane.f32.xlu0 %v499
    %v501 = vpop.xlane.xlu0 %500
    %v502 = vsel %vm124, %v486, 0.0
    %503 = vadd.xlane.f32.xlu0 %v502
    %v504 = vpop.xlane.xlu0 %503
    %v505 = vrcp.pop %v489
    %v506 = vmul.f32 %v489, %v505
    %v507 = vsub.f32 1.0, %v506
    %v508 = vmul.f32 %v505, %v507
    %v509 = vadd.f32 %v505, %v508
    %vm510 = vweird.f32 %v489
    %vm511 = vweird.f32 %v505
    %vm512 = vmor %vm510, %vm511
    %v513 = vsel %vm512, %v505, %v509
    %v514 = vand.u32 2147483647, %v489
    %vm515 = vcmp.eq.f32.partialorder %v514, 8.507059e+37
    %v516 = vand.u32 %v489, 2147483648
    %v517 = vor.u32 1.1754944e-38, %v516
    %v518 = vsel %vm515, %v517, %v513
    %v519 = vmul.f32 %v476, %v518
    %v520 = vrcp.pop %v492
    %v521 = vmul.f32 %v492, %v520
    %v522 = vsub.f32 1.0, %v521
    %v523 = vmul.f32 %v520, %v522
    %v524 = vadd.f32 %v520, %v523
    %vm525 = vweird.f32 %v492
    %vm526 = vweird.f32 %v520
    %vm527 = vmor %vm525, %vm526
    %v528 = vsel %vm527, %v520, %v524
    %v529 = vand.u32 2147483647, %v492
    %vm530 = vcmp.eq.f32.partialorder %v529, 8.507059e+37
    %v531 = vand.u32 %v492, 2147483648
    %v532 = vor.u32 1.1754944e-38, %v531
    %v533 = vsel %vm530, %v532, %v528
    %v534 = vmul.f32 %v478, %v533
    %v535 = vrcp.pop %v495
    %v536 = vmul.f32 %v495, %v535
    %v537 = vsub.f32 1.0, %v536
    %v538 = vmul.f32 %v535, %v537
    %v539 = vadd.f32 %v535, %v538
    %vm540 = vweird.f32 %v495
    %vm541 = vweird.f32 %v535
    %vm542 = vmor %vm540, %vm541
    %v543 = vsel %vm542, %v535, %v539
    %v544 = vand.u32 2147483647, %v495
    %vm545 = vcmp.eq.f32.partialorder %v544, 8.507059e+37
    %v546 = vand.u32 %v495, 2147483648
    %v547 = vor.u32 1.1754944e-38, %v546
    %v548 = vsel %vm545, %v547, %v543
    %v549 = vmul.f32 %v480, %v548
    %v550 = vrcp.pop %v498
    %v551 = vmul.f32 %v498, %v550
    %v552 = vsub.f32 1.0, %v551
    %v553 = vmul.f32 %v550, %v552
    %v554 = vadd.f32 %v550, %v553
    %vm555 = vweird.f32 %v498
    %vm556 = vweird.f32 %v550
    %vm557 = vmor %vm555, %vm556
    %v558 = vsel %vm557, %v550, %v554
    %v559 = vand.u32 2147483647, %v498
    %vm560 = vcmp.eq.f32.partialorder %v559, 8.507059e+37
    %v561 = vand.u32 %v498, 2147483648
    %v562 = vor.u32 1.1754944e-38, %v561
    %v563 = vsel %vm560, %v562, %v558
    %v564 = vmul.f32 %v482, %v563
    %v565 = vrcp.pop %v501
    %v566 = vmul.f32 %v501, %v565
    %v567 = vsub.f32 1.0, %v566
    %v568 = vmul.f32 %v565, %v567
    %v569 = vadd.f32 %v565, %v568
    %vm570 = vweird.f32 %v501
    %vm571 = vweird.f32 %v565
    %vm572 = vmor %vm570, %vm571
    %v573 = vsel %vm572, %v565, %v569
    %v574 = vand.u32 2147483647, %v501
    %vm575 = vcmp.eq.f32.partialorder %v574, 8.507059e+37
    %v576 = vand.u32 %v501, 2147483648
    %v577 = vor.u32 1.1754944e-38, %v576
    %v578 = vsel %vm575, %v577, %v573
    %v579 = vmul.f32 %v484, %v578
    %v580 = vrcp.pop %v504
    %v581 = vmul.f32 %v504, %v580
    %v582 = vsub.f32 1.0, %v581
    %v583 = vmul.f32 %v580, %v582
    %v584 = vadd.f32 %v580, %v583
    %vm585 = vweird.f32 %v504
    %vm586 = vweird.f32 %v580
    %vm587 = vmor %vm585, %vm586
    %v588 = vsel %vm587, %v580, %v584
    %v589 = vand.u32 2147483647, %v504
    %vm590 = vcmp.eq.f32.partialorder %v589, 8.507059e+37
    %v591 = vand.u32 %v504, 2147483648
    %v592 = vor.u32 1.1754944e-38, %v591
    %v593 = vsel %vm590, %v592, %v588
    %v594 = vmul.f32 %v486, %v593
    %v595 = vpack.c.bf16 %v534, %v519
    %v596 = vpack.c.bf16 %v564, %v549
    %v597 = vpack.c.bf16 %v594, %v579
    %598 = vrot.lane.b32.xlu0 %v384, 64
    %v599 = vpop.permute.xlu0 %598
    %600 = vrot.lane.b32.xlu0 %v385, 64
    %v601 = vpop.permute.xlu0 %600
    %602 = vrot.lane.b32.xlu0 %v386, 64
    %v603 = vpop.permute.xlu0 %602
    %v608 = vsel %vm124, %v595, 0
    %v611 = vsel %vm124, %v596, 0
    %v614 = vsel %vm124, %v597, 0
    %616 = vmatpush.bf16.msra.mxu0 0
    %617 = vmatpush.bf16.msra.mxu0 0
    %618 = vmatpush.bf16.msra.mxu0 0
    %619 = vmatpush.bf16.msra.mxu0 0
    %620 = vmatpush.bf16.msra.mxu0 0
    %621 = vmatpush.bf16.msra.mxu0 %v603
    %622 = vmatpush.bf16.msra.mxu0 %v601
    %623 = vmatpush.bf16.msra.mxu0 %v599
    %624 = vmatmul.bf16.gmra.mxu0 %v608
    %v625 = vpop.f32.mrf.mxu0
    %v626 = vadd.f32 0.0, %v625
    %v627 = vpop.f32.mrf.mxu0
    %v628 = vadd.f32 0.0, %v627
    %629 = vmatmul.bf16.gmra.mxu0 %v611
    %v630 = vpop.f32.mrf.mxu0
    %v631 = vadd.f32 0.0, %v630
    %v632 = vpop.f32.mrf.mxu0
    %v633 = vadd.f32 0.0, %v632
    %634 = vmatmul.bf16.gmra.mxu0 %v614
    %v635 = vpop.f32.mrf.mxu0
    %v636 = vadd.f32 0.0, %v635
    %v637 = vpop.f32.mrf.mxu0
    %v638 = vadd.f32 0.0, %v637
    %639 = vdwg.mxu0
    %v640 = vpack.c.bf16 %v628, %v626
    %v641 = vpack.c.bf16 %v633, %v631
    %v642 = vpack.c.bf16 %v638, %v636
    %643 = vrot.lane.b32.xlu0 %v384, 112
    %v644 = vpop.permute.xlu0 %643
    %645 = vrot.lane.b32.xlu0 %v385, 112
    %v646 = vpop.permute.xlu0 %645
    %647 = vrot.lane.b32.xlu0 %v386, 112
    %v648 = vpop.permute.xlu0 %647
    %649 = vrot.lane.b32.xlu0 %v384, 80
    %v650 = vpop.permute.xlu0 %649
    %651 = vrot.lane.b32.xlu0 %v385, 80
    %v652 = vpop.permute.xlu0 %651
    %653 = vrot.lane.b32.xlu0 %v386, 80
    %v654 = vpop.permute.xlu0 %653
    %v656 = vsel %vm396, %v644, 0
    %v659 = vsel %vm396, %v646, 0
    %v662 = vsel %vm396, %v648, 0
    %v665 = vsel %vm396, %v650, 0
    %v668 = vsel %vm396, %v652, 0
    %v671 = vsel %vm396, %v654, 0
    %673 = vmatpush.bf16.xpose.msra.mxu0 0
    %674 = vmatpush.bf16.xpose.msra.mxu0 0
    %675 = vmatpush.bf16.xpose.msra.mxu0 0
    %676 = vmatpush.bf16.xpose.msra.mxu0 0
    %677 = vmatpush.bf16.xpose.msra.mxu0 0
    %678 = vmatpush.bf16.xpose.msra.mxu0 %v671
    %679 = vmatpush.bf16.xpose.msra.mxu0 %v668
    %680 = vmatpush.bf16.xpose.msra.mxu0 %v665
    %681 = vmatmul.bf16.gmra.mxu0 %v656
    %v682 = vpop.f32.mrf.mxu0
    %v683 = vadd.f32 0.0, %v682
    %v684 = vpop.f32.mrf.mxu0
    %v685 = vadd.f32 0.0, %v684
    %686 = vmatmul.bf16.gmra.mxu0 %v659
    %v687 = vpop.f32.mrf.mxu0
    %v688 = vadd.f32 0.0, %v687
    %v689 = vpop.f32.mrf.mxu0
    %v690 = vadd.f32 0.0, %v689
    %691 = vmatmul.bf16.gmra.mxu0 %v662
    %v692 = vpop.f32.mrf.mxu0
    %v693 = vadd.f32 0.0, %v692
    %v694 = vpop.f32.mrf.mxu0
    %v695 = vadd.f32 0.0, %v694
    %696 = vdwg.mxu0
    %v697 = vmul.f32 %v683, 0.25
    %v698 = vmul.f32 %v685, 0.25
    %v699 = vmul.f32 %v688, 0.25
    %v700 = vmul.f32 %v690, 0.25
    %v701 = vmul.f32 %v693, 0.25
    %v702 = vmul.f32 %v695, 0.25
    %v703 = vadd.f32 %v697, %v158
    %v704 = vadd.f32 %v698, %v159
    %v705 = vadd.f32 %v699, %v160
    %v706 = vadd.f32 %v700, %v161
    %v707 = vadd.f32 %v701, %v162
    %v708 = vadd.f32 %v702, %v163
    %v709 = vsel %vm124, %v703, -inf
    %710 = vmax.xlane.f32.xlu0 %v709
    %v711 = vpop.xlane.xlu0 %710
    %v712 = vsel %vm124, %v704, -inf
    %713 = vmax.xlane.f32.xlu0 %v712
    %v714 = vpop.xlane.xlu0 %713
    %v715 = vsel %vm124, %v705, -inf
    %716 = vmax.xlane.f32.xlu0 %v715
    %v717 = vpop.xlane.xlu0 %716
    %v718 = vsel %vm124, %v706, -inf
    %719 = vmax.xlane.f32.xlu0 %v718
    %v720 = vpop.xlane.xlu0 %719
    %v721 = vsel %vm124, %v707, -inf
    %722 = vmax.xlane.f32.xlu0 %v721
    %v723 = vpop.xlane.xlu0 %722
    %v724 = vsel %vm124, %v708, -inf
    %725 = vmax.xlane.f32.xlu0 %v724
    %v726 = vpop.xlane.xlu0 %725
    %v727 = vsub.f32 %v703, %v711
    %v728 = vsub.f32 %v704, %v714
    %v729 = vsub.f32 %v705, %v717
    %v730 = vsub.f32 %v706, %v720
    %v731 = vsub.f32 %v707, %v723
    %v732 = vsub.f32 %v708, %v726
    %v733 = vmul.f32 %v727, 1.442695
    %v734 = vpow.pop %v733
    %v735 = vmul.f32 %v728, 1.442695
    %v736 = vpow.pop %v735
    %v737 = vmul.f32 %v729, 1.442695
    %v738 = vpow.pop %v737
    %v739 = vmul.f32 %v730, 1.442695
    %v740 = vpow.pop %v739
    %v741 = vmul.f32 %v731, 1.442695
    %v742 = vpow.pop %v741
    %v743 = vmul.f32 %v732, 1.442695
    %v744 = vpow.pop %v743
    %v745 = vsel %vm124, %v734, 0.0
    %746 = vadd.xlane.f32.xlu0 %v745
    %v747 = vpop.xlane.xlu0 %746
    %v748 = vsel %vm124, %v736, 0.0
    %749 = vadd.xlane.f32.xlu0 %v748
    %v750 = vpop.xlane.xlu0 %749
    %v751 = vsel %vm124, %v738, 0.0
    %752 = vadd.xlane.f32.xlu0 %v751
    %v753 = vpop.xlane.xlu0 %752
    %v754 = vsel %vm124, %v740, 0.0
    %755 = vadd.xlane.f32.xlu0 %v754
    %v756 = vpop.xlane.xlu0 %755
    %v757 = vsel %vm124, %v742, 0.0
    %758 = vadd.xlane.f32.xlu0 %v757
    %v759 = vpop.xlane.xlu0 %758
    %v760 = vsel %vm124, %v744, 0.0
    %761 = vadd.xlane.f32.xlu0 %v760
    %v762 = vpop.xlane.xlu0 %761
    %v763 = vrcp.pop %v747
    %v764 = vmul.f32 %v747, %v763
    %v765 = vsub.f32 1.0, %v764
    %v766 = vmul.f32 %v763, %v765
    %v767 = vadd.f32 %v763, %v766
    %vm768 = vweird.f32 %v747
    %vm769 = vweird.f32 %v763
    %vm770 = vmor %vm768, %vm769
    %v771 = vsel %vm770, %v763, %v767
    %v772 = vand.u32 2147483647, %v747
    %vm773 = vcmp.eq.f32.partialorder %v772, 8.507059e+37
    %v774 = vand.u32 %v747, 2147483648
    %v775 = vor.u32 1.1754944e-38, %v774
    %v776 = vsel %vm773, %v775, %v771
    %v777 = vmul.f32 %v734, %v776
    %v778 = vrcp.pop %v750
    %v779 = vmul.f32 %v750, %v778
    %v780 = vsub.f32 1.0, %v779
    %v781 = vmul.f32 %v778, %v780
    %v782 = vadd.f32 %v778, %v781
    %vm783 = vweird.f32 %v750
    %vm784 = vweird.f32 %v778
    %vm785 = vmor %vm783, %vm784
    %v786 = vsel %vm785, %v778, %v782
    %v787 = vand.u32 2147483647, %v750
    %vm788 = vcmp.eq.f32.partialorder %v787, 8.507059e+37
    %v789 = vand.u32 %v750, 2147483648
    %v790 = vor.u32 1.1754944e-38, %v789
    %v791 = vsel %vm788, %v790, %v786
    %v792 = vmul.f32 %v736, %v791
    %v793 = vrcp.pop %v753
    %v794 = vmul.f32 %v753, %v793
    %v795 = vsub.f32 1.0, %v794
    %v796 = vmul.f32 %v793, %v795
    %v797 = vadd.f32 %v793, %v796
    %vm798 = vweird.f32 %v753
    %vm799 = vweird.f32 %v793
    %vm800 = vmor %vm798, %vm799
    %v801 = vsel %vm800, %v793, %v797
    %v802 = vand.u32 2147483647, %v753
    %vm803 = vcmp.eq.f32.partialorder %v802, 8.507059e+37
    %v804 = vand.u32 %v753, 2147483648
    %v805 = vor.u32 1.1754944e-38, %v804
    %v806 = vsel %vm803, %v805, %v801
    %v807 = vmul.f32 %v738, %v806
    %v808 = vrcp.pop %v756
    %v809 = vmul.f32 %v756, %v808
    %v810 = vsub.f32 1.0, %v809
    %v811 = vmul.f32 %v808, %v810
    %v812 = vadd.f32 %v808, %v811
    %vm813 = vweird.f32 %v756
    %vm814 = vweird.f32 %v808
    %vm815 = vmor %vm813, %vm814
    %v816 = vsel %vm815, %v808, %v812
    %v817 = vand.u32 2147483647, %v756
    %vm818 = vcmp.eq.f32.partialorder %v817, 8.507059e+37
    %v819 = vand.u32 %v756, 2147483648
    %v820 = vor.u32 1.1754944e-38, %v819
    %v821 = vsel %vm818, %v820, %v816
    %v822 = vmul.f32 %v740, %v821
    %v823 = vrcp.pop %v759
    %v824 = vmul.f32 %v759, %v823
    %v825 = vsub.f32 1.0, %v824
    %v826 = vmul.f32 %v823, %v825
    %v827 = vadd.f32 %v823, %v826
    %vm828 = vweird.f32 %v759
    %vm829 = vweird.f32 %v823
    %vm830 = vmor %vm828, %vm829
    %v831 = vsel %vm830, %v823, %v827
    %v832 = vand.u32 2147483647, %v759
    %vm833 = vcmp.eq.f32.partialorder %v832, 8.507059e+37
    %v834 = vand.u32 %v759, 2147483648
    %v835 = vor.u32 1.1754944e-38, %v834
    %v836 = vsel %vm833, %v835, %v831
    %v837 = vmul.f32 %v742, %v836
    %v838 = vrcp.pop %v762
    %v839 = vmul.f32 %v762, %v838
    %v840 = vsub.f32 1.0, %v839
    %v841 = vmul.f32 %v838, %v840
    %v842 = vadd.f32 %v838, %v841
    %vm843 = vweird.f32 %v762
    %vm844 = vweird.f32 %v838
    %vm845 = vmor %vm843, %vm844
    %v846 = vsel %vm845, %v838, %v842
    %v847 = vand.u32 2147483647, %v762
    %vm848 = vcmp.eq.f32.partialorder %v847, 8.507059e+37
    %v849 = vand.u32 %v762, 2147483648
    %v850 = vor.u32 1.1754944e-38, %v849
    %v851 = vsel %vm848, %v850, %v846
    %v852 = vmul.f32 %v744, %v851
    %v853 = vpack.c.bf16 %v792, %v777
    %v854 = vpack.c.bf16 %v822, %v807
    %v855 = vpack.c.bf16 %v852, %v837
    %856 = vrot.lane.b32.xlu0 %v384, 48
    %v857 = vpop.permute.xlu0 %856
    %858 = vrot.lane.b32.xlu0 %v385, 48
    %v859 = vpop.permute.xlu0 %858
    %860 = vrot.lane.b32.xlu0 %v386, 48
    %v861 = vpop.permute.xlu0 %860
    %v866 = vsel %vm124, %v853, 0
    %v869 = vsel %vm124, %v854, 0
    %v872 = vsel %vm124, %v855, 0
    %874 = vmatpush.bf16.msra.mxu0 0
    %875 = vmatpush.bf16.msra.mxu0 0
    %876 = vmatpush.bf16.msra.mxu0 0
    %877 = vmatpush.bf16.msra.mxu0 0
    %878 = vmatpush.bf16.msra.mxu0 0
    %879 = vmatpush.bf16.msra.mxu0 %v861
    %880 = vmatpush.bf16.msra.mxu0 %v859
    %881 = vmatpush.bf16.msra.mxu0 %v857
    %882 = vmatmul.bf16.gmra.mxu0 %v866
    %v883 = vpop.f32.mrf.mxu0
    %v884 = vadd.f32 0.0, %v883
    %v885 = vpop.f32.mrf.mxu0
    %v886 = vadd.f32 0.0, %v885
    %887 = vmatmul.bf16.gmra.mxu0 %v869
    %v888 = vpop.f32.mrf.mxu0
    %v889 = vadd.f32 0.0, %v888
    %v890 = vpop.f32.mrf.mxu0
    %v891 = vadd.f32 0.0, %v890
    %892 = vmatmul.bf16.gmra.mxu0 %v872
    %v893 = vpop.f32.mrf.mxu0
    %v894 = vadd.f32 0.0, %v893
    %v895 = vpop.f32.mrf.mxu0
    %v896 = vadd.f32 0.0, %v895
    %897 = vdwg.mxu0
    %v898 = vpack.c.bf16 %v886, %v884
    %v899 = vpack.c.bf16 %v891, %v889
    %v900 = vpack.c.bf16 %v896, %v894
    %v903 = vunpack.c.l.b16 %v382
    %v904 = vunpack.c.l.b16 %v383
    %v905 = vpack.c.b16 %v904, %v903
    %v908 = vsel %vm396, %v898, 0
    %v911 = vsel %vm396, %v899, 0
    %v914 = vsel %vm396, %v900, 0
    %916 = vmatpush.bf16.msra.mxu0 0
    %917 = vmatpush.bf16.msra.mxu0 0
    %918 = vmatpush.bf16.msra.mxu0 0
    %919 = vmatpush.bf16.msra.mxu0 0
    %920 = vmatpush.bf16.msra.mxu0 0
    %921 = vmatpush.bf16.msra.mxu0 0
    %922 = vmatpush.bf16.msra.mxu0 0
    %923 = vmatpush.bf16.msra.mxu0 %v905
    %924 = vmatmul.bf16.gmra.mxu0 %v908
    %v925 = vpop.f32.mrf.mxu0
    %v926 = vadd.f32 0.0, %v925
    %v927 = vpop.f32.mrf.mxu0
    %v928 = vadd.f32 0.0, %v927
    %929 = vmatmul.bf16.gmra.mxu0 %v911
    %v930 = vpop.f32.mrf.mxu0
    %v931 = vadd.f32 0.0, %v930
    %v932 = vpop.f32.mrf.mxu0
    %v933 = vadd.f32 0.0, %v932
    %934 = vmatmul.bf16.gmra.mxu0 %v914
    %v935 = vpop.f32.mrf.mxu0
    %v936 = vadd.f32 0.0, %v935
    %v937 = vpop.f32.mrf.mxu0
    %v938 = vadd.f32 0.0, %v937
    %939 = vdwg.mxu0
    %v942 = vunpack.c.l.b16 %v380
    %v943 = vunpack.c.l.b16 %v381
    %v944 = vpack.c.b16 %v943, %v942
    %v947 = vsel %vm396, %v640, 0
    %v950 = vsel %vm396, %v641, 0
    %v953 = vsel %vm396, %v642, 0
    %955 = vmatpush.bf16.msra.mxu0 0
    %956 = vmatpush.bf16.msra.mxu0 0
    %957 = vmatpush.bf16.msra.mxu0 0
    %958 = vmatpush.bf16.msra.mxu0 0
    %959 = vmatpush.bf16.msra.mxu0 0
    %960 = vmatpush.bf16.msra.mxu0 0
    %961 = vmatpush.bf16.msra.mxu0 0
    %962 = vmatpush.bf16.msra.mxu0 %v944
    %963 = vmatmul.bf16.gmra.mxu0 %v947
    %v964 = vpop.f32.mrf.mxu0
    %v965 = vadd.f32 %v926, %v964
    %v966 = vpop.f32.mrf.mxu0
    %v967 = vadd.f32 %v928, %v966
    %968 = vmatmul.bf16.gmra.mxu0 %v950
    %v969 = vpop.f32.mrf.mxu0
    %v970 = vadd.f32 %v931, %v969
    %v971 = vpop.f32.mrf.mxu0
    %v972 = vadd.f32 %v933, %v971
    %973 = vmatmul.bf16.gmra.mxu0 %v953
    %v974 = vpop.f32.mrf.mxu0
    %v975 = vadd.f32 %v936, %v974
    %v976 = vpop.f32.mrf.mxu0
    %v977 = vadd.f32 %v938, %v976
    %978 = vdwg.mxu0
    %v979 = vld [vmem:[%s12] sm:$0x1]
    %v980 = vld [vmem:[%s11] sm:$0x1]
    %v982 = vperm.slane %v980, 0
    %v984 = vadd.f32 %v965, %v982
    %v985 = vadd.f32 %v967, %v982
    %v986 = vadd.f32 %v970, %v982
    %v987 = vadd.f32 %v972, %v982
    %v988 = vadd.f32 %v975, %v982
    %v989 = vadd.f32 %v977, %v982
    %v991 = vperm.slane %v979, 0
    %v993 = vmul.f32 %v991, %v984
    %v994 = vmul.f32 %v991, %v985
    %v995 = vmul.f32 %v991, %v986
    %v996 = vmul.f32 %v991, %v987
    %v997 = vmul.f32 %v991, %v988
    %v998 = vmul.f32 %v991, %v989
    %v999 = vadd.f32 %v144, %v993
    %v1000 = vadd.f32 %v146, %v994
    %v1001 = vadd.f32 %v149, %v995
    %v1002 = vadd.f32 %v151, %v996
    %v1003 = vadd.f32 %v154, %v997
    %v1004 = vadd.f32 %v156, %v998
    %v1005 = vld [vmem:[%s13] sm:$0x1]
    %v1006 = vld [vmem:[%s14] sm:$0x1]
    %v1007 = vsel %vm166, %v999, 0.0
    %1008 = vadd.xlane.f32.xlu0 %v1007
    %v1009 = vpop.xlane.xlu0 %1008
    %v1010 = vsel %vm166, %v1000, 0.0
    %1011 = vadd.xlane.f32.xlu0 %v1010
    %v1012 = vpop.xlane.xlu0 %1011
    %v1013 = vsel %vm166, %v1001, 0.0
    %1014 = vadd.xlane.f32.xlu0 %v1013
    %v1015 = vpop.xlane.xlu0 %1014
    %v1016 = vsel %vm166, %v1002, 0.0
    %1017 = vadd.xlane.f32.xlu0 %v1016
    %v1018 = vpop.xlane.xlu0 %1017
    %v1019 = vsel %vm166, %v1003, 0.0
    %1020 = vadd.xlane.f32.xlu0 %v1019
    %v1021 = vpop.xlane.xlu0 %1020
    %v1022 = vsel %vm166, %v1004, 0.0
    %1023 = vadd.xlane.f32.xlu0 %v1022
    %v1024 = vpop.xlane.xlu0 %1023
    %v1025 = vmul.f32 %v1009, %v191
    %v1026 = vmul.f32 %v1012, %v191
    %v1027 = vmul.f32 %v1015, %v191
    %v1028 = vmul.f32 %v1018, %v191
    %v1029 = vmul.f32 %v1021, %v191
    %v1030 = vmul.f32 %v1024, %v191
    %v1031 = vsub.f32 %v999, %v1025
    %v1032 = vsub.f32 %v1000, %v1026
    %v1033 = vsub.f32 %v1001, %v1027
    %v1034 = vsub.f32 %v1002, %v1028
    %v1035 = vsub.f32 %v1003, %v1029
    %v1036 = vsub.f32 %v1004, %v1030
    %v1037 = vmul.f32 %v1031, %v1031
    %v1038 = vmul.f32 %v1032, %v1032
    %v1039 = vmul.f32 %v1033, %v1033
    %v1040 = vmul.f32 %v1034, %v1034
    %v1041 = vmul.f32 %v1035, %v1035
    %v1042 = vmul.f32 %v1036, %v1036
    %v1043 = vsel %vm166, %v1037, 0.0
    %1044 = vadd.xlane.f32.xlu0 %v1043
    %v1045 = vpop.xlane.xlu0 %1044
    %v1046 = vsel %vm166, %v1038, 0.0
    %1047 = vadd.xlane.f32.xlu0 %v1046
    %v1048 = vpop.xlane.xlu0 %1047
    %v1049 = vsel %vm166, %v1039, 0.0
    %1050 = vadd.xlane.f32.xlu0 %v1049
    %v1051 = vpop.xlane.xlu0 %1050
    %v1052 = vsel %vm166, %v1040, 0.0
    %1053 = vadd.xlane.f32.xlu0 %v1052
    %v1054 = vpop.xlane.xlu0 %1053
    %v1055 = vsel %vm166, %v1041, 0.0
    %1056 = vadd.xlane.f32.xlu0 %v1055
    %v1057 = vpop.xlane.xlu0 %1056
    %v1058 = vsel %vm166, %v1042, 0.0
    %1059 = vadd.xlane.f32.xlu0 %v1058
    %v1060 = vpop.xlane.xlu0 %1059
    %v1061 = vmul.f32 %v1045, %v191
    %v1062 = vmul.f32 %v1048, %v191
    %v1063 = vmul.f32 %v1051, %v191
    %v1064 = vmul.f32 %v1054, %v191
    %v1065 = vmul.f32 %v1057, %v191
    %v1066 = vmul.f32 %v1060, %v191
    %v1067 = vadd.f32 %v1061, 1e-06
    %v1068 = vadd.f32 %v1062, 1e-06
    %v1069 = vadd.f32 %v1063, 1e-06
    %v1070 = vadd.f32 %v1064, 1e-06
    %v1071 = vadd.f32 %v1065, 1e-06
    %v1072 = vadd.f32 %v1066, 1e-06
    %v1073 = vrsqrt.pop %v1067
    %v1074 = vmul.f32 %v1073, %v1067
    %v1075 = vmul.f32 %v1074, %v1073
    %v1076 = vmul.f32 0.5, %v1075
    %v1077 = vsub.f32 1.5, %v1076
    %v1078 = vmul.f32 %v1073, %v1077
    %vm1079 = vweird.f32 %v1067
    %vm1080 = vweird.f32 %v1073
    %vm1081 = vmor %vm1079, %vm1080
    %v1082 = vsel %vm1081, %v1073, %v1078
    %v1083 = vrsqrt.pop %v1068
    %v1084 = vmul.f32 %v1083, %v1068
    %v1085 = vmul.f32 %v1084, %v1083
    %v1086 = vmul.f32 0.5, %v1085
    %v1087 = vsub.f32 1.5, %v1086
    %v1088 = vmul.f32 %v1083, %v1087
    %vm1089 = vweird.f32 %v1068
    %vm1090 = vweird.f32 %v1083
    %vm1091 = vmor %vm1089, %vm1090
    %v1092 = vsel %vm1091, %v1083, %v1088
    %v1093 = vrsqrt.pop %v1069
    %v1094 = vmul.f32 %v1093, %v1069
    %v1095 = vmul.f32 %v1094, %v1093
    %v1096 = vmul.f32 0.5, %v1095
    %v1097 = vsub.f32 1.5, %v1096
    %v1098 = vmul.f32 %v1093, %v1097
    %vm1099 = vweird.f32 %v1069
    %vm1100 = vweird.f32 %v1093
    %vm1101 = vmor %vm1099, %vm1100
    %v1102 = vsel %vm1101, %v1093, %v1098
    %v1103 = vrsqrt.pop %v1070
    %v1104 = vmul.f32 %v1103, %v1070
    %v1105 = vmul.f32 %v1104, %v1103
    %v1106 = vmul.f32 0.5, %v1105
    %v1107 = vsub.f32 1.5, %v1106
    %v1108 = vmul.f32 %v1103, %v1107
    %vm1109 = vweird.f32 %v1070
    %vm1110 = vweird.f32 %v1103
    %vm1111 = vmor %vm1109, %vm1110
    %v1112 = vsel %vm1111, %v1103, %v1108
    %v1113 = vrsqrt.pop %v1071
    %v1114 = vmul.f32 %v1113, %v1071
    %v1115 = vmul.f32 %v1114, %v1113
    %v1116 = vmul.f32 0.5, %v1115
    %v1117 = vsub.f32 1.5, %v1116
    %v1118 = vmul.f32 %v1113, %v1117
    %vm1119 = vweird.f32 %v1071
    %vm1120 = vweird.f32 %v1113
    %vm1121 = vmor %vm1119, %vm1120
    %v1122 = vsel %vm1121, %v1113, %v1118
    %v1123 = vrsqrt.pop %v1072
    %v1124 = vmul.f32 %v1123, %v1072
    %v1125 = vmul.f32 %v1124, %v1123
    %v1126 = vmul.f32 0.5, %v1125
    %v1127 = vsub.f32 1.5, %v1126
    %v1128 = vmul.f32 %v1123, %v1127
    %vm1129 = vweird.f32 %v1072
    %vm1130 = vweird.f32 %v1123
    %vm1131 = vmor %vm1129, %vm1130
    %v1132 = vsel %vm1131, %v1123, %v1128
    %v1133 = vmul.f32 %v1031, %v1082
    %v1134 = vmul.f32 %v1032, %v1092
    %v1135 = vmul.f32 %v1033, %v1102
    %v1136 = vmul.f32 %v1034, %v1112
    %v1137 = vmul.f32 %v1035, %v1122
    %v1138 = vmul.f32 %v1036, %v1132
    %v1140 = vperm.slane %v1005, 0
    %v1142 = vmul.f32 %v1133, %v1140
    %v1143 = vmul.f32 %v1134, %v1140
    %v1144 = vmul.f32 %v1135, %v1140
    %v1145 = vmul.f32 %v1136, %v1140
    %v1146 = vmul.f32 %v1137, %v1140
    %v1147 = vmul.f32 %v1138, %v1140
    %v1149 = vperm.slane %v1006, 0
    %v1151 = vadd.f32 %v1142, %v1149
    %v1152 = vadd.f32 %v1143, %v1149
    %v1153 = vadd.f32 %v1144, %v1149
    %v1154 = vadd.f32 %v1145, %v1149
    %v1155 = vadd.f32 %v1146, %v1149
    %v1156 = vadd.f32 %v1147, %v1149
    %v1157 = vpack.c.bf16 %v1152, %v1151
    %v1158 = vpack.c.bf16 %v1154, %v1153
    %v1159 = vpack.c.bf16 %v1156, %v1155
    %v1160 = vld [vmem:[%s15] sm:$0xf]
    %v1161 = vld [vmem:[%s15 + $0x4] sm:$0xf]
    %v1162 = vld [vmem:[%s15 + $0x8] sm:$0xf]
    %v1163 = vld [vmem:[%s15 + $0xc] sm:$0xf]
    %v1164 = vld [vmem:[%s16] sm:$0x1]
    %v1166 = vperm.slane %v1164, 0
    %v1172 = vunpack.c.l.b16 %v1160
    %v1173 = vunpack.c.l.b16 %v1161
    %v1174 = vunpack.c.l.b16 %v1162
    %v1175 = vunpack.c.l.b16 %v1163
    %v1176 = vpack.c.b16 %v1173, %v1172
    %v1177 = vpack.c.b16 %v1175, %v1174
    %v1181 = vsel %vm166, %v1157, 0
    %v1184 = vsel %vm166, %v1158, 0
    %v1187 = vsel %vm166, %v1159, 0
    %1189 = vmatpush.bf16.msra.mxu0 0
    %1190 = vmatpush.bf16.msra.mxu0 0
    %1191 = vmatpush.bf16.msra.mxu0 0
    %1192 = vmatpush.bf16.msra.mxu0 0
    %1193 = vmatpush.bf16.msra.mxu0 0
    %1194 = vmatpush.bf16.msra.mxu0 0
    %1195 = vmatpush.bf16.msra.mxu0 %v1177
    %1196 = vmatpush.bf16.msra.mxu0 %v1176
    %1197 = vmatmul.bf16.gmra.mxu0 %v1181
    %v1198 = vpop.f32.mrf.mxu0
    %v1199 = vadd.f32 %v1166, %v1198
    %v1200 = vpop.f32.mrf.mxu0
    %v1201 = vadd.f32 %v1166, %v1200
    %1202 = vmatmul.bf16.gmra.mxu0 %v1184
    %v1203 = vpop.f32.mrf.mxu0
    %v1204 = vadd.f32 %v1166, %v1203
    %v1205 = vpop.f32.mrf.mxu0
    %v1206 = vadd.f32 %v1166, %v1205
    %1207 = vmatmul.bf16.gmra.mxu0 %v1187
    %v1208 = vpop.f32.mrf.mxu0
    %v1209 = vadd.f32 %v1166, %v1208
    %v1210 = vpop.f32.mrf.mxu0
    %v1211 = vadd.f32 %v1166, %v1210
    %1212 = vdwg.mxu0
    %v1213 = vmul.f32 %v1199, 0.5
    %v1214 = vmul.f32 %v1201, 0.5
    %v1215 = vmul.f32 %v1204, 0.5
    %v1216 = vmul.f32 %v1206, 0.5
    %v1217 = vmul.f32 %v1209, 0.5
    %v1218 = vmul.f32 %v1211, 0.5
    %v1219 = vmul.f32 %v1199, 0.70710677
    %v1220 = vmul.f32 %v1201, 0.70710677
    %v1221 = vmul.f32 %v1204, 0.70710677
    %v1222 = vmul.f32 %v1206, 0.70710677
    %v1223 = vmul.f32 %v1209, 0.70710677
    %v1224 = vmul.f32 %v1211, 0.70710677
    %vm1225 = vcmp.ge.f32.partialorder %v1219, 0.0
    %vm1226 = vcmp.ge.f32.partialorder %v1220, 0.0
    %vm1227 = vcmp.ge.f32.partialorder %v1221, 0.0
    %vm1228 = vcmp.ge.f32.partialorder %v1222, 0.0
    %vm1229 = vcmp.ge.f32.partialorder %v1223, 0.0
    %vm1230 = vcmp.ge.f32.partialorder %v1224, 0.0
    %v1231 = vsel %vm1225, 1.0, -1.0
    %v1232 = vsel %vm1226, 1.0, -1.0
    %v1233 = vsel %vm1227, 1.0, -1.0
    %v1234 = vsel %vm1228, 1.0, -1.0
    %v1235 = vsel %vm1229, 1.0, -1.0
    %v1236 = vsel %vm1230, 1.0, -1.0
    %v1237 = vand.u32 2147483647, %v1219
    %v1238 = vand.u32 2147483647, %v1220
    %v1239 = vand.u32 2147483647, %v1221
    %v1240 = vand.u32 2147483647, %v1222
    %v1241 = vand.u32 2147483647, %v1223
    %v1242 = vand.u32 2147483647, %v1224
    %v1243 = vmul.f32 %v1237, 0.3275911
    %v1244 = vmul.f32 %v1238, 0.3275911
    %v1245 = vmul.f32 %v1239, 0.3275911
    %v1246 = vmul.f32 %v1240, 0.3275911
    %v1247 = vmul.f32 %v1241, 0.3275911
    %v1248 = vmul.f32 %v1242, 0.3275911
    %v1249 = vadd.f32 %v1243, 1.0
    %v1250 = vadd.f32 %v1244, 1.0
    %v1251 = vadd.f32 %v1245, 1.0
    %v1252 = vadd.f32 %v1246, 1.0
    %v1253 = vadd.f32 %v1247, 1.0
    %v1254 = vadd.f32 %v1248, 1.0
    %v1255 = vrcp.pop %v1249
    %v1256 = vmul.f32 %v1249, %v1255
    %v1257 = vsub.f32 1.0, %v1256
    %v1258 = vmul.f32 %v1255, %v1257
    %v1259 = vadd.f32 %v1255, %v1258
    %vm1260 = vweird.f32 %v1249
    %vm1261 = vweird.f32 %v1255
    %vm1262 = vmor %vm1260, %vm1261
    %v1263 = vsel %vm1262, %v1255, %v1259
    %v1264 = vand.u32 2147483647, %v1249
    %vm1265 = vcmp.eq.f32.partialorder %v1264, 8.507059e+37
    %v1266 = vand.u32 %v1249, 2147483648
    %v1267 = vor.u32 1.1754944e-38, %v1266
    %v1268 = vsel %vm1265, %v1267, %v1263
    %v1269 = vmul.f32 1.0, %v1268
    %v1270 = vrcp.pop %v1250
    %v1271 = vmul.f32 %v1250, %v1270
    %v1272 = vsub.f32 1.0, %v1271
    %v1273 = vmul.f32 %v1270, %v1272
    %v1274 = vadd.f32 %v1270, %v1273
    %vm1275 = vweird.f32 %v1250
    %vm1276 = vweird.f32 %v1270
    %vm1277 = vmor %vm1275, %vm1276
    %v1278 = vsel %vm1277, %v1270, %v1274
    %v1279 = vand.u32 2147483647, %v1250
    %vm1280 = vcmp.eq.f32.partialorder %v1279, 8.507059e+37
    %v1281 = vand.u32 %v1250, 2147483648
    %v1282 = vor.u32 1.1754944e-38, %v1281
    %v1283 = vsel %vm1280, %v1282, %v1278
    %v1284 = vmul.f32 1.0, %v1283
    %v1285 = vrcp.pop %v1251
    %v1286 = vmul.f32 %v1251, %v1285
    %v1287 = vsub.f32 1.0, %v1286
    %v1288 = vmul.f32 %v1285, %v1287
    %v1289 = vadd.f32 %v1285, %v1288
    %vm1290 = vweird.f32 %v1251
    %vm1291 = vweird.f32 %v1285
    %vm1292 = vmor %vm1290, %vm1291
    %v1293 = vsel %vm1292, %v1285, %v1289
    %v1294 = vand.u32 2147483647, %v1251
    %vm1295 = vcmp.eq.f32.partialorder %v1294, 8.507059e+37
    %v1296 = vand.u32 %v1251, 2147483648
    %v1297 = vor.u32 1.1754944e-38, %v1296
    %v1298 = vsel %vm1295, %v1297, %v1293
    %v1299 = vmul.f32 1.0, %v1298
    %v1300 = vrcp.pop %v1252
    %v1301 = vmul.f32 %v1252, %v1300
    %v1302 = vsub.f32 1.0, %v1301
    %v1303 = vmul.f32 %v1300, %v1302
    %v1304 = vadd.f32 %v1300, %v1303
    %vm1305 = vweird.f32 %v1252
    %vm1306 = vweird.f32 %v1300
    %vm1307 = vmor %vm1305, %vm1306
    %v1308 = vsel %vm1307, %v1300, %v1304
    %v1309 = vand.u32 2147483647, %v1252
    %vm1310 = vcmp.eq.f32.partialorder %v1309, 8.507059e+37
    %v1311 = vand.u32 %v1252, 2147483648
    %v1312 = vor.u32 1.1754944e-38, %v1311
    %v1313 = vsel %vm1310, %v1312, %v1308
    %v1314 = vmul.f32 1.0, %v1313
    %v1315 = vrcp.pop %v1253
    %v1316 = vmul.f32 %v1253, %v1315
    %v1317 = vsub.f32 1.0, %v1316
    %v1318 = vmul.f32 %v1315, %v1317
    %v1319 = vadd.f32 %v1315, %v1318
    %vm1320 = vweird.f32 %v1253
    %vm1321 = vweird.f32 %v1315
    %vm1322 = vmor %vm1320, %vm1321
    %v1323 = vsel %vm1322, %v1315, %v1319
    %v1324 = vand.u32 2147483647, %v1253
    %vm1325 = vcmp.eq.f32.partialorder %v1324, 8.507059e+37
    %v1326 = vand.u32 %v1253, 2147483648
    %v1327 = vor.u32 1.1754944e-38, %v1326
    %v1328 = vsel %vm1325, %v1327, %v1323
    %v1329 = vmul.f32 1.0, %v1328
    %v1330 = vrcp.pop %v1254
    %v1331 = vmul.f32 %v1254, %v1330
    %v1332 = vsub.f32 1.0, %v1331
    %v1333 = vmul.f32 %v1330, %v1332
    %v1334 = vadd.f32 %v1330, %v1333
    %vm1335 = vweird.f32 %v1254
    %vm1336 = vweird.f32 %v1330
    %vm1337 = vmor %vm1335, %vm1336
    %v1338 = vsel %vm1337, %v1330, %v1334
    %v1339 = vand.u32 2147483647, %v1254
    %vm1340 = vcmp.eq.f32.partialorder %v1339, 8.507059e+37
    %v1341 = vand.u32 %v1254, 2147483648
    %v1342 = vor.u32 1.1754944e-38, %v1341
    %v1343 = vsel %vm1340, %v1342, %v1338
    %v1344 = vmul.f32 1.0, %v1343
    %v1345 = vmul.f32 %v1269, 1.0614054
    %v1346 = vmul.f32 %v1284, 1.0614054
    %v1347 = vmul.f32 %v1299, 1.0614054
    %v1348 = vmul.f32 %v1314, 1.0614054
    %v1349 = vmul.f32 %v1329, 1.0614054
    %v1350 = vmul.f32 %v1344, 1.0614054
    %v1351 = vadd.f32 %v1345, -1.4531521
    %v1352 = vadd.f32 %v1346, -1.4531521
    %v1353 = vadd.f32 %v1347, -1.4531521
    %v1354 = vadd.f32 %v1348, -1.4531521
    %v1355 = vadd.f32 %v1349, -1.4531521
    %v1356 = vadd.f32 %v1350, -1.4531521
    %v1357 = vmul.f32 %v1269, %v1351
    %v1358 = vmul.f32 %v1284, %v1352
    %v1359 = vmul.f32 %v1299, %v1353
    %v1360 = vmul.f32 %v1314, %v1354
    %v1361 = vmul.f32 %v1329, %v1355
    %v1362 = vmul.f32 %v1344, %v1356
    %v1363 = vadd.f32 %v1357, 1.4214138
    %v1364 = vadd.f32 %v1358, 1.4214138
    %v1365 = vadd.f32 %v1359, 1.4214138
    %v1366 = vadd.f32 %v1360, 1.4214138
    %v1367 = vadd.f32 %v1361, 1.4214138
    %v1368 = vadd.f32 %v1362, 1.4214138
    %v1369 = vmul.f32 %v1269, %v1363
    %v1370 = vmul.f32 %v1284, %v1364
    %v1371 = vmul.f32 %v1299, %v1365
    %v1372 = vmul.f32 %v1314, %v1366
    %v1373 = vmul.f32 %v1329, %v1367
    %v1374 = vmul.f32 %v1344, %v1368
    %v1375 = vadd.f32 %v1369, -0.28449672
    %v1376 = vadd.f32 %v1370, -0.28449672
    %v1377 = vadd.f32 %v1371, -0.28449672
    %v1378 = vadd.f32 %v1372, -0.28449672
    %v1379 = vadd.f32 %v1373, -0.28449672
    %v1380 = vadd.f32 %v1374, -0.28449672
    %v1381 = vmul.f32 %v1269, %v1375
    %v1382 = vmul.f32 %v1284, %v1376
    %v1383 = vmul.f32 %v1299, %v1377
    %v1384 = vmul.f32 %v1314, %v1378
    %v1385 = vmul.f32 %v1329, %v1379
    %v1386 = vmul.f32 %v1344, %v1380
    %v1387 = vadd.f32 %v1381, 0.2548296
    %v1388 = vadd.f32 %v1382, 0.2548296
    %v1389 = vadd.f32 %v1383, 0.2548296
    %v1390 = vadd.f32 %v1384, 0.2548296
    %v1391 = vadd.f32 %v1385, 0.2548296
    %v1392 = vadd.f32 %v1386, 0.2548296
    %v1393 = vmul.f32 %v1269, %v1387
    %v1394 = vmul.f32 %v1284, %v1388
    %v1395 = vmul.f32 %v1299, %v1389
    %v1396 = vmul.f32 %v1314, %v1390
    %v1397 = vmul.f32 %v1329, %v1391
    %v1398 = vmul.f32 %v1344, %v1392
    %v1399 = vsub.f32 0.0, %v1237
    %v1400 = vsub.f32 0.0, %v1238
    %v1401 = vsub.f32 0.0, %v1239
    %v1402 = vsub.f32 0.0, %v1240
    %v1403 = vsub.f32 0.0, %v1241
    %v1404 = vsub.f32 0.0, %v1242
    %v1405 = vmul.f32 %v1399, %v1237
    %v1406 = vmul.f32 %v1400, %v1238
    %v1407 = vmul.f32 %v1401, %v1239
    %v1408 = vmul.f32 %v1402, %v1240
    %v1409 = vmul.f32 %v1403, %v1241
    %v1410 = vmul.f32 %v1404, %v1242
    %v1411 = vmul.f32 %v1405, 1.442695
    %v1412 = vpow.pop %v1411
    %v1413 = vmul.f32 %v1406, 1.442695
    %v1414 = vpow.pop %v1413
    %v1415 = vmul.f32 %v1407, 1.442695
    %v1416 = vpow.pop %v1415
    %v1417 = vmul.f32 %v1408, 1.442695
    %v1418 = vpow.pop %v1417
    %v1419 = vmul.f32 %v1409, 1.442695
    %v1420 = vpow.pop %v1419
    %v1421 = vmul.f32 %v1410, 1.442695
    %v1422 = vpow.pop %v1421
    %v1423 = vmul.f32 %v1393, %v1412
    %v1424 = vmul.f32 %v1394, %v1414
    %v1425 = vmul.f32 %v1395, %v1416
    %v1426 = vmul.f32 %v1396, %v1418
    %v1427 = vmul.f32 %v1397, %v1420
    %v1428 = vmul.f32 %v1398, %v1422
    %v1429 = vsub.f32 1.0, %v1423
    %v1430 = vsub.f32 1.0, %v1424
    %v1431 = vsub.f32 1.0, %v1425
    %v1432 = vsub.f32 1.0, %v1426
    %v1433 = vsub.f32 1.0, %v1427
    %v1434 = vsub.f32 1.0, %v1428
    %v1435 = vmul.f32 %v1231, %v1429
    %v1436 = vmul.f32 %v1232, %v1430
    %v1437 = vmul.f32 %v1233, %v1431
    %v1438 = vmul.f32 %v1234, %v1432
    %v1439 = vmul.f32 %v1235, %v1433
    %v1440 = vmul.f32 %v1236, %v1434
    %v1441 = vadd.f32 %v1435, 1.0
    %v1442 = vadd.f32 %v1436, 1.0
    %v1443 = vadd.f32 %v1437, 1.0
    %v1444 = vadd.f32 %v1438, 1.0
    %v1445 = vadd.f32 %v1439, 1.0
    %v1446 = vadd.f32 %v1440, 1.0
    %v1447 = vmul.f32 %v1213, %v1441
    %v1448 = vmul.f32 %v1214, %v1442
    %v1449 = vmul.f32 %v1215, %v1443
    %v1450 = vmul.f32 %v1216, %v1444
    %v1451 = vmul.f32 %v1217, %v1445
    %v1452 = vmul.f32 %v1218, %v1446
    %v1453 = vpack.c.bf16 %v1448, %v1447
    %v1454 = vpack.c.bf16 %v1450, %v1449
    %v1455 = vpack.c.bf16 %v1452, %v1451
    %v1456 = vld [vmem:[%s17] sm:$0xf]
    %v1457 = vld [vmem:[%s17 + $0x4] sm:$0xf]
    %v1458 = vld [vmem:[%s17 + $0x8] sm:$0xf]
    %v1459 = vld [vmem:[%s17 + $0xc] sm:$0xf]
    %v1460 = vld [vmem:[%s17 + $0x10] sm:$0xf]
    %v1461 = vld [vmem:[%s17 + $0x14] sm:$0xf]
    %v1462 = vld [vmem:[%s17 + $0x18] sm:$0xf]
    %v1463 = vld [vmem:[%s17 + $0x1c] sm:$0xf]
    %v1464 = vld [vmem:[%s17 + $0x20] sm:$0xf]
    %v1465 = vld [vmem:[%s17 + $0x24] sm:$0xf]
    %v1466 = vld [vmem:[%s17 + $0x28] sm:$0xf]
    %v1467 = vld [vmem:[%s17 + $0x2c] sm:$0xf]
    %v1468 = vld [vmem:[%s17 + $0x30] sm:$0xf]
    %v1469 = vld [vmem:[%s17 + $0x34] sm:$0xf]
    %v1470 = vld [vmem:[%s17 + $0x38] sm:$0xf]
    %v1471 = vld [vmem:[%s17 + $0x3c] sm:$0xf]
    %v1472 = vld [vmem:[%s18] sm:$0x1]
    %v1474 = vperm.slane %v1472, 0
    %v1492 = vunpack.c.l.b16 %v1456
    %v1493 = vunpack.c.l.b16 %v1457
    %v1494 = vunpack.c.l.b16 %v1458
    %v1495 = vunpack.c.l.b16 %v1459
    %v1496 = vunpack.c.l.b16 %v1460
    %v1497 = vunpack.c.l.b16 %v1461
    %v1498 = vunpack.c.l.b16 %v1462
    %v1499 = vunpack.c.l.b16 %v1463
    %v1500 = vunpack.c.l.b16 %v1464
    %v1501 = vunpack.c.l.b16 %v1465
    %v1502 = vunpack.c.l.b16 %v1466
    %v1503 = vunpack.c.l.b16 %v1467
    %v1504 = vunpack.c.l.b16 %v1468
    %v1505 = vunpack.c.l.b16 %v1469
    %v1506 = vunpack.c.l.b16 %v1470
    %v1507 = vunpack.c.l.b16 %v1471
    %v1508 = vpack.c.b16 %v1493, %v1492
    %v1509 = vpack.c.b16 %v1495, %v1494
    %v1510 = vpack.c.b16 %v1497, %v1496
    %v1511 = vpack.c.b16 %v1499, %v1498
    %v1512 = vpack.c.b16 %v1501, %v1500
    %v1513 = vpack.c.b16 %v1503, %v1502
    %v1514 = vpack.c.b16 %v1505, %v1504
    %v1515 = vpack.c.b16 %v1507, %v1506
    %1524 = vmatpush.bf16.msra.mxu0 %v1515
    %1525 = vmatpush.bf16.msra.mxu0 %v1514
    %1526 = vmatpush.bf16.msra.mxu0 %v1513
    %1527 = vmatpush.bf16.msra.mxu0 %v1512
    %1528 = vmatpush.bf16.msra.mxu0 %v1511
    %1529 = vmatpush.bf16.msra.mxu0 %v1510
    %1530 = vmatpush.bf16.msra.mxu0 %v1509
    %1531 = vmatpush.bf16.msra.mxu0 %v1508
    %1532 = vmatmul.bf16.gmra.mxu0 %v1453
    %v1533 = vpop.f32.mrf.mxu0
    %v1534 = vadd.f32 %v1474, %v1533
    %v1535 = vpop.f32.mrf.mxu0
    %v1536 = vadd.f32 %v1474, %v1535
    %1537 = vmatmul.bf16.gmra.mxu0 %v1454
    %v1538 = vpop.f32.mrf.mxu0
    %v1539 = vadd.f32 %v1474, %v1538
    %v1540 = vpop.f32.mrf.mxu0
    %v1541 = vadd.f32 %v1474, %v1540
    %1542 = vmatmul.bf16.gmra.mxu0 %v1455
    %v1543 = vpop.f32.mrf.mxu0
    %v1544 = vadd.f32 %v1474, %v1543
    %v1545 = vpop.f32.mrf.mxu0
    %v1546 = vadd.f32 %v1474, %v1545
    %1547 = vdwg.mxu0
    %v1548 = vld [vmem:[%s19] sm:$0x1]
    %v1550 = vperm.slane %v1548, 0
    %v1552 = vmul.f32 %v1550, %v1534
    %v1553 = vmul.f32 %v1550, %v1536
    %v1554 = vmul.f32 %v1550, %v1539
    %v1555 = vmul.f32 %v1550, %v1541
    %v1556 = vmul.f32 %v1550, %v1544
    %v1557 = vmul.f32 %v1550, %v1546
    %v1558 = vadd.f32 %v999, %v1552
    %v1559 = vadd.f32 %v1000, %v1553
    %v1560 = vadd.f32 %v1001, %v1554
    %v1561 = vadd.f32 %v1002, %v1555
    %v1562 = vadd.f32 %v1003, %v1556
    %v1563 = vadd.f32 %v1004, %v1557
    %s1564 = scalar_lea.vmem %s6, 1
    %v1565 = vld [vmem:[%s1564] sm:$0x1]
    %s1566 = scalar_lea.vmem %s7, 1
    %v1567 = vld [vmem:[%s1566] sm:$0x1]
    %v1568 = vsel %vm166, %v1558, 0.0
    %1569 = vadd.xlane.f32.xlu0 %v1568
    %v1570 = vpop.xlane.xlu0 %1569
    %v1571 = vsel %vm166, %v1559, 0.0
    %1572 = vadd.xlane.f32.xlu0 %v1571
    %v1573 = vpop.xlane.xlu0 %1572
    %v1574 = vsel %vm166, %v1560, 0.0
    %1575 = vadd.xlane.f32.xlu0 %v1574
    %v1576 = vpop.xlane.xlu0 %1575
    %v1577 = vsel %vm166, %v1561, 0.0
    %1578 = vadd.xlane.f32.xlu0 %v1577
    %v1579 = vpop.xlane.xlu0 %1578
    %v1580 = vsel %vm166, %v1562, 0.0
    %1581 = vadd.xlane.f32.xlu0 %v1580
    %v1582 = vpop.xlane.xlu0 %1581
    %v1583 = vsel %vm166, %v1563, 0.0
    %1584 = vadd.xlane.f32.xlu0 %v1583
    %v1585 = vpop.xlane.xlu0 %1584
    %v1586 = vmul.f32 %v1570, %v191
    %v1587 = vmul.f32 %v1573, %v191
    %v1588 = vmul.f32 %v1576, %v191
    %v1589 = vmul.f32 %v1579, %v191
    %v1590 = vmul.f32 %v1582, %v191
    %v1591 = vmul.f32 %v1585, %v191
    %v1592 = vsub.f32 %v1558, %v1586
    %v1593 = vsub.f32 %v1559, %v1587
    %v1594 = vsub.f32 %v1560, %v1588
    %v1595 = vsub.f32 %v1561, %v1589
    %v1596 = vsub.f32 %v1562, %v1590
    %v1597 = vsub.f32 %v1563, %v1591
    %v1598 = vmul.f32 %v1592, %v1592
    %v1599 = vmul.f32 %v1593, %v1593
    %v1600 = vmul.f32 %v1594, %v1594
    %v1601 = vmul.f32 %v1595, %v1595
    %v1602 = vmul.f32 %v1596, %v1596
    %v1603 = vmul.f32 %v1597, %v1597
    %v1604 = vsel %vm166, %v1598, 0.0
    %1605 = vadd.xlane.f32.xlu0 %v1604
    %v1606 = vpop.xlane.xlu0 %1605
    %v1607 = vsel %vm166, %v1599, 0.0
    %1608 = vadd.xlane.f32.xlu0 %v1607
    %v1609 = vpop.xlane.xlu0 %1608
    %v1610 = vsel %vm166, %v1600, 0.0
    %1611 = vadd.xlane.f32.xlu0 %v1610
    %v1612 = vpop.xlane.xlu0 %1611
    %v1613 = vsel %vm166, %v1601, 0.0
    %1614 = vadd.xlane.f32.xlu0 %v1613
    %v1615 = vpop.xlane.xlu0 %1614
    %v1616 = vsel %vm166, %v1602, 0.0
    %1617 = vadd.xlane.f32.xlu0 %v1616
    %v1618 = vpop.xlane.xlu0 %1617
    %v1619 = vsel %vm166, %v1603, 0.0
    %1620 = vadd.xlane.f32.xlu0 %v1619
    %v1621 = vpop.xlane.xlu0 %1620
    %v1622 = vmul.f32 %v1606, %v191
    %v1623 = vmul.f32 %v1609, %v191
    %v1624 = vmul.f32 %v1612, %v191
    %v1625 = vmul.f32 %v1615, %v191
    %v1626 = vmul.f32 %v1618, %v191
    %v1627 = vmul.f32 %v1621, %v191
    %v1628 = vadd.f32 %v1622, 1e-06
    %v1629 = vadd.f32 %v1623, 1e-06
    %v1630 = vadd.f32 %v1624, 1e-06
    %v1631 = vadd.f32 %v1625, 1e-06
    %v1632 = vadd.f32 %v1626, 1e-06
    %v1633 = vadd.f32 %v1627, 1e-06
    %v1634 = vrsqrt.pop %v1628
    %v1635 = vmul.f32 %v1634, %v1628
    %v1636 = vmul.f32 %v1635, %v1634
    %v1637 = vmul.f32 0.5, %v1636
    %v1638 = vsub.f32 1.5, %v1637
    %v1639 = vmul.f32 %v1634, %v1638
    %vm1640 = vweird.f32 %v1628
    %vm1641 = vweird.f32 %v1634
    %vm1642 = vmor %vm1640, %vm1641
    %v1643 = vsel %vm1642, %v1634, %v1639
    %v1644 = vrsqrt.pop %v1629
    %v1645 = vmul.f32 %v1644, %v1629
    %v1646 = vmul.f32 %v1645, %v1644
    %v1647 = vmul.f32 0.5, %v1646
    %v1648 = vsub.f32 1.5, %v1647
    %v1649 = vmul.f32 %v1644, %v1648
    %vm1650 = vweird.f32 %v1629
    %vm1651 = vweird.f32 %v1644
    %vm1652 = vmor %vm1650, %vm1651
    %v1653 = vsel %vm1652, %v1644, %v1649
    %v1654 = vrsqrt.pop %v1630
    %v1655 = vmul.f32 %v1654, %v1630
    %v1656 = vmul.f32 %v1655, %v1654
    %v1657 = vmul.f32 0.5, %v1656
    %v1658 = vsub.f32 1.5, %v1657
    %v1659 = vmul.f32 %v1654, %v1658
    %vm1660 = vweird.f32 %v1630
    %vm1661 = vweird.f32 %v1654
    %vm1662 = vmor %vm1660, %vm1661
    %v1663 = vsel %vm1662, %v1654, %v1659
    %v1664 = vrsqrt.pop %v1631
    %v1665 = vmul.f32 %v1664, %v1631
    %v1666 = vmul.f32 %v1665, %v1664
    %v1667 = vmul.f32 0.5, %v1666
    %v1668 = vsub.f32 1.5, %v1667
    %v1669 = vmul.f32 %v1664, %v1668
    %vm1670 = vweird.f32 %v1631
    %vm1671 = vweird.f32 %v1664
    %vm1672 = vmor %vm1670, %vm1671
    %v1673 = vsel %vm1672, %v1664, %v1669
    %v1674 = vrsqrt.pop %v1632
    %v1675 = vmul.f32 %v1674, %v1632
    %v1676 = vmul.f32 %v1675, %v1674
    %v1677 = vmul.f32 0.5, %v1676
    %v1678 = vsub.f32 1.5, %v1677
    %v1679 = vmul.f32 %v1674, %v1678
    %vm1680 = vweird.f32 %v1632
    %vm1681 = vweird.f32 %v1674
    %vm1682 = vmor %vm1680, %vm1681
    %v1683 = vsel %vm1682, %v1674, %v1679
    %v1684 = vrsqrt.pop %v1633
    %v1685 = vmul.f32 %v1684, %v1633
    %v1686 = vmul.f32 %v1685, %v1684
    %v1687 = vmul.f32 0.5, %v1686
    %v1688 = vsub.f32 1.5, %v1687
    %v1689 = vmul.f32 %v1684, %v1688
    %vm1690 = vweird.f32 %v1633
    %vm1691 = vweird.f32 %v1684
    %vm1692 = vmor %vm1690, %vm1691
    %v1693 = vsel %vm1692, %v1684, %v1689
    %v1694 = vmul.f32 %v1592, %v1643
    %v1695 = vmul.f32 %v1593, %v1653
    %v1696 = vmul.f32 %v1594, %v1663
    %v1697 = vmul.f32 %v1595, %v1673
    %v1698 = vmul.f32 %v1596, %v1683
    %v1699 = vmul.f32 %v1597, %v1693
    %v1701 = vperm.slane %v1565, 0
    %v1703 = vmul.f32 %v1694, %v1701
    %v1704 = vmul.f32 %v1695, %v1701
    %v1705 = vmul.f32 %v1696, %v1701
    %v1706 = vmul.f32 %v1697, %v1701
    %v1707 = vmul.f32 %v1698, %v1701
    %v1708 = vmul.f32 %v1699, %v1701
    %v1710 = vperm.slane %v1567, 0
    %v1712 = vadd.f32 %v1703, %v1710
    %v1713 = vadd.f32 %v1704, %v1710
    %v1714 = vadd.f32 %v1705, %v1710
    %v1715 = vadd.f32 %v1706, %v1710
    %v1716 = vadd.f32 %v1707, %v1710
    %v1717 = vadd.f32 %v1708, %v1710
    %v1718 = vpack.c.bf16 %v1713, %v1712
    %v1719 = vpack.c.bf16 %v1715, %v1714
    %v1720 = vpack.c.bf16 %v1717, %v1716
    %s1721 = scalar_lea.vmem %s8, 16
    %v1722 = vld [vmem:[%s1721] sm:$0xf]
    %v1723 = vld [vmem:[%s1721 + $0x4] sm:$0xf]
    %v1724 = vld [vmem:[%s1721 + $0x8] sm:$0xf]
    %v1725 = vld [vmem:[%s1721 + $0xc] sm:$0xf]
    %s1726 = scalar_lea.vmem %s9, 1
    %v1727 = vld [vmem:[%s1726] sm:$0x1]
    %v1729 = vperm.slane %v1727, 0
    %v1735 = vunpack.c.l.b16 %v1722
    %v1736 = vunpack.c.l.b16 %v1723
    %v1737 = vunpack.c.l.b16 %v1724
    %v1738 = vunpack.c.l.b16 %v1725
    %v1739 = vpack.c.b16 %v1736, %v1735
    %v1740 = vpack.c.b16 %v1738, %v1737
    %v1744 = vsel %vm166, %v1718, 0
    %v1747 = vsel %vm166, %v1719, 0
    %v1750 = vsel %vm166, %v1720, 0
    %1752 = vmatpush.bf16.msra.mxu0 0
    %1753 = vmatpush.bf16.msra.mxu0 0
    %1754 = vmatpush.bf16.msra.mxu0 0
    %1755 = vmatpush.bf16.msra.mxu0 0
    %1756 = vmatpush.bf16.msra.mxu0 0
    %1757 = vmatpush.bf16.msra.mxu0 0
    %1758 = vmatpush.bf16.msra.mxu0 %v1740
    %1759 = vmatpush.bf16.msra.mxu0 %v1739
    %1760 = vmatmul.bf16.gmra.mxu0 %v1744
    %v1761 = vpop.f32.mrf.mxu0
    %v1762 = vadd.f32 %v1729, %v1761
    %v1763 = vpop.f32.mrf.mxu0
    %v1764 = vadd.f32 %v1729, %v1763
    %1765 = vmatmul.bf16.gmra.mxu0 %v1747
    %v1766 = vpop.f32.mrf.mxu0
    %v1767 = vadd.f32 %v1729, %v1766
    %v1768 = vpop.f32.mrf.mxu0
    %v1769 = vadd.f32 %v1729, %v1768
    %1770 = vmatmul.bf16.gmra.mxu0 %v1750
    %v1771 = vpop.f32.mrf.mxu0
    %v1772 = vadd.f32 %v1729, %v1771
    %v1773 = vpop.f32.mrf.mxu0
    %v1774 = vadd.f32 %v1729, %v1773
    %1775 = vdwg.mxu0
    %s1776 = scalar_lea.vmem %s10, 16
    %v1777 = vld [vmem:[%s1776] sm:$0xf]
    %v1778 = vld [vmem:[%s1776 + $0x4] sm:$0xf]
    %v1779 = vld [vmem:[%s1776 + $0x8] sm:$0xf]
    %v1780 = vld [vmem:[%s1776 + $0xc] sm:$0xf]
    %v1781 = vpack.c.bf16 %v1764, %v1762
    %v1782 = vpack.c.bf16 %v1769, %v1767
    %v1783 = vpack.c.bf16 %v1774, %v1772
    %1787 = vrot.lane.b32.xlu0 %v1781, 96
    %v1788 = vpop.permute.xlu0 %1787
    %1789 = vrot.lane.b32.xlu0 %v1782, 96
    %v1790 = vpop.permute.xlu0 %1789
    %1791 = vrot.lane.b32.xlu0 %v1783, 96
    %v1792 = vpop.permute.xlu0 %1791
    %v1794 = vsel %vm396, %v1781, 0
    %v1797 = vsel %vm396, %v1782, 0
    %v1800 = vsel %vm396, %v1783, 0
    %v1803 = vsel %vm396, %v1788, 0
    %v1806 = vsel %vm396, %v1790, 0
    %v1809 = vsel %vm396, %v1792, 0
    %1811 = vmatpush.bf16.xpose.msra.mxu0 0
    %1812 = vmatpush.bf16.xpose.msra.mxu0 0
    %1813 = vmatpush.bf16.xpose.msra.mxu0 0
    %1814 = vmatpush.bf16.xpose.msra.mxu0 0
    %1815 = vmatpush.bf16.xpose.msra.mxu0 0
    %1816 = vmatpush.bf16.xpose.msra.mxu0 %v1809
    %1817 = vmatpush.bf16.xpose.msra.mxu0 %v1806
    %1818 = vmatpush.bf16.xpose.msra.mxu0 %v1803
    %1819 = vmatmul.bf16.gmra.mxu0 %v1794
    %v1820 = vpop.f32.mrf.mxu0
    %v1821 = vadd.f32 0.0, %v1820
    %v1822 = vpop.f32.mrf.mxu0
    %v1823 = vadd.f32 0.0, %v1822
    %1824 = vmatmul.bf16.gmra.mxu0 %v1797
    %v1825 = vpop.f32.mrf.mxu0
    %v1826 = vadd.f32 0.0, %v1825
    %v1827 = vpop.f32.mrf.mxu0
    %v1828 = vadd.f32 0.0, %v1827
    %1829 = vmatmul.bf16.gmra.mxu0 %v1800
    %v1830 = vpop.f32.mrf.mxu0
    %v1831 = vadd.f32 0.0, %v1830
    %v1832 = vpop.f32.mrf.mxu0
    %v1833 = vadd.f32 0.0, %v1832
    %1834 = vdwg.mxu0
    %v1835 = vmul.f32 %v1821, 0.25
    %v1836 = vmul.f32 %v1823, 0.25
    %v1837 = vmul.f32 %v1826, 0.25
    %v1838 = vmul.f32 %v1828, 0.25
    %v1839 = vmul.f32 %v1831, 0.25
    %v1840 = vmul.f32 %v1833, 0.25
    %v1841 = vadd.f32 %v1835, %v158
    %v1842 = vadd.f32 %v1836, %v159
    %v1843 = vadd.f32 %v1837, %v160
    %v1844 = vadd.f32 %v1838, %v161
    %v1845 = vadd.f32 %v1839, %v162
    %v1846 = vadd.f32 %v1840, %v163
    %v1847 = vsel %vm124, %v1841, -inf
    %1848 = vmax.xlane.f32.xlu0 %v1847
    %v1849 = vpop.xlane.xlu0 %1848
    %v1850 = vsel %vm124, %v1842, -inf
    %1851 = vmax.xlane.f32.xlu0 %v1850
    %v1852 = vpop.xlane.xlu0 %1851
    %v1853 = vsel %vm124, %v1843, -inf
    %1854 = vmax.xlane.f32.xlu0 %v1853
    %v1855 = vpop.xlane.xlu0 %1854
    %v1856 = vsel %vm124, %v1844, -inf
    %1857 = vmax.xlane.f32.xlu0 %v1856
    %v1858 = vpop.xlane.xlu0 %1857
    %v1859 = vsel %vm124, %v1845, -inf
    %1860 = vmax.xlane.f32.xlu0 %v1859
    %v1861 = vpop.xlane.xlu0 %1860
    %v1862 = vsel %vm124, %v1846, -inf
    %1863 = vmax.xlane.f32.xlu0 %v1862
    %v1864 = vpop.xlane.xlu0 %1863
    %v1865 = vsub.f32 %v1841, %v1849
    %v1866 = vsub.f32 %v1842, %v1852
    %v1867 = vsub.f32 %v1843, %v1855
    %v1868 = vsub.f32 %v1844, %v1858
    %v1869 = vsub.f32 %v1845, %v1861
    %v1870 = vsub.f32 %v1846, %v1864
    %v1871 = vmul.f32 %v1865, 1.442695
    %v1872 = vpow.pop %v1871
    %v1873 = vmul.f32 %v1866, 1.442695
    %v1874 = vpow.pop %v1873
    %v1875 = vmul.f32 %v1867, 1.442695
    %v1876 = vpow.pop %v1875
    %v1877 = vmul.f32 %v1868, 1.442695
    %v1878 = vpow.pop %v1877
    %v1879 = vmul.f32 %v1869, 1.442695
    %v1880 = vpow.pop %v1879
    %v1881 = vmul.f32 %v1870, 1.442695
    %v1882 = vpow.pop %v1881
    %v1883 = vsel %vm124, %v1872, 0.0
    %1884 = vadd.xlane.f32.xlu0 %v1883
    %v1885 = vpop.xlane.xlu0 %1884
    %v1886 = vsel %vm124, %v1874, 0.0
    %1887 = vadd.xlane.f32.xlu0 %v1886
    %v1888 = vpop.xlane.xlu0 %1887
    %v1889 = vsel %vm124, %v1876, 0.0
    %1890 = vadd.xlane.f32.xlu0 %v1889
    %v1891 = vpop.xlane.xlu0 %1890
    %v1892 = vsel %vm124, %v1878, 0.0
    %1893 = vadd.xlane.f32.xlu0 %v1892
    %v1894 = vpop.xlane.xlu0 %1893
    %v1895 = vsel %vm124, %v1880, 0.0
    %1896 = vadd.xlane.f32.xlu0 %v1895
    %v1897 = vpop.xlane.xlu0 %1896
    %v1898 = vsel %vm124, %v1882, 0.0
    %1899 = vadd.xlane.f32.xlu0 %v1898
    %v1900 = vpop.xlane.xlu0 %1899
    %v1901 = vrcp.pop %v1885
    %v1902 = vmul.f32 %v1885, %v1901
    %v1903 = vsub.f32 1.0, %v1902
    %v1904 = vmul.f32 %v1901, %v1903
    %v1905 = vadd.f32 %v1901, %v1904
    %vm1906 = vweird.f32 %v1885
    %vm1907 = vweird.f32 %v1901
    %vm1908 = vmor %vm1906, %vm1907
    %v1909 = vsel %vm1908, %v1901, %v1905
    %v1910 = vand.u32 2147483647, %v1885
    %vm1911 = vcmp.eq.f32.partialorder %v1910, 8.507059e+37
    %v1912 = vand.u32 %v1885, 2147483648
    %v1913 = vor.u32 1.1754944e-38, %v1912
    %v1914 = vsel %vm1911, %v1913, %v1909
    %v1915 = vmul.f32 %v1872, %v1914
    %v1916 = vrcp.pop %v1888
    %v1917 = vmul.f32 %v1888, %v1916
    %v1918 = vsub.f32 1.0, %v1917
    %v1919 = vmul.f32 %v1916, %v1918
    %v1920 = vadd.f32 %v1916, %v1919
    %vm1921 = vweird.f32 %v1888
    %vm1922 = vweird.f32 %v1916
    %vm1923 = vmor %vm1921, %vm1922
    %v1924 = vsel %vm1923, %v1916, %v1920
    %v1925 = vand.u32 2147483647, %v1888
    %vm1926 = vcmp.eq.f32.partialorder %v1925, 8.507059e+37
    %v1927 = vand.u32 %v1888, 2147483648
    %v1928 = vor.u32 1.1754944e-38, %v1927
    %v1929 = vsel %vm1926, %v1928, %v1924
    %v1930 = vmul.f32 %v1874, %v1929
    %v1931 = vrcp.pop %v1891
    %v1932 = vmul.f32 %v1891, %v1931
    %v1933 = vsub.f32 1.0, %v1932
    %v1934 = vmul.f32 %v1931, %v1933
    %v1935 = vadd.f32 %v1931, %v1934
    %vm1936 = vweird.f32 %v1891
    %vm1937 = vweird.f32 %v1931
    %vm1938 = vmor %vm1936, %vm1937
    %v1939 = vsel %vm1938, %v1931, %v1935
    %v1940 = vand.u32 2147483647, %v1891
    %vm1941 = vcmp.eq.f32.partialorder %v1940, 8.507059e+37
    %v1942 = vand.u32 %v1891, 2147483648
    %v1943 = vor.u32 1.1754944e-38, %v1942
    %v1944 = vsel %vm1941, %v1943, %v1939
    %v1945 = vmul.f32 %v1876, %v1944
    %v1946 = vrcp.pop %v1894
    %v1947 = vmul.f32 %v1894, %v1946
    %v1948 = vsub.f32 1.0, %v1947
    %v1949 = vmul.f32 %v1946, %v1948
    %v1950 = vadd.f32 %v1946, %v1949
    %vm1951 = vweird.f32 %v1894
    %vm1952 = vweird.f32 %v1946
    %vm1953 = vmor %vm1951, %vm1952
    %v1954 = vsel %vm1953, %v1946, %v1950
    %v1955 = vand.u32 2147483647, %v1894
    %vm1956 = vcmp.eq.f32.partialorder %v1955, 8.507059e+37
    %v1957 = vand.u32 %v1894, 2147483648
    %v1958 = vor.u32 1.1754944e-38, %v1957
    %v1959 = vsel %vm1956, %v1958, %v1954
    %v1960 = vmul.f32 %v1878, %v1959
    %v1961 = vrcp.pop %v1897
    %v1962 = vmul.f32 %v1897, %v1961
    %v1963 = vsub.f32 1.0, %v1962
    %v1964 = vmul.f32 %v1961, %v1963
    %v1965 = vadd.f32 %v1961, %v1964
    %vm1966 = vweird.f32 %v1897
    %vm1967 = vweird.f32 %v1961
    %vm1968 = vmor %vm1966, %vm1967
    %v1969 = vsel %vm1968, %v1961, %v1965
    %v1970 = vand.u32 2147483647, %v1897
    %vm1971 = vcmp.eq.f32.partialorder %v1970, 8.507059e+37
    %v1972 = vand.u32 %v1897, 2147483648
    %v1973 = vor.u32 1.1754944e-38, %v1972
    %v1974 = vsel %vm1971, %v1973, %v1969
    %v1975 = vmul.f32 %v1880, %v1974
    %v1976 = vrcp.pop %v1900
    %v1977 = vmul.f32 %v1900, %v1976
    %v1978 = vsub.f32 1.0, %v1977
    %v1979 = vmul.f32 %v1976, %v1978
    %v1980 = vadd.f32 %v1976, %v1979
    %vm1981 = vweird.f32 %v1900
    %vm1982 = vweird.f32 %v1976
    %vm1983 = vmor %vm1981, %vm1982
    %v1984 = vsel %vm1983, %v1976, %v1980
    %v1985 = vand.u32 2147483647, %v1900
    %vm1986 = vcmp.eq.f32.partialorder %v1985, 8.507059e+37
    %v1987 = vand.u32 %v1900, 2147483648
    %v1988 = vor.u32 1.1754944e-38, %v1987
    %v1989 = vsel %vm1986, %v1988, %v1984
    %v1990 = vmul.f32 %v1882, %v1989
    %v1991 = vpack.c.bf16 %v1930, %v1915
    %v1992 = vpack.c.bf16 %v1960, %v1945
    %v1993 = vpack.c.bf16 %v1990, %v1975
    %1994 = vrot.lane.b32.xlu0 %v1781, 64
    %v1995 = vpop.permute.xlu0 %1994
    %1996 = vrot.lane.b32.xlu0 %v1782, 64
    %v1997 = vpop.permute.xlu0 %1996
    %1998 = vrot.lane.b32.xlu0 %v1783, 64
    %v1999 = vpop.permute.xlu0 %1998
    %v2004 = vsel %vm124, %v1991, 0
    %v2007 = vsel %vm124, %v1992, 0
    %v2010 = vsel %vm124, %v1993, 0
    %2012 = vmatpush.bf16.msra.mxu0 0
    %2013 = vmatpush.bf16.msra.mxu0 0
    %2014 = vmatpush.bf16.msra.mxu0 0
    %2015 = vmatpush.bf16.msra.mxu0 0
    %2016 = vmatpush.bf16.msra.mxu0 0
    %2017 = vmatpush.bf16.msra.mxu0 %v1999
    %2018 = vmatpush.bf16.msra.mxu0 %v1997
    %2019 = vmatpush.bf16.msra.mxu0 %v1995
    %2020 = vmatmul.bf16.gmra.mxu0 %v2004
    %v2021 = vpop.f32.mrf.mxu0
    %v2022 = vadd.f32 0.0, %v2021
    %v2023 = vpop.f32.mrf.mxu0
    %v2024 = vadd.f32 0.0, %v2023
    %2025 = vmatmul.bf16.gmra.mxu0 %v2007
    %v2026 = vpop.f32.mrf.mxu0
    %v2027 = vadd.f32 0.0, %v2026
    %v2028 = vpop.f32.mrf.mxu0
    %v2029 = vadd.f32 0.0, %v2028
    %2030 = vmatmul.bf16.gmra.mxu0 %v2010
    %v2031 = vpop.f32.mrf.mxu0
    %v2032 = vadd.f32 0.0, %v2031
    %v2033 = vpop.f32.mrf.mxu0
    %v2034 = vadd.f32 0.0, %v2033
    %2035 = vdwg.mxu0
    %v2036 = vpack.c.bf16 %v2024, %v2022
    %v2037 = vpack.c.bf16 %v2029, %v2027
    %v2038 = vpack.c.bf16 %v2034, %v2032
    %2039 = vrot.lane.b32.xlu0 %v1781, 112
    %v2040 = vpop.permute.xlu0 %2039
    %2041 = vrot.lane.b32.xlu0 %v1782, 112
    %v2042 = vpop.permute.xlu0 %2041
    %2043 = vrot.lane.b32.xlu0 %v1783, 112
    %v2044 = vpop.permute.xlu0 %2043
    %2045 = vrot.lane.b32.xlu0 %v1781, 80
    %v2046 = vpop.permute.xlu0 %2045
    %2047 = vrot.lane.b32.xlu0 %v1782, 80
    %v2048 = vpop.permute.xlu0 %2047
    %2049 = vrot.lane.b32.xlu0 %v1783, 80
    %v2050 = vpop.permute.xlu0 %2049
    %v2052 = vsel %vm396, %v2040, 0
    %v2055 = vsel %vm396, %v2042, 0
    %v2058 = vsel %vm396, %v2044, 0
    %v2061 = vsel %vm396, %v2046, 0
    %v2064 = vsel %vm396, %v2048, 0
    %v2067 = vsel %vm396, %v2050, 0
    %2069 = vmatpush.bf16.xpose.msra.mxu0 0
    %2070 = vmatpush.bf16.xpose.msra.mxu0 0
    %2071 = vmatpush.bf16.xpose.msra.mxu0 0
    %2072 = vmatpush.bf16.xpose.msra.mxu0 0
    %2073 = vmatpush.bf16.xpose.msra.mxu0 0
    %2074 = vmatpush.bf16.xpose.msra.mxu0 %v2067
    %2075 = vmatpush.bf16.xpose.msra.mxu0 %v2064
    %2076 = vmatpush.bf16.xpose.msra.mxu0 %v2061
    %2077 = vmatmul.bf16.gmra.mxu0 %v2052
    %v2078 = vpop.f32.mrf.mxu0
    %v2079 = vadd.f32 0.0, %v2078
    %v2080 = vpop.f32.mrf.mxu0
    %v2081 = vadd.f32 0.0, %v2080
    %2082 = vmatmul.bf16.gmra.mxu0 %v2055
    %v2083 = vpop.f32.mrf.mxu0
    %v2084 = vadd.f32 0.0, %v2083
    %v2085 = vpop.f32.mrf.mxu0
    %v2086 = vadd.f32 0.0, %v2085
    %2087 = vmatmul.bf16.gmra.mxu0 %v2058
    %v2088 = vpop.f32.mrf.mxu0
    %v2089 = vadd.f32 0.0, %v2088
    %v2090 = vpop.f32.mrf.mxu0
    %v2091 = vadd.f32 0.0, %v2090
    %2092 = vdwg.mxu0
    %v2093 = vmul.f32 %v2079, 0.25
    %v2094 = vmul.f32 %v2081, 0.25
    %v2095 = vmul.f32 %v2084, 0.25
    %v2096 = vmul.f32 %v2086, 0.25
    %v2097 = vmul.f32 %v2089, 0.25
    %v2098 = vmul.f32 %v2091, 0.25
    %v2099 = vadd.f32 %v2093, %v158
    %v2100 = vadd.f32 %v2094, %v159
    %v2101 = vadd.f32 %v2095, %v160
    %v2102 = vadd.f32 %v2096, %v161
    %v2103 = vadd.f32 %v2097, %v162
    %v2104 = vadd.f32 %v2098, %v163
    %v2105 = vsel %vm124, %v2099, -inf
    %2106 = vmax.xlane.f32.xlu0 %v2105
    %v2107 = vpop.xlane.xlu0 %2106
    %v2108 = vsel %vm124, %v2100, -inf
    %2109 = vmax.xlane.f32.xlu0 %v2108
    %v2110 = vpop.xlane.xlu0 %2109
    %v2111 = vsel %vm124, %v2101, -inf
    %2112 = vmax.xlane.f32.xlu0 %v2111
    %v2113 = vpop.xlane.xlu0 %2112
    %v2114 = vsel %vm124, %v2102, -inf
    %2115 = vmax.xlane.f32.xlu0 %v2114
    %v2116 = vpop.xlane.xlu0 %2115
    %v2117 = vsel %vm124, %v2103, -inf
    %2118 = vmax.xlane.f32.xlu0 %v2117
    %v2119 = vpop.xlane.xlu0 %2118
    %v2120 = vsel %vm124, %v2104, -inf
    %2121 = vmax.xlane.f32.xlu0 %v2120
    %v2122 = vpop.xlane.xlu0 %2121
    %v2123 = vsub.f32 %v2099, %v2107
    %v2124 = vsub.f32 %v2100, %v2110
    %v2125 = vsub.f32 %v2101, %v2113
    %v2126 = vsub.f32 %v2102, %v2116
    %v2127 = vsub.f32 %v2103, %v2119
    %v2128 = vsub.f32 %v2104, %v2122
    %v2129 = vmul.f32 %v2123, 1.442695
    %v2130 = vpow.pop %v2129
    %v2131 = vmul.f32 %v2124, 1.442695
    %v2132 = vpow.pop %v2131
    %v2133 = vmul.f32 %v2125, 1.442695
    %v2134 = vpow.pop %v2133
    %v2135 = vmul.f32 %v2126, 1.442695
    %v2136 = vpow.pop %v2135
    %v2137 = vmul.f32 %v2127, 1.442695
    %v2138 = vpow.pop %v2137
    %v2139 = vmul.f32 %v2128, 1.442695
    %v2140 = vpow.pop %v2139
    %v2141 = vsel %vm124, %v2130, 0.0
    %2142 = vadd.xlane.f32.xlu0 %v2141
    %v2143 = vpop.xlane.xlu0 %2142
    %v2144 = vsel %vm124, %v2132, 0.0
    %2145 = vadd.xlane.f32.xlu0 %v2144
    %v2146 = vpop.xlane.xlu0 %2145
    %v2147 = vsel %vm124, %v2134, 0.0
    %2148 = vadd.xlane.f32.xlu0 %v2147
    %v2149 = vpop.xlane.xlu0 %2148
    %v2150 = vsel %vm124, %v2136, 0.0
    %2151 = vadd.xlane.f32.xlu0 %v2150
    %v2152 = vpop.xlane.xlu0 %2151
    %v2153 = vsel %vm124, %v2138, 0.0
    %2154 = vadd.xlane.f32.xlu0 %v2153
    %v2155 = vpop.xlane.xlu0 %2154
    %v2156 = vsel %vm124, %v2140, 0.0
    %2157 = vadd.xlane.f32.xlu0 %v2156
    %v2158 = vpop.xlane.xlu0 %2157
    %v2159 = vrcp.pop %v2143
    %v2160 = vmul.f32 %v2143, %v2159
    %v2161 = vsub.f32 1.0, %v2160
    %v2162 = vmul.f32 %v2159, %v2161
    %v2163 = vadd.f32 %v2159, %v2162
    %vm2164 = vweird.f32 %v2143
    %vm2165 = vweird.f32 %v2159
    %vm2166 = vmor %vm2164, %vm2165
    %v2167 = vsel %vm2166, %v2159, %v2163
    %v2168 = vand.u32 2147483647, %v2143
    %vm2169 = vcmp.eq.f32.partialorder %v2168, 8.507059e+37
    %v2170 = vand.u32 %v2143, 2147483648
    %v2171 = vor.u32 1.1754944e-38, %v2170
    %v2172 = vsel %vm2169, %v2171, %v2167
    %v2173 = vmul.f32 %v2130, %v2172
    %v2174 = vrcp.pop %v2146
    %v2175 = vmul.f32 %v2146, %v2174
    %v2176 = vsub.f32 1.0, %v2175
    %v2177 = vmul.f32 %v2174, %v2176
    %v2178 = vadd.f32 %v2174, %v2177
    %vm2179 = vweird.f32 %v2146
    %vm2180 = vweird.f32 %v2174
    %vm2181 = vmor %vm2179, %vm2180
    %v2182 = vsel %vm2181, %v2174, %v2178
    %v2183 = vand.u32 2147483647, %v2146
    %vm2184 = vcmp.eq.f32.partialorder %v2183, 8.507059e+37
    %v2185 = vand.u32 %v2146, 2147483648
    %v2186 = vor.u32 1.1754944e-38, %v2185
    %v2187 = vsel %vm2184, %v2186, %v2182
    %v2188 = vmul.f32 %v2132, %v2187
    %v2189 = vrcp.pop %v2149
    %v2190 = vmul.f32 %v2149, %v2189
    %v2191 = vsub.f32 1.0, %v2190
    %v2192 = vmul.f32 %v2189, %v2191
    %v2193 = vadd.f32 %v2189, %v2192
    %vm2194 = vweird.f32 %v2149
    %vm2195 = vweird.f32 %v2189
    %vm2196 = vmor %vm2194, %vm2195
    %v2197 = vsel %vm2196, %v2189, %v2193
    %v2198 = vand.u32 2147483647, %v2149
    %vm2199 = vcmp.eq.f32.partialorder %v2198, 8.507059e+37
    %v2200 = vand.u32 %v2149, 2147483648
    %v2201 = vor.u32 1.1754944e-38, %v2200
    %v2202 = vsel %vm2199, %v2201, %v2197
    %v2203 = vmul.f32 %v2134, %v2202
    %v2204 = vrcp.pop %v2152
    %v2205 = vmul.f32 %v2152, %v2204
    %v2206 = vsub.f32 1.0, %v2205
    %v2207 = vmul.f32 %v2204, %v2206
    %v2208 = vadd.f32 %v2204, %v2207
    %vm2209 = vweird.f32 %v2152
    %vm2210 = vweird.f32 %v2204
    %vm2211 = vmor %vm2209, %vm2210
    %v2212 = vsel %vm2211, %v2204, %v2208
    %v2213 = vand.u32 2147483647, %v2152
    %vm2214 = vcmp.eq.f32.partialorder %v2213, 8.507059e+37
    %v2215 = vand.u32 %v2152, 2147483648
    %v2216 = vor.u32 1.1754944e-38, %v2215
    %v2217 = vsel %vm2214, %v2216, %v2212
    %v2218 = vmul.f32 %v2136, %v2217
    %v2219 = vrcp.pop %v2155
    %v2220 = vmul.f32 %v2155, %v2219
    %v2221 = vsub.f32 1.0, %v2220
    %v2222 = vmul.f32 %v2219, %v2221
    %v2223 = vadd.f32 %v2219, %v2222
    %vm2224 = vweird.f32 %v2155
    %vm2225 = vweird.f32 %v2219
    %vm2226 = vmor %vm2224, %vm2225
    %v2227 = vsel %vm2226, %v2219, %v2223
    %v2228 = vand.u32 2147483647, %v2155
    %vm2229 = vcmp.eq.f32.partialorder %v2228, 8.507059e+37
    %v2230 = vand.u32 %v2155, 2147483648
    %v2231 = vor.u32 1.1754944e-38, %v2230
    %v2232 = vsel %vm2229, %v2231, %v2227
    %v2233 = vmul.f32 %v2138, %v2232
    %v2234 = vrcp.pop %v2158
    %v2235 = vmul.f32 %v2158, %v2234
    %v2236 = vsub.f32 1.0, %v2235
    %v2237 = vmul.f32 %v2234, %v2236
    %v2238 = vadd.f32 %v2234, %v2237
    %vm2239 = vweird.f32 %v2158
    %vm2240 = vweird.f32 %v2234
    %vm2241 = vmor %vm2239, %vm2240
    %v2242 = vsel %vm2241, %v2234, %v2238
    %v2243 = vand.u32 2147483647, %v2158
    %vm2244 = vcmp.eq.f32.partialorder %v2243, 8.507059e+37
    %v2245 = vand.u32 %v2158, 2147483648
    %v2246 = vor.u32 1.1754944e-38, %v2245
    %v2247 = vsel %vm2244, %v2246, %v2242
    %v2248 = vmul.f32 %v2140, %v2247
    %v2249 = vpack.c.bf16 %v2188, %v2173
    %v2250 = vpack.c.bf16 %v2218, %v2203
    %v2251 = vpack.c.bf16 %v2248, %v2233
    %2252 = vrot.lane.b32.xlu0 %v1781, 48
    %v2253 = vpop.permute.xlu0 %2252
    %2254 = vrot.lane.b32.xlu0 %v1782, 48
    %v2255 = vpop.permute.xlu0 %2254
    %2256 = vrot.lane.b32.xlu0 %v1783, 48
    %v2257 = vpop.permute.xlu0 %2256
    %v2262 = vsel %vm124, %v2249, 0
    %v2265 = vsel %vm124, %v2250, 0
    %v2268 = vsel %vm124, %v2251, 0
    %2270 = vmatpush.bf16.msra.mxu0 0
    %2271 = vmatpush.bf16.msra.mxu0 0
    %2272 = vmatpush.bf16.msra.mxu0 0
    %2273 = vmatpush.bf16.msra.mxu0 0
    %2274 = vmatpush.bf16.msra.mxu0 0
    %2275 = vmatpush.bf16.msra.mxu0 %v2257
    %2276 = vmatpush.bf16.msra.mxu0 %v2255
    %2277 = vmatpush.bf16.msra.mxu0 %v2253
    %2278 = vmatmul.bf16.gmra.mxu0 %v2262
    %v2279 = vpop.f32.mrf.mxu0
    %v2280 = vadd.f32 0.0, %v2279
    %v2281 = vpop.f32.mrf.mxu0
    %v2282 = vadd.f32 0.0, %v2281
    %2283 = vmatmul.bf16.gmra.mxu0 %v2265
    %v2284 = vpop.f32.mrf.mxu0
    %v2285 = vadd.f32 0.0, %v2284
    %v2286 = vpop.f32.mrf.mxu0
    %v2287 = vadd.f32 0.0, %v2286
    %2288 = vmatmul.bf16.gmra.mxu0 %v2268
    %v2289 = vpop.f32.mrf.mxu0
    %v2290 = vadd.f32 0.0, %v2289
    %v2291 = vpop.f32.mrf.mxu0
    %v2292 = vadd.f32 0.0, %v2291
    %2293 = vdwg.mxu0
    %v2294 = vpack.c.bf16 %v2282, %v2280
    %v2295 = vpack.c.bf16 %v2287, %v2285
    %v2296 = vpack.c.bf16 %v2292, %v2290
    %v2299 = vunpack.c.l.b16 %v1779
    %v2300 = vunpack.c.l.b16 %v1780
    %v2301 = vpack.c.b16 %v2300, %v2299
    %v2304 = vsel %vm396, %v2294, 0
    %v2307 = vsel %vm396, %v2295, 0
    %v2310 = vsel %vm396, %v2296, 0
    %2312 = vmatpush.bf16.msra.mxu0 0
    %2313 = vmatpush.bf16.msra.mxu0 0
    %2314 = vmatpush.bf16.msra.mxu0 0
    %2315 = vmatpush.bf16.msra.mxu0 0
    %2316 = vmatpush.bf16.msra.mxu0 0
    %2317 = vmatpush.bf16.msra.mxu0 0
    %2318 = vmatpush.bf16.msra.mxu0 0
    %2319 = vmatpush.bf16.msra.mxu0 %v2301
    %2320 = vmatmul.bf16.gmra.mxu0 %v2304
    %v2321 = vpop.f32.mrf.mxu0
    %v2322 = vadd.f32 0.0, %v2321
    %v2323 = vpop.f32.mrf.mxu0
    %v2324 = vadd.f32 0.0, %v2323
    %2325 = vmatmul.bf16.gmra.mxu0 %v2307
    %v2326 = vpop.f32.mrf.mxu0
    %v2327 = vadd.f32 0.0, %v2326
    %v2328 = vpop.f32.mrf.mxu0
    %v2329 = vadd.f32 0.0, %v2328
    %2330 = vmatmul.bf16.gmra.mxu0 %v2310
    %v2331 = vpop.f32.mrf.mxu0
    %v2332 = vadd.f32 0.0, %v2331
    %v2333 = vpop.f32.mrf.mxu0
    %v2334 = vadd.f32 0.0, %v2333
    %2335 = vdwg.mxu0
    %v2338 = vunpack.c.l.b16 %v1777
    %v2339 = vunpack.c.l.b16 %v1778
    %v2340 = vpack.c.b16 %v2339, %v2338
    %v2343 = vsel %vm396, %v2036, 0
    %v2346 = vsel %vm396, %v2037, 0
    %v2349 = vsel %vm396, %v2038, 0
    %2351 = vmatpush.bf16.msra.mxu0 0
    %2352 = vmatpush.bf16.msra.mxu0 0
    %2353 = vmatpush.bf16.msra.mxu0 0
    %2354 = vmatpush.bf16.msra.mxu0 0
    %2355 = vmatpush.bf16.msra.mxu0 0
    %2356 = vmatpush.bf16.msra.mxu0 0
    %2357 = vmatpush.bf16.msra.mxu0 0
    %2358 = vmatpush.bf16.msra.mxu0 %v2340
    %2359 = vmatmul.bf16.gmra.mxu0 %v2343
    %v2360 = vpop.f32.mrf.mxu0
    %v2361 = vadd.f32 %v2322, %v2360
    %v2362 = vpop.f32.mrf.mxu0
    %v2363 = vadd.f32 %v2324, %v2362
    %2364 = vmatmul.bf16.gmra.mxu0 %v2346
    %v2365 = vpop.f32.mrf.mxu0
    %v2366 = vadd.f32 %v2327, %v2365
    %v2367 = vpop.f32.mrf.mxu0
    %v2368 = vadd.f32 %v2329, %v2367
    %2369 = vmatmul.bf16.gmra.mxu0 %v2349
    %v2370 = vpop.f32.mrf.mxu0
    %v2371 = vadd.f32 %v2332, %v2370
    %v2372 = vpop.f32.mrf.mxu0
    %v2373 = vadd.f32 %v2334, %v2372
    %2374 = vdwg.mxu0
    %s2375 = scalar_lea.vmem %s12, 1
    %v2376 = vld [vmem:[%s2375] sm:$0x1]
    %s2377 = scalar_lea.vmem %s11, 1
    %v2378 = vld [vmem:[%s2377] sm:$0x1]
    %v2380 = vperm.slane %v2378, 0
    %v2382 = vadd.f32 %v2361, %v2380
    %v2383 = vadd.f32 %v2363, %v2380
    %v2384 = vadd.f32 %v2366, %v2380
    %v2385 = vadd.f32 %v2368, %v2380
    %v2386 = vadd.f32 %v2371, %v2380
    %v2387 = vadd.f32 %v2373, %v2380
    %v2389 = vperm.slane %v2376, 0
    %v2391 = vmul.f32 %v2389, %v2382
    %v2392 = vmul.f32 %v2389, %v2383
    %v2393 = vmul.f32 %v2389, %v2384
    %v2394 = vmul.f32 %v2389, %v2385
    %v2395 = vmul.f32 %v2389, %v2386
    %v2396 = vmul.f32 %v2389, %v2387
    %v2397 = vadd.f32 %v1558, %v2391
    %v2398 = vadd.f32 %v1559, %v2392
    %v2399 = vadd.f32 %v1560, %v2393
    %v2400 = vadd.f32 %v1561, %v2394
    %v2401 = vadd.f32 %v1562, %v2395
    %v2402 = vadd.f32 %v1563, %v2396
    %s2403 = scalar_lea.vmem %s13, 1
    %v2404 = vld [vmem:[%s2403] sm:$0x1]
    %s2405 = scalar_lea.vmem %s14, 1
    %v2406 = vld [vmem:[%s2405] sm:$0x1]
    %v2407 = vsel %vm166, %v2397, 0.0
    %2408 = vadd.xlane.f32.xlu0 %v2407
    %v2409 = vpop.xlane.xlu0 %2408
    %v2410 = vsel %vm166, %v2398, 0.0
    %2411 = vadd.xlane.f32.xlu0 %v2410
    %v2412 = vpop.xlane.xlu0 %2411
    %v2413 = vsel %vm166, %v2399, 0.0
    %2414 = vadd.xlane.f32.xlu0 %v2413
    %v2415 = vpop.xlane.xlu0 %2414
    %v2416 = vsel %vm166, %v2400, 0.0
    %2417 = vadd.xlane.f32.xlu0 %v2416
    %v2418 = vpop.xlane.xlu0 %2417
    %v2419 = vsel %vm166, %v2401, 0.0
    %2420 = vadd.xlane.f32.xlu0 %v2419
    %v2421 = vpop.xlane.xlu0 %2420
    %v2422 = vsel %vm166, %v2402, 0.0
    %2423 = vadd.xlane.f32.xlu0 %v2422
    %v2424 = vpop.xlane.xlu0 %2423
    %v2425 = vmul.f32 %v2409, %v191
    %v2426 = vmul.f32 %v2412, %v191
    %v2427 = vmul.f32 %v2415, %v191
    %v2428 = vmul.f32 %v2418, %v191
    %v2429 = vmul.f32 %v2421, %v191
    %v2430 = vmul.f32 %v2424, %v191
    %v2431 = vsub.f32 %v2397, %v2425
    %v2432 = vsub.f32 %v2398, %v2426
    %v2433 = vsub.f32 %v2399, %v2427
    %v2434 = vsub.f32 %v2400, %v2428
    %v2435 = vsub.f32 %v2401, %v2429
    %v2436 = vsub.f32 %v2402, %v2430
    %v2437 = vmul.f32 %v2431, %v2431
    %v2438 = vmul.f32 %v2432, %v2432
    %v2439 = vmul.f32 %v2433, %v2433
    %v2440 = vmul.f32 %v2434, %v2434
    %v2441 = vmul.f32 %v2435, %v2435
    %v2442 = vmul.f32 %v2436, %v2436
    %v2443 = vsel %vm166, %v2437, 0.0
    %2444 = vadd.xlane.f32.xlu0 %v2443
    %v2445 = vpop.xlane.xlu0 %2444
    %v2446 = vsel %vm166, %v2438, 0.0
    %2447 = vadd.xlane.f32.xlu0 %v2446
    %v2448 = vpop.xlane.xlu0 %2447
    %v2449 = vsel %vm166, %v2439, 0.0
    %2450 = vadd.xlane.f32.xlu0 %v2449
    %v2451 = vpop.xlane.xlu0 %2450
    %v2452 = vsel %vm166, %v2440, 0.0
    %2453 = vadd.xlane.f32.xlu0 %v2452
    %v2454 = vpop.xlane.xlu0 %2453
    %v2455 = vsel %vm166, %v2441, 0.0
    %2456 = vadd.xlane.f32.xlu0 %v2455
    %v2457 = vpop.xlane.xlu0 %2456
    %v2458 = vsel %vm166, %v2442, 0.0
    %2459 = vadd.xlane.f32.xlu0 %v2458
    %v2460 = vpop.xlane.xlu0 %2459
    %v2461 = vmul.f32 %v2445, %v191
    %v2462 = vmul.f32 %v2448, %v191
    %v2463 = vmul.f32 %v2451, %v191
    %v2464 = vmul.f32 %v2454, %v191
    %v2465 = vmul.f32 %v2457, %v191
    %v2466 = vmul.f32 %v2460, %v191
    %v2467 = vadd.f32 %v2461, 1e-06
    %v2468 = vadd.f32 %v2462, 1e-06
    %v2469 = vadd.f32 %v2463, 1e-06
    %v2470 = vadd.f32 %v2464, 1e-06
    %v2471 = vadd.f32 %v2465, 1e-06
    %v2472 = vadd.f32 %v2466, 1e-06
    %v2473 = vrsqrt.pop %v2467
    %v2474 = vmul.f32 %v2473, %v2467
    %v2475 = vmul.f32 %v2474, %v2473
    %v2476 = vmul.f32 0.5, %v2475
    %v2477 = vsub.f32 1.5, %v2476
    %v2478 = vmul.f32 %v2473, %v2477
    %vm2479 = vweird.f32 %v2467
    %vm2480 = vweird.f32 %v2473
    %vm2481 = vmor %vm2479, %vm2480
    %v2482 = vsel %vm2481, %v2473, %v2478
    %v2483 = vrsqrt.pop %v2468
    %v2484 = vmul.f32 %v2483, %v2468
    %v2485 = vmul.f32 %v2484, %v2483
    %v2486 = vmul.f32 0.5, %v2485
    %v2487 = vsub.f32 1.5, %v2486
    %v2488 = vmul.f32 %v2483, %v2487
    %vm2489 = vweird.f32 %v2468
    %vm2490 = vweird.f32 %v2483
    %vm2491 = vmor %vm2489, %vm2490
    %v2492 = vsel %vm2491, %v2483, %v2488
    %v2493 = vrsqrt.pop %v2469
    %v2494 = vmul.f32 %v2493, %v2469
    %v2495 = vmul.f32 %v2494, %v2493
    %v2496 = vmul.f32 0.5, %v2495
    %v2497 = vsub.f32 1.5, %v2496
    %v2498 = vmul.f32 %v2493, %v2497
    %vm2499 = vweird.f32 %v2469
    %vm2500 = vweird.f32 %v2493
    %vm2501 = vmor %vm2499, %vm2500
    %v2502 = vsel %vm2501, %v2493, %v2498
    %v2503 = vrsqrt.pop %v2470
    %v2504 = vmul.f32 %v2503, %v2470
    %v2505 = vmul.f32 %v2504, %v2503
    %v2506 = vmul.f32 0.5, %v2505
    %v2507 = vsub.f32 1.5, %v2506
    %v2508 = vmul.f32 %v2503, %v2507
    %vm2509 = vweird.f32 %v2470
    %vm2510 = vweird.f32 %v2503
    %vm2511 = vmor %vm2509, %vm2510
    %v2512 = vsel %vm2511, %v2503, %v2508
    %v2513 = vrsqrt.pop %v2471
    %v2514 = vmul.f32 %v2513, %v2471
    %v2515 = vmul.f32 %v2514, %v2513
    %v2516 = vmul.f32 0.5, %v2515
    %v2517 = vsub.f32 1.5, %v2516
    %v2518 = vmul.f32 %v2513, %v2517
    %vm2519 = vweird.f32 %v2471
    %vm2520 = vweird.f32 %v2513
    %vm2521 = vmor %vm2519, %vm2520
    %v2522 = vsel %vm2521, %v2513, %v2518
    %v2523 = vrsqrt.pop %v2472
    %v2524 = vmul.f32 %v2523, %v2472
    %v2525 = vmul.f32 %v2524, %v2523
    %v2526 = vmul.f32 0.5, %v2525
    %v2527 = vsub.f32 1.5, %v2526
    %v2528 = vmul.f32 %v2523, %v2527
    %vm2529 = vweird.f32 %v2472
    %vm2530 = vweird.f32 %v2523
    %vm2531 = vmor %vm2529, %vm2530
    %v2532 = vsel %vm2531, %v2523, %v2528
    %v2533 = vmul.f32 %v2431, %v2482
    %v2534 = vmul.f32 %v2432, %v2492
    %v2535 = vmul.f32 %v2433, %v2502
    %v2536 = vmul.f32 %v2434, %v2512
    %v2537 = vmul.f32 %v2435, %v2522
    %v2538 = vmul.f32 %v2436, %v2532
    %v2540 = vperm.slane %v2404, 0
    %v2542 = vmul.f32 %v2533, %v2540
    %v2543 = vmul.f32 %v2534, %v2540
    %v2544 = vmul.f32 %v2535, %v2540
    %v2545 = vmul.f32 %v2536, %v2540
    %v2546 = vmul.f32 %v2537, %v2540
    %v2547 = vmul.f32 %v2538, %v2540
    %v2549 = vperm.slane %v2406, 0
    %v2551 = vadd.f32 %v2542, %v2549
    %v2552 = vadd.f32 %v2543, %v2549
    %v2553 = vadd.f32 %v2544, %v2549
    %v2554 = vadd.f32 %v2545, %v2549
    %v2555 = vadd.f32 %v2546, %v2549
    %v2556 = vadd.f32 %v2547, %v2549
    %v2557 = vpack.c.bf16 %v2552, %v2551
    %v2558 = vpack.c.bf16 %v2554, %v2553
    %v2559 = vpack.c.bf16 %v2556, %v2555
    %s2560 = scalar_lea.vmem %s15, 16
    %v2561 = vld [vmem:[%s2560] sm:$0xf]
    %v2562 = vld [vmem:[%s2560 + $0x4] sm:$0xf]
    %v2563 = vld [vmem:[%s2560 + $0x8] sm:$0xf]
    %v2564 = vld [vmem:[%s2560 + $0xc] sm:$0xf]
    %s2565 = scalar_lea.vmem %s16, 1
    %v2566 = vld [vmem:[%s2565] sm:$0x1]
    %v2568 = vperm.slane %v2566, 0
    %v2574 = vunpack.c.l.b16 %v2561
    %v2575 = vunpack.c.l.b16 %v2562
    %v2576 = vunpack.c.l.b16 %v2563
    %v2577 = vunpack.c.l.b16 %v2564
    %v2578 = vpack.c.b16 %v2575, %v2574
    %v2579 = vpack.c.b16 %v2577, %v2576
    %v2583 = vsel %vm166, %v2557, 0
    %v2586 = vsel %vm166, %v2558, 0
    %v2589 = vsel %vm166, %v2559, 0
    %2591 = vmatpush.bf16.msra.mxu0 0
    %2592 = vmatpush.bf16.msra.mxu0 0
    %2593 = vmatpush.bf16.msra.mxu0 0
    %2594 = vmatpush.bf16.msra.mxu0 0
    %2595 = vmatpush.bf16.msra.mxu0 0
    %2596 = vmatpush.bf16.msra.mxu0 0
    %2597 = vmatpush.bf16.msra.mxu0 %v2579
    %2598 = vmatpush.bf16.msra.mxu0 %v2578
    %2599 = vmatmul.bf16.gmra.mxu0 %v2583
    %v2600 = vpop.f32.mrf.mxu0
    %v2601 = vadd.f32 %v2568, %v2600
    %v2602 = vpop.f32.mrf.mxu0
    %v2603 = vadd.f32 %v2568, %v2602
    %2604 = vmatmul.bf16.gmra.mxu0 %v2586
    %v2605 = vpop.f32.mrf.mxu0
    %v2606 = vadd.f32 %v2568, %v2605
    %v2607 = vpop.f32.mrf.mxu0
    %v2608 = vadd.f32 %v2568, %v2607
    %2609 = vmatmul.bf16.gmra.mxu0 %v2589
    %v2610 = vpop.f32.mrf.mxu0
    %v2611 = vadd.f32 %v2568, %v2610
    %v2612 = vpop.f32.mrf.mxu0
    %v2613 = vadd.f32 %v2568, %v2612
    %2614 = vdwg.mxu0
    %v2615 = vmul.f32 %v2601, 0.5
    %v2616 = vmul.f32 %v2603, 0.5
    %v2617 = vmul.f32 %v2606, 0.5
    %v2618 = vmul.f32 %v2608, 0.5
    %v2619 = vmul.f32 %v2611, 0.5
    %v2620 = vmul.f32 %v2613, 0.5
    %v2621 = vmul.f32 %v2601, 0.70710677
    %v2622 = vmul.f32 %v2603, 0.70710677
    %v2623 = vmul.f32 %v2606, 0.70710677
    %v2624 = vmul.f32 %v2608, 0.70710677
    %v2625 = vmul.f32 %v2611, 0.70710677
    %v2626 = vmul.f32 %v2613, 0.70710677
    %vm2627 = vcmp.ge.f32.partialorder %v2621, 0.0
    %vm2628 = vcmp.ge.f32.partialorder %v2622, 0.0
    %vm2629 = vcmp.ge.f32.partialorder %v2623, 0.0
    %vm2630 = vcmp.ge.f32.partialorder %v2624, 0.0
    %vm2631 = vcmp.ge.f32.partialorder %v2625, 0.0
    %vm2632 = vcmp.ge.f32.partialorder %v2626, 0.0
    %v2633 = vsel %vm2627, 1.0, -1.0
    %v2634 = vsel %vm2628, 1.0, -1.0
    %v2635 = vsel %vm2629, 1.0, -1.0
    %v2636 = vsel %vm2630, 1.0, -1.0
    %v2637 = vsel %vm2631, 1.0, -1.0
    %v2638 = vsel %vm2632, 1.0, -1.0
    %v2639 = vand.u32 2147483647, %v2621
    %v2640 = vand.u32 2147483647, %v2622
    %v2641 = vand.u32 2147483647, %v2623
    %v2642 = vand.u32 2147483647, %v2624
    %v2643 = vand.u32 2147483647, %v2625
    %v2644 = vand.u32 2147483647, %v2626
    %v2645 = vmul.f32 %v2639, 0.3275911
    %v2646 = vmul.f32 %v2640, 0.3275911
    %v2647 = vmul.f32 %v2641, 0.3275911
    %v2648 = vmul.f32 %v2642, 0.3275911
    %v2649 = vmul.f32 %v2643, 0.3275911
    %v2650 = vmul.f32 %v2644, 0.3275911
    %v2651 = vadd.f32 %v2645, 1.0
    %v2652 = vadd.f32 %v2646, 1.0
    %v2653 = vadd.f32 %v2647, 1.0
    %v2654 = vadd.f32 %v2648, 1.0
    %v2655 = vadd.f32 %v2649, 1.0
    %v2656 = vadd.f32 %v2650, 1.0
    %v2657 = vrcp.pop %v2651
    %v2658 = vmul.f32 %v2651, %v2657
    %v2659 = vsub.f32 1.0, %v2658
    %v2660 = vmul.f32 %v2657, %v2659
    %v2661 = vadd.f32 %v2657, %v2660
    %vm2662 = vweird.f32 %v2651
    %vm2663 = vweird.f32 %v2657
    %vm2664 = vmor %vm2662, %vm2663
    %v2665 = vsel %vm2664, %v2657, %v2661
    %v2666 = vand.u32 2147483647, %v2651
    %vm2667 = vcmp.eq.f32.partialorder %v2666, 8.507059e+37
    %v2668 = vand.u32 %v2651, 2147483648
    %v2669 = vor.u32 1.1754944e-38, %v2668
    %v2670 = vsel %vm2667, %v2669, %v2665
    %v2671 = vmul.f32 1.0, %v2670
    %v2672 = vrcp.pop %v2652
    %v2673 = vmul.f32 %v2652, %v2672
    %v2674 = vsub.f32 1.0, %v2673
    %v2675 = vmul.f32 %v2672, %v2674
    %v2676 = vadd.f32 %v2672, %v2675
    %vm2677 = vweird.f32 %v2652
    %vm2678 = vweird.f32 %v2672
    %vm2679 = vmor %vm2677, %vm2678
    %v2680 = vsel %vm2679, %v2672, %v2676
    %v2681 = vand.u32 2147483647, %v2652
    %vm2682 = vcmp.eq.f32.partialorder %v2681, 8.507059e+37
    %v2683 = vand.u32 %v2652, 2147483648
    %v2684 = vor.u32 1.1754944e-38, %v2683
    %v2685 = vsel %vm2682, %v2684, %v2680
    %v2686 = vmul.f32 1.0, %v2685
    %v2687 = vrcp.pop %v2653
    %v2688 = vmul.f32 %v2653, %v2687
    %v2689 = vsub.f32 1.0, %v2688
    %v2690 = vmul.f32 %v2687, %v2689
    %v2691 = vadd.f32 %v2687, %v2690
    %vm2692 = vweird.f32 %v2653
    %vm2693 = vweird.f32 %v2687
    %vm2694 = vmor %vm2692, %vm2693
    %v2695 = vsel %vm2694, %v2687, %v2691
    %v2696 = vand.u32 2147483647, %v2653
    %vm2697 = vcmp.eq.f32.partialorder %v2696, 8.507059e+37
    %v2698 = vand.u32 %v2653, 2147483648
    %v2699 = vor.u32 1.1754944e-38, %v2698
    %v2700 = vsel %vm2697, %v2699, %v2695
    %v2701 = vmul.f32 1.0, %v2700
    %v2702 = vrcp.pop %v2654
    %v2703 = vmul.f32 %v2654, %v2702
    %v2704 = vsub.f32 1.0, %v2703
    %v2705 = vmul.f32 %v2702, %v2704
    %v2706 = vadd.f32 %v2702, %v2705
    %vm2707 = vweird.f32 %v2654
    %vm2708 = vweird.f32 %v2702
    %vm2709 = vmor %vm2707, %vm2708
    %v2710 = vsel %vm2709, %v2702, %v2706
    %v2711 = vand.u32 2147483647, %v2654
    %vm2712 = vcmp.eq.f32.partialorder %v2711, 8.507059e+37
    %v2713 = vand.u32 %v2654, 2147483648
    %v2714 = vor.u32 1.1754944e-38, %v2713
    %v2715 = vsel %vm2712, %v2714, %v2710
    %v2716 = vmul.f32 1.0, %v2715
    %v2717 = vrcp.pop %v2655
    %v2718 = vmul.f32 %v2655, %v2717
    %v2719 = vsub.f32 1.0, %v2718
    %v2720 = vmul.f32 %v2717, %v2719
    %v2721 = vadd.f32 %v2717, %v2720
    %vm2722 = vweird.f32 %v2655
    %vm2723 = vweird.f32 %v2717
    %vm2724 = vmor %vm2722, %vm2723
    %v2725 = vsel %vm2724, %v2717, %v2721
    %v2726 = vand.u32 2147483647, %v2655
    %vm2727 = vcmp.eq.f32.partialorder %v2726, 8.507059e+37
    %v2728 = vand.u32 %v2655, 2147483648
    %v2729 = vor.u32 1.1754944e-38, %v2728
    %v2730 = vsel %vm2727, %v2729, %v2725
    %v2731 = vmul.f32 1.0, %v2730
    %v2732 = vrcp.pop %v2656
    %v2733 = vmul.f32 %v2656, %v2732
    %v2734 = vsub.f32 1.0, %v2733
    %v2735 = vmul.f32 %v2732, %v2734
    %v2736 = vadd.f32 %v2732, %v2735
    %vm2737 = vweird.f32 %v2656
    %vm2738 = vweird.f32 %v2732
    %vm2739 = vmor %vm2737, %vm2738
    %v2740 = vsel %vm2739, %v2732, %v2736
    %v2741 = vand.u32 2147483647, %v2656
    %vm2742 = vcmp.eq.f32.partialorder %v2741, 8.507059e+37
    %v2743 = vand.u32 %v2656, 2147483648
    %v2744 = vor.u32 1.1754944e-38, %v2743
    %v2745 = vsel %vm2742, %v2744, %v2740
    %v2746 = vmul.f32 1.0, %v2745
    %v2747 = vmul.f32 %v2671, 1.0614054
    %v2748 = vmul.f32 %v2686, 1.0614054
    %v2749 = vmul.f32 %v2701, 1.0614054
    %v2750 = vmul.f32 %v2716, 1.0614054
    %v2751 = vmul.f32 %v2731, 1.0614054
    %v2752 = vmul.f32 %v2746, 1.0614054
    %v2753 = vadd.f32 %v2747, -1.4531521
    %v2754 = vadd.f32 %v2748, -1.4531521
    %v2755 = vadd.f32 %v2749, -1.4531521
    %v2756 = vadd.f32 %v2750, -1.4531521
    %v2757 = vadd.f32 %v2751, -1.4531521
    %v2758 = vadd.f32 %v2752, -1.4531521
    %v2759 = vmul.f32 %v2671, %v2753
    %v2760 = vmul.f32 %v2686, %v2754
    %v2761 = vmul.f32 %v2701, %v2755
    %v2762 = vmul.f32 %v2716, %v2756
    %v2763 = vmul.f32 %v2731, %v2757
    %v2764 = vmul.f32 %v2746, %v2758
    %v2765 = vadd.f32 %v2759, 1.4214138
    %v2766 = vadd.f32 %v2760, 1.4214138
    %v2767 = vadd.f32 %v2761, 1.4214138
    %v2768 = vadd.f32 %v2762, 1.4214138
    %v2769 = vadd.f32 %v2763, 1.4214138
    %v2770 = vadd.f32 %v2764, 1.4214138
    %v2771 = vmul.f32 %v2671, %v2765
    %v2772 = vmul.f32 %v2686, %v2766
    %v2773 = vmul.f32 %v2701, %v2767
    %v2774 = vmul.f32 %v2716, %v2768
    %v2775 = vmul.f32 %v2731, %v2769
    %v2776 = vmul.f32 %v2746, %v2770
    %v2777 = vadd.f32 %v2771, -0.28449672
    %v2778 = vadd.f32 %v2772, -0.28449672
    %v2779 = vadd.f32 %v2773, -0.28449672
    %v2780 = vadd.f32 %v2774, -0.28449672
    %v2781 = vadd.f32 %v2775, -0.28449672
    %v2782 = vadd.f32 %v2776, -0.28449672
    %v2783 = vmul.f32 %v2671, %v2777
    %v2784 = vmul.f32 %v2686, %v2778
    %v2785 = vmul.f32 %v2701, %v2779
    %v2786 = vmul.f32 %v2716, %v2780
    %v2787 = vmul.f32 %v2731, %v2781
    %v2788 = vmul.f32 %v2746, %v2782
    %v2789 = vadd.f32 %v2783, 0.2548296
    %v2790 = vadd.f32 %v2784, 0.2548296
    %v2791 = vadd.f32 %v2785, 0.2548296
    %v2792 = vadd.f32 %v2786, 0.2548296
    %v2793 = vadd.f32 %v2787, 0.2548296
    %v2794 = vadd.f32 %v2788, 0.2548296
    %v2795 = vmul.f32 %v2671, %v2789
    %v2796 = vmul.f32 %v2686, %v2790
    %v2797 = vmul.f32 %v2701, %v2791
    %v2798 = vmul.f32 %v2716, %v2792
    %v2799 = vmul.f32 %v2731, %v2793
    %v2800 = vmul.f32 %v2746, %v2794
    %v2801 = vsub.f32 0.0, %v2639
    %v2802 = vsub.f32 0.0, %v2640
    %v2803 = vsub.f32 0.0, %v2641
    %v2804 = vsub.f32 0.0, %v2642
    %v2805 = vsub.f32 0.0, %v2643
    %v2806 = vsub.f32 0.0, %v2644
    %v2807 = vmul.f32 %v2801, %v2639
    %v2808 = vmul.f32 %v2802, %v2640
    %v2809 = vmul.f32 %v2803, %v2641
    %v2810 = vmul.f32 %v2804, %v2642
    %v2811 = vmul.f32 %v2805, %v2643
    %v2812 = vmul.f32 %v2806, %v2644
    %v2813 = vmul.f32 %v2807, 1.442695
    %v2814 = vpow.pop %v2813
    %v2815 = vmul.f32 %v2808, 1.442695
    %v2816 = vpow.pop %v2815
    %v2817 = vmul.f32 %v2809, 1.442695
    %v2818 = vpow.pop %v2817
    %v2819 = vmul.f32 %v2810, 1.442695
    %v2820 = vpow.pop %v2819
    %v2821 = vmul.f32 %v2811, 1.442695
    %v2822 = vpow.pop %v2821
    %v2823 = vmul.f32 %v2812, 1.442695
    %v2824 = vpow.pop %v2823
    %v2825 = vmul.f32 %v2795, %v2814
    %v2826 = vmul.f32 %v2796, %v2816
    %v2827 = vmul.f32 %v2797, %v2818
    %v2828 = vmul.f32 %v2798, %v2820
    %v2829 = vmul.f32 %v2799, %v2822
    %v2830 = vmul.f32 %v2800, %v2824
    %v2831 = vsub.f32 1.0, %v2825
    %v2832 = vsub.f32 1.0, %v2826
    %v2833 = vsub.f32 1.0, %v2827
    %v2834 = vsub.f32 1.0, %v2828
    %v2835 = vsub.f32 1.0, %v2829
    %v2836 = vsub.f32 1.0, %v2830
    %v2837 = vmul.f32 %v2633, %v2831
    %v2838 = vmul.f32 %v2634, %v2832
    %v2839 = vmul.f32 %v2635, %v2833
    %v2840 = vmul.f32 %v2636, %v2834
    %v2841 = vmul.f32 %v2637, %v2835
    %v2842 = vmul.f32 %v2638, %v2836
    %v2843 = vadd.f32 %v2837, 1.0
    %v2844 = vadd.f32 %v2838, 1.0
    %v2845 = vadd.f32 %v2839, 1.0
    %v2846 = vadd.f32 %v2840, 1.0
    %v2847 = vadd.f32 %v2841, 1.0
    %v2848 = vadd.f32 %v2842, 1.0
    %v2849 = vmul.f32 %v2615, %v2843
    %v2850 = vmul.f32 %v2616, %v2844
    %v2851 = vmul.f32 %v2617, %v2845
    %v2852 = vmul.f32 %v2618, %v2846
    %v2853 = vmul.f32 %v2619, %v2847
    %v2854 = vmul.f32 %v2620, %v2848
    %v2855 = vpack.c.bf16 %v2850, %v2849
    %v2856 = vpack.c.bf16 %v2852, %v2851
    %v2857 = vpack.c.bf16 %v2854, %v2853
    %s2858 = scalar_lea.vmem %s17, 64
    %v2859 = vld [vmem:[%s2858] sm:$0xf]
    %v2860 = vld [vmem:[%s2858 + $0x4] sm:$0xf]
    %v2861 = vld [vmem:[%s2858 + $0x8] sm:$0xf]
    %v2862 = vld [vmem:[%s2858 + $0xc] sm:$0xf]
    %v2863 = vld [vmem:[%s2858 + $0x10] sm:$0xf]
    %v2864 = vld [vmem:[%s2858 + $0x14] sm:$0xf]
    %v2865 = vld [vmem:[%s2858 + $0x18] sm:$0xf]
    %v2866 = vld [vmem:[%s2858 + $0x1c] sm:$0xf]
    %v2867 = vld [vmem:[%s2858 + $0x20] sm:$0xf]
    %v2868 = vld [vmem:[%s2858 + $0x24] sm:$0xf]
    %v2869 = vld [vmem:[%s2858 + $0x28] sm:$0xf]
    %v2870 = vld [vmem:[%s2858 + $0x2c] sm:$0xf]
    %v2871 = vld [vmem:[%s2858 + $0x30] sm:$0xf]
    %v2872 = vld [vmem:[%s2858 + $0x34] sm:$0xf]
    %v2873 = vld [vmem:[%s2858 + $0x38] sm:$0xf]
    %v2874 = vld [vmem:[%s2858 + $0x3c] sm:$0xf]
    %s2875 = scalar_lea.vmem %s18, 1
    %v2876 = vld [vmem:[%s2875] sm:$0x1]
    %v2878 = vperm.slane %v2876, 0
    %v2896 = vunpack.c.l.b16 %v2859
    %v2897 = vunpack.c.l.b16 %v2860
    %v2898 = vunpack.c.l.b16 %v2861
    %v2899 = vunpack.c.l.b16 %v2862
    %v2900 = vunpack.c.l.b16 %v2863
    %v2901 = vunpack.c.l.b16 %v2864
    %v2902 = vunpack.c.l.b16 %v2865
    %v2903 = vunpack.c.l.b16 %v2866
    %v2904 = vunpack.c.l.b16 %v2867
    %v2905 = vunpack.c.l.b16 %v2868
    %v2906 = vunpack.c.l.b16 %v2869
    %v2907 = vunpack.c.l.b16 %v2870
    %v2908 = vunpack.c.l.b16 %v2871
    %v2909 = vunpack.c.l.b16 %v2872
    %v2910 = vunpack.c.l.b16 %v2873
    %v2911 = vunpack.c.l.b16 %v2874
    %v2912 = vpack.c.b16 %v2897, %v2896
    %v2913 = vpack.c.b16 %v2899, %v2898
    %v2914 = vpack.c.b16 %v2901, %v2900
    %v2915 = vpack.c.b16 %v2903, %v2902
    %v2916 = vpack.c.b16 %v2905, %v2904
    %v2917 = vpack.c.b16 %v2907, %v2906
    %v2918 = vpack.c.b16 %v2909, %v2908
    %v2919 = vpack.c.b16 %v2911, %v2910
    %2928 = vmatpush.bf16.msra.mxu0 %v2919
    %2929 = vmatpush.bf16.msra.mxu0 %v2918
    %2930 = vmatpush.bf16.msra.mxu0 %v2917
    %2931 = vmatpush.bf16.msra.mxu0 %v2916
    %2932 = vmatpush.bf16.msra.mxu0 %v2915
    %2933 = vmatpush.bf16.msra.mxu0 %v2914
    %2934 = vmatpush.bf16.msra.mxu0 %v2913
    %2935 = vmatpush.bf16.msra.mxu0 %v2912
    %2936 = vmatmul.bf16.gmra.mxu0 %v2855
    %v2937 = vpop.f32.mrf.mxu0
    %v2938 = vadd.f32 %v2878, %v2937
    %v2939 = vpop.f32.mrf.mxu0
    %v2940 = vadd.f32 %v2878, %v2939
    %2941 = vmatmul.bf16.gmra.mxu0 %v2856
    %v2942 = vpop.f32.mrf.mxu0
    %v2943 = vadd.f32 %v2878, %v2942
    %v2944 = vpop.f32.mrf.mxu0
    %v2945 = vadd.f32 %v2878, %v2944
    %2946 = vmatmul.bf16.gmra.mxu0 %v2857
    %v2947 = vpop.f32.mrf.mxu0
    %v2948 = vadd.f32 %v2878, %v2947
    %v2949 = vpop.f32.mrf.mxu0
    %v2950 = vadd.f32 %v2878, %v2949
    %2951 = vdwg.mxu0
    %s2952 = scalar_lea.vmem %s19, 1
    %v2953 = vld [vmem:[%s2952] sm:$0x1]
    %v2955 = vperm.slane %v2953, 0
    %v2957 = vmul.f32 %v2955, %v2938
    %v2958 = vmul.f32 %v2955, %v2940
    %v2959 = vmul.f32 %v2955, %v2943
    %v2960 = vmul.f32 %v2955, %v2945
    %v2961 = vmul.f32 %v2955, %v2948
    %v2962 = vmul.f32 %v2955, %v2950
    %v2963 = vadd.f32 %v2397, %v2957
    %v2964 = vadd.f32 %v2398, %v2958
    %v2965 = vadd.f32 %v2399, %v2959
    %v2966 = vadd.f32 %v2400, %v2960
    %v2967 = vadd.f32 %v2401, %v2961
    %v2968 = vadd.f32 %v2402, %v2962
    %v2969 = vld [vmem:[%s20] sm:$0x1]
    %v2970 = vld [vmem:[%s21] sm:$0x1]
    %v2971 = vsel %vm166, %v2963, 0.0
    %2972 = vadd.xlane.f32.xlu0 %v2971
    %v2973 = vpop.xlane.xlu0 %2972
    %v2974 = vsel %vm166, %v2964, 0.0
    %2975 = vadd.xlane.f32.xlu0 %v2974
    %v2976 = vpop.xlane.xlu0 %2975
    %v2977 = vsel %vm166, %v2965, 0.0
    %2978 = vadd.xlane.f32.xlu0 %v2977
    %v2979 = vpop.xlane.xlu0 %2978
    %v2980 = vsel %vm166, %v2966, 0.0
    %2981 = vadd.xlane.f32.xlu0 %v2980
    %v2982 = vpop.xlane.xlu0 %2981
    %v2983 = vsel %vm166, %v2967, 0.0
    %2984 = vadd.xlane.f32.xlu0 %v2983
    %v2985 = vpop.xlane.xlu0 %2984
    %v2986 = vsel %vm166, %v2968, 0.0
    %2987 = vadd.xlane.f32.xlu0 %v2986
    %v2988 = vpop.xlane.xlu0 %2987
    %v2989 = vmul.f32 %v2973, %v191
    %v2990 = vmul.f32 %v2976, %v191
    %v2991 = vmul.f32 %v2979, %v191
    %v2992 = vmul.f32 %v2982, %v191
    %v2993 = vmul.f32 %v2985, %v191
    %v2994 = vmul.f32 %v2988, %v191
    %v2995 = vsub.f32 %v2963, %v2989
    %v2996 = vsub.f32 %v2964, %v2990
    %v2997 = vsub.f32 %v2965, %v2991
    %v2998 = vsub.f32 %v2966, %v2992
    %v2999 = vsub.f32 %v2967, %v2993
    %v3000 = vsub.f32 %v2968, %v2994
    %v3001 = vmul.f32 %v2995, %v2995
    %v3002 = vmul.f32 %v2996, %v2996
    %v3003 = vmul.f32 %v2997, %v2997
    %v3004 = vmul.f32 %v2998, %v2998
    %v3005 = vmul.f32 %v2999, %v2999
    %v3006 = vmul.f32 %v3000, %v3000
    %v3007 = vsel %vm166, %v3001, 0.0
    %3008 = vadd.xlane.f32.xlu0 %v3007
    %v3009 = vpop.xlane.xlu0 %3008
    %v3010 = vsel %vm166, %v3002, 0.0
    %3011 = vadd.xlane.f32.xlu0 %v3010
    %v3012 = vpop.xlane.xlu0 %3011
    %v3013 = vsel %vm166, %v3003, 0.0
    %3014 = vadd.xlane.f32.xlu0 %v3013
    %v3015 = vpop.xlane.xlu0 %3014
    %v3016 = vsel %vm166, %v3004, 0.0
    %3017 = vadd.xlane.f32.xlu0 %v3016
    %v3018 = vpop.xlane.xlu0 %3017
    %v3019 = vsel %vm166, %v3005, 0.0
    %3020 = vadd.xlane.f32.xlu0 %v3019
    %v3021 = vpop.xlane.xlu0 %3020
    %v3022 = vsel %vm166, %v3006, 0.0
    %3023 = vadd.xlane.f32.xlu0 %v3022
    %v3024 = vpop.xlane.xlu0 %3023
    %v3025 = vmul.f32 %v3009, %v191
    %v3026 = vmul.f32 %v3012, %v191
    %v3027 = vmul.f32 %v3015, %v191
    %v3028 = vmul.f32 %v3018, %v191
    %v3029 = vmul.f32 %v3021, %v191
    %v3030 = vmul.f32 %v3024, %v191
    %v3031 = vadd.f32 %v3025, 1e-06
    %v3032 = vadd.f32 %v3026, 1e-06
    %v3033 = vadd.f32 %v3027, 1e-06
    %v3034 = vadd.f32 %v3028, 1e-06
    %v3035 = vadd.f32 %v3029, 1e-06
    %v3036 = vadd.f32 %v3030, 1e-06
    %v3037 = vrsqrt.pop %v3031
    %v3038 = vmul.f32 %v3037, %v3031
    %v3039 = vmul.f32 %v3038, %v3037
    %v3040 = vmul.f32 0.5, %v3039
    %v3041 = vsub.f32 1.5, %v3040
    %v3042 = vmul.f32 %v3037, %v3041
    %vm3043 = vweird.f32 %v3031
    %vm3044 = vweird.f32 %v3037
    %vm3045 = vmor %vm3043, %vm3044
    %v3046 = vsel %vm3045, %v3037, %v3042
    %v3047 = vrsqrt.pop %v3032
    %v3048 = vmul.f32 %v3047, %v3032
    %v3049 = vmul.f32 %v3048, %v3047
    %v3050 = vmul.f32 0.5, %v3049
    %v3051 = vsub.f32 1.5, %v3050
    %v3052 = vmul.f32 %v3047, %v3051
    %vm3053 = vweird.f32 %v3032
    %vm3054 = vweird.f32 %v3047
    %vm3055 = vmor %vm3053, %vm3054
    %v3056 = vsel %vm3055, %v3047, %v3052
    %v3057 = vrsqrt.pop %v3033
    %v3058 = vmul.f32 %v3057, %v3033
    %v3059 = vmul.f32 %v3058, %v3057
    %v3060 = vmul.f32 0.5, %v3059
    %v3061 = vsub.f32 1.5, %v3060
    %v3062 = vmul.f32 %v3057, %v3061
    %vm3063 = vweird.f32 %v3033
    %vm3064 = vweird.f32 %v3057
    %vm3065 = vmor %vm3063, %vm3064
    %v3066 = vsel %vm3065, %v3057, %v3062
    %v3067 = vrsqrt.pop %v3034
    %v3068 = vmul.f32 %v3067, %v3034
    %v3069 = vmul.f32 %v3068, %v3067
    %v3070 = vmul.f32 0.5, %v3069
    %v3071 = vsub.f32 1.5, %v3070
    %v3072 = vmul.f32 %v3067, %v3071
    %vm3073 = vweird.f32 %v3034
    %vm3074 = vweird.f32 %v3067
    %vm3075 = vmor %vm3073, %vm3074
    %v3076 = vsel %vm3075, %v3067, %v3072
    %v3077 = vrsqrt.pop %v3035
    %v3078 = vmul.f32 %v3077, %v3035
    %v3079 = vmul.f32 %v3078, %v3077
    %v3080 = vmul.f32 0.5, %v3079
    %v3081 = vsub.f32 1.5, %v3080
    %v3082 = vmul.f32 %v3077, %v3081
    %vm3083 = vweird.f32 %v3035
    %vm3084 = vweird.f32 %v3077
    %vm3085 = vmor %vm3083, %vm3084
    %v3086 = vsel %vm3085, %v3077, %v3082
    %v3087 = vrsqrt.pop %v3036
    %v3088 = vmul.f32 %v3087, %v3036
    %v3089 = vmul.f32 %v3088, %v3087
    %v3090 = vmul.f32 0.5, %v3089
    %v3091 = vsub.f32 1.5, %v3090
    %v3092 = vmul.f32 %v3087, %v3091
    %vm3093 = vweird.f32 %v3036
    %vm3094 = vweird.f32 %v3087
    %vm3095 = vmor %vm3093, %vm3094
    %v3096 = vsel %vm3095, %v3087, %v3092
    %v3097 = vmul.f32 %v2995, %v3046
    %v3098 = vmul.f32 %v2996, %v3056
    %v3099 = vmul.f32 %v2997, %v3066
    %v3100 = vmul.f32 %v2998, %v3076
    %v3101 = vmul.f32 %v2999, %v3086
    %v3102 = vmul.f32 %v3000, %v3096
    %v3104 = vperm.slane %v2969, 0
    %v3106 = vmul.f32 %v3097, %v3104
    %v3107 = vmul.f32 %v3098, %v3104
    %v3108 = vmul.f32 %v3099, %v3104
    %v3109 = vmul.f32 %v3100, %v3104
    %v3110 = vmul.f32 %v3101, %v3104
    %v3111 = vmul.f32 %v3102, %v3104
    %v3113 = vperm.slane %v2970, 0
    %v3115 = vadd.f32 %v3106, %v3113
    %v3116 = vadd.f32 %v3107, %v3113
    %v3117 = vadd.f32 %v3108, %v3113
    %v3118 = vadd.f32 %v3109, %v3113
    %v3119 = vadd.f32 %v3110, %v3113
    %v3120 = vadd.f32 %v3111, %v3113
    %v3121 = vld [vmem:[%s4] sm:$0x3]
    %v3123 = vsel %vm124, %v3121, 0
    %3125 = vmatpush.msra.mxu0 0.0
    %3126 = vmatpush.msra.mxu0 0.0
    %3127 = vmatpush.msra.mxu0 0.0
    %3128 = vmatpush.msra.mxu0 0.0
    %3129 = vmatpush.msra.mxu0 0.0
    %3130 = vmatpush.msra.mxu0 0.0
    %3131 = vmatpush.msra.mxu0 0.0
    %3132 = vmatpush.msra.mxu0 0.0
    %3133 = vmatpush.msra.mxu0 0.0
    %3134 = vmatpush.msra.mxu0 0.0
    %3135 = vmatpush.msra.mxu0 %v3120
    %3136 = vmatpush.msra.mxu0 %v3119
    %3137 = vmatpush.msra.mxu0 %v3118
    %3138 = vmatpush.msra.mxu0 %v3117
    %3139 = vmatpush.msra.mxu0 %v3116
    %3140 = vmatpush.msra.mxu0 %v3115
    %3141 = vmatmul.f32.gmra.mxu0 %v3123
    %v3142 = vpop.f32.mrf.mxu0
    %v3143 = vadd.f32 0.0, %v3142
    %3144 = vdwg.mxu0
    %v3145 = vld [vmem:[%s5] sm:$0x3]
    %v3147 = vsel %vm124, %v3145, 0
    %3149 = vmatpush.msra.mxu0 0.0
    %3150 = vmatpush.msra.mxu0 0.0
    %3151 = vmatpush.msra.mxu0 0.0
    %3152 = vmatpush.msra.mxu0 0.0
    %3153 = vmatpush.msra.mxu0 0.0
    %3154 = vmatpush.msra.mxu0 0.0
    %3155 = vmatpush.msra.mxu0 0.0
    %3156 = vmatpush.msra.mxu0 0.0
    %3157 = vmatpush.msra.mxu0 0.0
    %3158 = vmatpush.msra.mxu0 0.0
    %3159 = vmatpush.msra.mxu0 %v3120
    %3160 = vmatpush.msra.mxu0 %v3119
    %3161 = vmatpush.msra.mxu0 %v3118
    %3162 = vmatpush.msra.mxu0 %v3117
    %3163 = vmatpush.msra.mxu0 %v3116
    %3164 = vmatpush.msra.mxu0 %v3115
    %3165 = vmatmul.f32.gmra.mxu0 %v3147
    %v3166 = vpop.f32.mrf.mxu0
    %v3167 = vadd.f32 0.0, %v3166
    %3168 = vdwg.mxu0
    %3170 = vrot.lane.b32.xlu0 %v3167, 32
    %v3171 = vpop.permute.xlu0 %3170
    %v3173 = vsel %vm166, %v3143, %v3171
    %vm3174 = vcmask 517120
    %3175 = vst.msk [vmem:[#allocation2] sm:$0x3] %vm3174, %v3173
    // Predicated region
    $region90: #{dinov2_feature_encoder.1} parent=1 // pred_check
      _
    $region91: #{dinov2_feature_encoder.1} parent=1 // pred_check_branch
      %3177 = sbr.rel (0) target = $region93
    $region92: #{dinov2_feature_encoder.1} parent=1 // pred_region
      %3179 = vsyncadd [#allocation3], 0
      %s3181 = sshll.u32 [#allocation2], 4
      %s3182 = int_to_ptr.vmem [resolvable:$true] %s3181
      %s3183 = sshll.u32 %s22, 4
      %s3184 = int_to_ptr.hbm [resolvable:$true] %s3183
      %3186 = dma.vmem_to_hbm [thread:$0]  %s3182, 32, %s3184, [#allocation3]
    $region93: #{dinov2_feature_encoder.1} parent=1 // pred_fallthru
      _
    // Predicated region
    $region94: #{dinov2_feature_encoder.1} parent=1 // pred_check
      _
    $region95: #{dinov2_feature_encoder.1} parent=1 // pred_check_branch
      %3188 = sbr.rel (0) target = $region97
    $region96: #{dinov2_feature_encoder.1} parent=1 // pred_region
      %3190 = dma.done [#allocation3], 32
    $region97: #{dinov2_feature_encoder.1} parent=1 // pred_fallthru
      _
    %3191 = vsyncpa [#allocation3], 1

</llo_original>
